<compile_context>
chip_gen: v5e
topology: v5e:2x2
jax: 0.10.0
libtpu: 0.0.40
codegen_flags: <defaults>
</compile_context>

<pallas_src>
import functools

import jax
import jax.numpy as jnp
from jax.experimental import pallas as pl
from jax.experimental.pallas import tpu as pltpu

EPS = 1e-5


# -----------------------------------------------------------------------------
# Kernel 1: fused affine + multi-pixel im2col + merged conv (+ BN2) + PReLU
# -----------------------------------------------------------------------------

def _rgbd_conv_kernel(x_ref, s_ref, t_ref, w_ref, b_ref, a_ref, o_ref,
                      halo_ref, patch_ref, *, C, J):
    gN, H, WC = x_ref.shape              # x is (gN, H, W*C), 64-lane dense
    G = patch_ref.shape[1]               # pixel groups per row (W // J)
    K2 = patch_ref.shape[3]              # 5 * (J+4) * C = 160 (no pad tail)
    Cout4 = w_ref.shape[1]               # J * hidden = 128 (lane dense)
    KH = 5
    PADL = 2 * C                         # left/right halo lanes (2 cols)
    WIN = (J + 4) * C                    # lanes needed per (group, ky) window
    GSTR = J * C                         # lane stride between pixel groups

    # Zero only the halo frame (top/bottom rows + left/right pad lanes); the
    # interior is fully overwritten by the fused affine below.  Re-done every
    # step so the kernel stays correct under "parallel" megacore splitting.
    halo_ref[:, 0:2, :] = jnp.zeros((gN, 2, halo_ref.shape[2]), jnp.float32)
    halo_ref[:, 2 + H:, :] = jnp.zeros((gN, 2, halo_ref.shape[2]), jnp.float32)
    halo_ref[:, 2:2 + H, 0:PADL] = jnp.zeros((gN, H, PADL), jnp.float32)
    halo_ref[:, 2:2 + H, PADL + WC:] = jnp.zeros((gN, H, PADL), jnp.float32)

    # Fused (x*2-1) + BatchNorm2d(4): one per-(w,c)-lane affine, dense store.
    halo_ref[:, 2:2 + H, PADL:PADL + WC] = x_ref[...] * s_ref[0] + t_ref[0]

    # Multi-pixel im2col: for each (group g, kernel row ky) the needed
    # (kx, c) inputs of all 4 pixels in the group are one contiguous WIN-lane
    # slice of the halo row -> 20 contiguous copies (5 ky x 4 groups).
    for g in range(G):
        for ky in range(KH):
            patch_ref[:, g, :, ky * WIN:(ky + 1) * WIN] = (
                halo_ref[:, ky:ky + H, g * GSTR:g * GSTR + WIN])

    # One MXU matmul for all Ted_Conv2d branches x 4 pixels (merged multi-pixel
    # 5x5 weight with BatchNorm2d(hidden) folded in); epilogue = bias + PReLU.
    pmat = patch_ref[...].reshape(gN * G * H, K2)        # free (leading merge)
    y = jnp.dot(pmat, w_ref[...], preferred_element_type=jnp.float32)
    y = y + b_ref[0]
    a = a_ref[0]
    y = jnp.where(y > 0, y, a * y)
    o_ref[...] = y.reshape(gN, G * H, Cout4)             # free (leading split)


def rgbd_conv(x_nhwc, pre_scale_t, pre_shift_t, w2, bias2, alpha,
              *, images_per_block=8):
    """(N,H,W,4) -> (N, (W//4)*H, 4*hidden) lane-dense conv activation."""
    N, H, W, C = x_nhwc.shape
    assert C == 4 and W % 4 == 0, "RGBD_IN expects 4 channels, W % 4 == 0"
    J = 4
    G = W // J
    WC = W * C
    K2, Cout4 = w2.shape
    x_flat = x_nhwc.reshape(N, H, WC)

    # Prefer the largest image block that still leaves >= 2 grid steps so the
    # "parallel" axis can be split across 2 TensorCores (v7x megacore).
    divisors = [g for g in range(1, min(N, images_per_block) + 1) if N % g == 0]
    multi = [g for g in divisors if N // g >= 2]
    gN = max(multi) if multi else max(divisors)

    flops = 2 * N * G * H * K2 * Cout4
    bytes_accessed = 4 * (N * H * WC + K2 * Cout4 + Cout4 + 2 * WC
                          + N * G * H * Cout4)
    return pl.pallas_call(
        functools.partial(_rgbd_conv_kernel, C=C, J=J),
        out_shape=jax.ShapeDtypeStruct((N, G * H, Cout4), jnp.float32),
        grid=(N // gN,),
        in_specs=[
            pl.BlockSpec((gN, H, WC), lambda i: (i, 0, 0)),
            pl.BlockSpec((1, WC), lambda i: (0, 0)),
            pl.BlockSpec((1, WC), lambda i: (0, 0)),
            pl.BlockSpec((K2, Cout4), lambda i: (0, 0)),
            pl.BlockSpec((1, Cout4), lambda i: (0, 0)),
            pl.BlockSpec(memory_space=pltpu.MemorySpace.SMEM),   # PReLU alpha
        ],
        out_specs=pl.BlockSpec((gN, G * H, Cout4), lambda i: (i, 0, 0)),
        scratch_shapes=[
            pltpu.VMEM((gN, H + 4, (W + 4) * C), jnp.float32),   # zero-halo img
            pltpu.VMEM((gN, G, H, K2), jnp.float32),             # im2col matrix
        ],
        compiler_params=pltpu.CompilerParams(
            dimension_semantics=("parallel",),
            vmem_limit_bytes=32 * 1024 * 1024),
        cost_estimate=pl.CostEstimate(flops=flops, transcendentals=0,
                                      bytes_accessed=bytes_accessed),
    )(x_flat, pre_scale_t, pre_shift_t, w2, bias2, alpha.reshape(1))


# -----------------------------------------------------------------------------
# Kernel 2: Linear (+ folded BatchNorm1d) + PReLU, single block
# -----------------------------------------------------------------------------

def _linear_prelu_kernel(x_ref, w_ref, b_ref, a_ref, o_ref):
    y = jnp.dot(x_ref[...], w_ref[...], preferred_element_type=jnp.float32)
    y = y + b_ref[0]
    a = a_ref[0]
    o_ref[...] = jnp.where(y > 0, y, a * y)


def linear_prelu(x, w, bias, alpha):
    B, K = x.shape
    F = w.shape[1]
    return pl.pallas_call(
        _linear_prelu_kernel,
        out_shape=jax.ShapeDtypeStruct((B, F), jnp.float32),
        grid=(1,),
        in_specs=[
            pl.BlockSpec((B, K), lambda i: (0, 0)),
            pl.BlockSpec((K, F), lambda i: (0, 0)),
            pl.BlockSpec((1, F), lambda i: (0, 0)),
            pl.BlockSpec(memory_space=pltpu.MemorySpace.SMEM),   # PReLU alpha
        ],
        out_specs=pl.BlockSpec((B, F), lambda i: (0, 0)),
        compiler_params=pltpu.CompilerParams(
            dimension_semantics=("arbitrary",),
            vmem_limit_bytes=32 * 1024 * 1024),
        cost_estimate=pl.CostEstimate(flops=2 * B * K * F, transcendentals=0,
                                      bytes_accessed=4 * (B * K + K * F + F + B * F)),
    )(x, w, bias.reshape(1, F), alpha.reshape(1))


# -----------------------------------------------------------------------------
# RGBD_IN forward
# -----------------------------------------------------------------------------

def rgbd_in_forward(rgbd, p):
    if rgbd.ndim == 4:
        rgbd = rgbd[:, None]
    E, S, H, W, C = rgbd.shape
    N = E * S
    x = rgbd.reshape(N, H, W, C).astype(jnp.float32)           # stay NHWC
    conv_out = rgbd_conv(x, p["pre_scale_t"], p["pre_shift_t"],
                         p["conv_w2"], p["conv_bias2"], p["prelu1"])
    flat = conv_out.reshape(N, -1)    # free view of the lane-dense (N,64,128)
    z = linear_prelu(flat, p["lin_w_k"], p["lin_b_k"], p["prelu2"])
    return z.reshape(E, S, -1)


# -----------------------------------------------------------------------------
# Deterministic parameter construction (synthetic; no checkpoint load)
# -----------------------------------------------------------------------------

def build_params(key, image_size, hidden_size, encode_rgbd_size):
    ks = list(jax.random.split(key, 20))
    nrm = lambda k, s, sc=0.05: (sc * jax.random.normal(k, s)).astype(jnp.float32)
    p = {}
    W = image_size
    J = 4
    G = W // J
    P = W * W

    # BatchNorm2d(4), eval; folded together with (x*2-1) into one affine,
    # pre-tiled to (1, W*C) so the kernel's affine is lane-dense.
    bn1_g = 1.0 + nrm(ks[0], (4,), 0.1)
    bn1_b = nrm(ks[1], (4,), 0.1)
    bn1_rm = nrm(ks[2], (4,), 0.1)
    bn1_rv = 1.0 + 0.1 * jnp.abs(jax.random.normal(ks[3], (4,))).astype(jnp.float32)
    p.update(bn1_g=bn1_g, bn1_b=bn1_b, bn1_rm=bn1_rm, bn1_rv=bn1_rv)
    s1 = bn1_g / jnp.sqrt(bn1_rv + EPS)
    pre_scale = 2.0 * s1
    pre_shift = bn1_b - s1 * (1.0 + bn1_rm)
    p["pre_scale_t"] = jnp.tile(pre_scale, W).reshape(1, W * 4)
    p["pre_shift_t"] = jnp.tile(pre_shift, W).reshape(1, W * 4)

    # Ted_Conv2d: 4 branches (kernels 1,3,3,5, hidden//4 each) -> one 5x5 kernel
    branch_out = hidden_size // 4
    ws = []
    for bi, k in enumerate([1, 3, 3, 5]):
        w = nrm(ks[4 + bi], (branch_out, 4, k, k), 0.05)
        pad = (5 - k) // 2
        ws.append(jnp.pad(w, ((0, 0), (0, 0), (pad, pad), (pad, pad))))
    conv_w = jnp.concatenate(ws, axis=0)                       # (hidden, 4, 5, 5)
    conv_b = nrm(ks[8], (hidden_size,), 0.05)
    p["conv_w"] = conv_w
    p["conv_b"] = conv_b

    # BatchNorm2d(hidden), eval -> folded into the conv weight/bias.
    bn2_g = 1.0 + nrm(ks[9], (hidden_size,), 0.1)
    bn2_b = nrm(ks[10], (hidden_size,), 0.1)
    bn2_rm = nrm(ks[11], (hidden_size,), 0.1)
    bn2_rv = 1.0 + 0.1 * jnp.abs(jax.random.normal(ks[12], (hidden_size,))).astype(jnp.float32)
    p.update(bn2_g=bn2_g, bn2_b=bn2_b, bn2_rm=bn2_rm, bn2_rv=bn2_rv)
    s2 = bn2_g / jnp.sqrt(bn2_rv + EPS)

    # Merged multi-pixel (4 output pixels per matmul row) 5x5 weight:
    #   W2[(ky, wx, ci), (j, co)] = conv_w[co, ci, ky, wx - j] if 0 <= wx-j <= 4
    w5_t = conv_w.transpose(2, 3, 1, 0)                        # (ky, kx, ci, co)
    w2 = jnp.zeros((5, J + 4, 4, J, hidden_size), jnp.float32)
    for j in range(J):
        w2 = w2.at[:, j:j + 5, :, j, :].set(w5_t)
    w2 = w2 * s2                                               # fold BN2 scale
    p["conv_w2"] = w2.reshape(5 * (J + 4) * 4, J * hidden_size)   # (160, 128)
    bias_k = conv_b * s2 + (bn2_b - bn2_rm * s2)
    p["conv_bias2"] = jnp.tile(bias_k, J).reshape(1, J * hidden_size)
    p["prelu1"] = jnp.full((1,), 0.25, jnp.float32)

    # rgbd_in_lin: Linear(hidden*H*W -> encode_rgbd_size) + BatchNorm1d + PReLU
    lat = hidden_size * P
    lin_w = nrm(ks[13], (lat, encode_rgbd_size), 0.02)         # torch row order
    lin_b = nrm(ks[14], (encode_rgbd_size,), 0.05)
    p["lin_w"] = lin_w
    p["lin_b"] = lin_b
    bn3_g = 1.0 + nrm(ks[15], (encode_rgbd_size,), 0.1)
    bn3_b = nrm(ks[16], (encode_rgbd_size,), 0.1)
    bn3_rm = nrm(ks[17], (encode_rgbd_size,), 0.1)
    bn3_rv = 1.0 + 0.1 * jnp.abs(jax.random.normal(ks[18], (encode_rgbd_size,))).astype(jnp.float32)
    p.update(bn3_g=bn3_g, bn3_b=bn3_b, bn3_rm=bn3_rm, bn3_rv=bn3_rv)
    s3 = bn3_g / jnp.sqrt(bn3_rv + EPS)
    # Permute rows from torch's channel-major flatten (co, h, w) to the kernel's
    # (g, h, j, co) order (w = 4g + j), and fold BatchNorm1d into weight/bias.
    lw = lin_w.reshape(hidden_size, W, G, J, encode_rgbd_size)   # (co,h,g,j,f)
    lw = lw.transpose(2, 1, 3, 0, 4)                             # (g,h,j,co,f)
    p["lin_w_k"] = lw.reshape(lat, encode_rgbd_size) * s3[None, :]
    p["lin_b_k"] = lin_b * s3 + (bn3_b - bn3_rm * s3)
    p["prelu2"] = jnp.full((1,), 0.25, jnp.float32)
    return p


# -----------------------------------------------------------------------------
# Pure-JAX reference (mirrors the PyTorch forward, eval mode)
# -----------------------------------------------------------------------------

def reference_forward(rgbd, p):
    E, S, H, W, C = rgbd.shape
    N = E * S
    x = rgbd.reshape(N, H, W, C).transpose(0, 3, 1, 2)          # NCHW like torch
    x = x * 2.0 - 1.0
    s1 = p["bn1_g"] / jnp.sqrt(p["bn1_rv"] + EPS)
    x = (x - p["bn1_rm"][None, :, None, None]) * s1[None, :, None, None] \
        + p["bn1_b"][None, :, None, None]
    y = jax.lax.conv_general_dilated(x, p["conv_w"], (1, 1), "SAME",
                                     dimension_numbers=("NCHW", "OIHW", "NCHW"))
    y = y + p["conv_b"][None, :, None, None]
    s2 = p["bn2_g"] / jnp.sqrt(p["bn2_rv"] + EPS)
    y = (y - p["bn2_rm"][None, :, None, None]) * s2[None, :, None, None] \
        + p["bn2_b"][None, :, None, None]
    y = jnp.where(y > 0, y, p["prelu1"][0] * y)
    flat = y.reshape(N, -1)                                     # channel-major flatten(1)
    z = flat @ p["lin_w"] + p["lin_b"]
    s3 = p["bn3_g"] / jnp.sqrt(p["bn3_rv"] + EPS)
    z = (z - p["bn3_rm"]) * s3 + p["bn3_b"]
    z = jnp.where(z > 0, z, p["prelu2"][0] * z)
    return z.reshape(E, S, -1)


# -----------------------------------------------------------------------------
# Main
# -----------------------------------------------------------------------------

if __name__ == "__main__":
    image_size = 16
    hidden_size = 32
    encode_rgbd_size = 16
    episodes, steps = 2, 2

    key = jax.random.PRNGKey(0)
    k_param, k_rgbd = jax.random.split(key, 2)
    params = build_params(k_param, image_size, hidden_size, encode_rgbd_size)
    rgbd = jax.random.uniform(
        k_rgbd, (episodes, steps, image_size, image_size, 4), dtype=jnp.float32)

    fwd = jax.jit(rgbd_in_forward)
    out = jax.block_until_ready(fwd(rgbd, params))

    ref = reference_forward(rgbd, params)
    assert out.shape == (episodes, steps, encode_rgbd_size), out.shape
    assert jnp.allclose(out, ref, rtol=1e-3, atol=1e-3), (out, ref)

    print("KERNEL_OK")
</pallas_src>

<mosaic_0001>
module attributes {stable_mosaic.version = 11 : i64} {
  func.func @_rgbd_conv_kernel(%arg0: i32, %arg1: memref<2x16x64xf32, #tpu.memory_space<vmem>>, %arg2: memref<1x64xf32, #tpu.memory_space<vmem>>, %arg3: memref<1x64xf32, #tpu.memory_space<vmem>>, %arg4: memref<160x128xf32, #tpu.memory_space<vmem>>, %arg5: memref<1x128xf32, #tpu.memory_space<vmem>>, %arg6: memref<1xf32, #tpu.memory_space<smem>>, %arg7: memref<2x64x128xf32, #tpu.memory_space<vmem>>, %arg8: memref<2x20x80xf32, #tpu.memory_space<vmem>>, %arg9: memref<2x4x16x160xf32, #tpu.memory_space<vmem>>) attributes {dimension_semantics = [#tpu.dimension_semantics<parallel>], iteration_bounds = array<i64: 2>, scalar_prefetch = 0 : i64, scratch_operands = 2 : i64, tpu.core_type = #tpu.core_type<tc>, window_params = [{transform_indices = @transform_0, window_bounds = array<i64: 2, 16, 64>}, {pipeline_mode = #tpu.pipeline_mode<synchronous>, transform_indices = @transform_1, window_bounds = array<i64: 1, 64>}, {pipeline_mode = #tpu.pipeline_mode<synchronous>, transform_indices = @transform_2, window_bounds = array<i64: 1, 64>}, {pipeline_mode = #tpu.pipeline_mode<synchronous>, transform_indices = @transform_3, window_bounds = array<i64: 160, 128>}, {pipeline_mode = #tpu.pipeline_mode<synchronous>, transform_indices = @transform_4, window_bounds = array<i64: 1, 128>}, {transform_indices = @transform_5, window_bounds = array<i64: 1>}, {transform_indices = @transform_6, window_bounds = array<i64: 2, 64, 128>}]} {
    %cst = arith.constant 0.000000e+00 : f32
    %0 = vector.broadcast %cst : f32 to vector<2x2x80xf32>
    %c0 = arith.constant 0 : index
    %c0_0 = arith.constant 0 : index
    %c0_1 = arith.constant 0 : index
    %1 = vector.load %arg8[%c0, %c0_0, %c0_1] : memref<2x20x80xf32, #tpu.memory_space<vmem>>, vector<2x2x80xf32>
    tpu.vector_store %arg8[%c0, %c0_0, %c0_1], %0 {strides = array<i32>} : memref<2x20x80xf32, #tpu.memory_space<vmem>>, vector<2x2x80xf32>,
    %cst_2 = arith.constant 0.000000e+00 : f32
    %2 = vector.broadcast %cst_2 : f32 to vector<2x2x80xf32>
    %c0_3 = arith.constant 0 : index
    %c18 = arith.constant 18 : index
    %c0_4 = arith.constant 0 : index
    %3 = vector.load %arg8[%c0_3, %c18, %c0_4] : memref<2x20x80xf32, #tpu.memory_space<vmem>>, vector<2x2x80xf32>
    tpu.vector_store %arg8[%c0_3, %c18, %c0_4], %2 {strides = array<i32>} : memref<2x20x80xf32, #tpu.memory_space<vmem>>, vector<2x2x80xf32>,
    %cst_5 = arith.constant 0.000000e+00 : f32
    %4 = vector.broadcast %cst_5 : f32 to vector<2x16x8xf32>
    %c0_6 = arith.constant 0 : index
    %c2 = arith.constant 2 : index
    %c0_7 = arith.constant 0 : index
    %5 = vector.load %arg8[%c0_6, %c2, %c0_7] : memref<2x20x80xf32, #tpu.memory_space<vmem>>, vector<2x16x8xf32>
    tpu.vector_store %arg8[%c0_6, %c2, %c0_7], %4 {strides = array<i32>} : memref<2x20x80xf32, #tpu.memory_space<vmem>>, vector<2x16x8xf32>,
    %cst_8 = arith.constant 0.000000e+00 : f32
    %6 = vector.broadcast %cst_8 : f32 to vector<2x16x8xf32>
    %c0_9 = arith.constant 0 : index
    %c2_10 = arith.constant 2 : index
    %c72 = arith.constant 72 : index
    %7 = vector.load %arg8[%c0_9, %c2_10, %c72] : memref<2x20x80xf32, #tpu.memory_space<vmem>>, vector<2x16x8xf32>
    tpu.vector_store %arg8[%c0_9, %c2_10, %c72], %6 {strides = array<i32>} : memref<2x20x80xf32, #tpu.memory_space<vmem>>, vector<2x16x8xf32>,
    %c0_11 = arith.constant 0 : index
    %c0_12 = arith.constant 0 : index
    %c0_13 = arith.constant 0 : index
    %8 = vector.load %arg1[%c0_11, %c0_12, %c0_13] : memref<2x16x64xf32, #tpu.memory_space<vmem>>, vector<2x16x64xf32>
    %c0_14 = arith.constant 0 : index
    %c0_15 = arith.constant 0 : index
    %9 = vector.load %arg2[%c0_14, %c0_15] : memref<1x64xf32, #tpu.memory_space<vmem>>, vector<1x64xf32>
    %10 = vector.shape_cast %9 : vector<1x64xf32> to vector<64xf32>
    %11 = vector.shape_cast %10 : vector<64xf32> to vector<1x1x64xf32>
    %12 = vector.broadcast %11 : vector<1x1x64xf32> to vector<2x16x64xf32>
    %13 = arith.mulf %8, %12 : vector<2x16x64xf32>
    %c0_16 = arith.constant 0 : index
    %c0_17 = arith.constant 0 : index
    %14 = vector.load %arg3[%c0_16, %c0_17] : memref<1x64xf32, #tpu.memory_space<vmem>>, vector<1x64xf32>
    %15 = vector.shape_cast %14 : vector<1x64xf32> to vector<64xf32>
    %16 = vector.shape_cast %15 : vector<64xf32> to vector<1x1x64xf32>
    %17 = vector.broadcast %16 : vector<1x1x64xf32> to vector<2x16x64xf32>
    %18 = arith.addf %13, %17 : vector<2x16x64xf32>
    %c0_18 = arith.constant 0 : index
    %c2_19 = arith.constant 2 : index
    %c8 = arith.constant 8 : index
    %19 = vector.load %arg8[%c0_18, %c2_19, %c8] : memref<2x20x80xf32, #tpu.memory_space<vmem>>, vector<2x16x64xf32>
    tpu.vector_store %arg8[%c0_18, %c2_19, %c8], %18 {strides = array<i32>} : memref<2x20x80xf32, #tpu.memory_space<vmem>>, vector<2x16x64xf32>,
    %c0_20 = arith.constant 0 : index
    %c0_21 = arith.constant 0 : index
    %c0_22 = arith.constant 0 : index
    %20 = vector.load %arg8[%c0_20, %c0_21, %c0_22] : memref<2x20x80xf32, #tpu.memory_space<vmem>>, vector<2x16x32xf32>
    %c0_23 = arith.constant 0 : index
    %c0_24 = arith.constant 0 : index
    %c0_25 = arith.constant 0 : index
    %c0_26 = arith.constant 0 : index
    %21 = vector.load %arg9[%c0_23, %c0_24, %c0_25, %c0_26] : memref<2x4x16x160xf32, #tpu.memory_space<vmem>>, vector<2x1x16x32xf32>
    %22 = vector.shape_cast %21 : vector<2x1x16x32xf32> to vector<2x16x32xf32>
    %23 = vector.shape_cast %20 : vector<2x16x32xf32> to vector<2x1x16x32xf32>
    tpu.vector_store %arg9[%c0_23, %c0_24, %c0_25, %c0_26], %23 {strides = array<i32>} : memref<2x4x16x160xf32, #tpu.memory_space<vmem>>, vector<2x1x16x32xf32>,
    %c0_27 = arith.constant 0 : index
    %c1 = arith.constant 1 : index
    %c0_28 = arith.constant 0 : index
    %24 = vector.load %arg8[%c0_27, %c1, %c0_28] : memref<2x20x80xf32, #tpu.memory_space<vmem>>, vector<2x16x32xf32>
    %c0_29 = arith.constant 0 : index
    %c0_30 = arith.constant 0 : index
    %c0_31 = arith.constant 0 : index
    %c32 = arith.constant 32 : index
    %25 = vector.load %arg9[%c0_29, %c0_30, %c0_31, %c32] : memref<2x4x16x160xf32, #tpu.memory_space<vmem>>, vector<2x1x16x32xf32>
    %26 = vector.shape_cast %25 : vector<2x1x16x32xf32> to vector<2x16x32xf32>
    %27 = vector.shape_cast %24 : vector<2x16x32xf32> to vector<2x1x16x32xf32>
    tpu.vector_store %arg9[%c0_29, %c0_30, %c0_31, %c32], %27 {strides = array<i32>} : memref<2x4x16x160xf32, #tpu.memory_space<vmem>>, vector<2x1x16x32xf32>,
    %c0_32 = arith.constant 0 : index
    %c2_33 = arith.constant 2 : index
    %c0_34 = arith.constant 0 : index
    %28 = vector.load %arg8[%c0_32, %c2_33, %c0_34] : memref<2x20x80xf32, #tpu.memory_space<vmem>>, vector<2x16x32xf32>
    %c0_35 = arith.constant 0 : index
    %c0_36 = arith.constant 0 : index
    %c0_37 = arith.constant 0 : index
    %c64 = arith.constant 64 : index
    %29 = vector.load %arg9[%c0_35, %c0_36, %c0_37, %c64] : memref<2x4x16x160xf32, #tpu.memory_space<vmem>>, vector<2x1x16x32xf32>
    %30 = vector.shape_cast %29 : vector<2x1x16x32xf32> to vector<2x16x32xf32>
    %31 = vector.shape_cast %28 : vector<2x16x32xf32> to vector<2x1x16x32xf32>
    tpu.vector_store %arg9[%c0_35, %c0_36, %c0_37, %c64], %31 {strides = array<i32>} : memref<2x4x16x160xf32, #tpu.memory_space<vmem>>, vector<2x1x16x32xf32>,
    %c0_38 = arith.constant 0 : index
    %c3 = arith.constant 3 : index
    %c0_39 = arith.constant 0 : index
    %32 = vector.load %arg8[%c0_38, %c3, %c0_39] : memref<2x20x80xf32, #tpu.memory_space<vmem>>, vector<2x16x32xf32>
    %c0_40 = arith.constant 0 : index
    %c0_41 = arith.constant 0 : index
    %c0_42 = arith.constant 0 : index
    %c96 = arith.constant 96 : index
    %33 = vector.load %arg9[%c0_40, %c0_41, %c0_42, %c96] : memref<2x4x16x160xf32, #tpu.memory_space<vmem>>, vector<2x1x16x32xf32>
    %34 = vector.shape_cast %33 : vector<2x1x16x32xf32> to vector<2x16x32xf32>
    %35 = vector.shape_cast %32 : vector<2x16x32xf32> to vector<2x1x16x32xf32>
    tpu.vector_store %arg9[%c0_40, %c0_41, %c0_42, %c96], %35 {strides = array<i32>} : memref<2x4x16x160xf32, #tpu.memory_space<vmem>>, vector<2x1x16x32xf32>,
    %c0_43 = arith.constant 0 : index
    %c4 = arith.constant 4 : index
    %c0_44 = arith.constant 0 : index
    %36 = vector.load %arg8[%c0_43, %c4, %c0_44] : memref<2x20x80xf32, #tpu.memory_space<vmem>>, vector<2x16x32xf32>
    %c0_45 = arith.constant 0 : index
    %c0_46 = arith.constant 0 : index
    %c0_47 = arith.constant 0 : index
    %c128 = arith.constant 128 : index
    %37 = vector.load %arg9[%c0_45, %c0_46, %c0_47, %c128] : memref<2x4x16x160xf32, #tpu.memory_space<vmem>>, vector<2x1x16x32xf32>
    %38 = vector.shape_cast %37 : vector<2x1x16x32xf32> to vector<2x16x32xf32>
    %39 = vector.shape_cast %36 : vector<2x16x32xf32> to vector<2x1x16x32xf32>
    tpu.vector_store %arg9[%c0_45, %c0_46, %c0_47, %c128], %39 {strides = array<i32>} : memref<2x4x16x160xf32, #tpu.memory_space<vmem>>, vector<2x1x16x32xf32>,
    %c0_48 = arith.constant 0 : index
    %c0_49 = arith.constant 0 : index
    %c16 = arith.constant 16 : index
    %40 = vector.load %arg8[%c0_48, %c0_49, %c16] : memref<2x20x80xf32, #tpu.memory_space<vmem>>, vector<2x16x32xf32>
    %c0_50 = arith.constant 0 : index
    %c1_51 = arith.constant 1 : index
    %c0_52 = arith.constant 0 : index
    %c0_53 = arith.constant 0 : index
    %41 = vector.load %arg9[%c0_50, %c1_51, %c0_52, %c0_53] : memref<2x4x16x160xf32, #tpu.memory_space<vmem>>, vector<2x1x16x32xf32>
    %42 = vector.shape_cast %41 : vector<2x1x16x32xf32> to vector<2x16x32xf32>
    %43 = vector.shape_cast %40 : vector<2x16x32xf32> to vector<2x1x16x32xf32>
    tpu.vector_store %arg9[%c0_50, %c1_51, %c0_52, %c0_53], %43 {strides = array<i32>} : memref<2x4x16x160xf32, #tpu.memory_space<vmem>>, vector<2x1x16x32xf32>,
    %c0_54 = arith.constant 0 : index
    %c1_55 = arith.constant 1 : index
    %c16_56 = arith.constant 16 : index
    %44 = vector.load %arg8[%c0_54, %c1_55, %c16_56] : memref<2x20x80xf32, #tpu.memory_space<vmem>>, vector<2x16x32xf32>
    %c0_57 = arith.constant 0 : index
    %c1_58 = arith.constant 1 : index
    %c0_59 = arith.constant 0 : index
    %c32_60 = arith.constant 32 : index
    %45 = vector.load %arg9[%c0_57, %c1_58, %c0_59, %c32_60] : memref<2x4x16x160xf32, #tpu.memory_space<vmem>>, vector<2x1x16x32xf32>
    %46 = vector.shape_cast %45 : vector<2x1x16x32xf32> to vector<2x16x32xf32>
    %47 = vector.shape_cast %44 : vector<2x16x32xf32> to vector<2x1x16x32xf32>
    tpu.vector_store %arg9[%c0_57, %c1_58, %c0_59, %c32_60], %47 {strides = array<i32>} : memref<2x4x16x160xf32, #tpu.memory_space<vmem>>, vector<2x1x16x32xf32>,
    %c0_61 = arith.constant 0 : index
    %c2_62 = arith.constant 2 : index
    %c16_63 = arith.constant 16 : index
    %48 = vector.load %arg8[%c0_61, %c2_62, %c16_63] : memref<2x20x80xf32, #tpu.memory_space<vmem>>, vector<2x16x32xf32>
    %c0_64 = arith.constant 0 : index
    %c1_65 = arith.constant 1 : index
    %c0_66 = arith.constant 0 : index
    %c64_67 = arith.constant 64 : index
    %49 = vector.load %arg9[%c0_64, %c1_65, %c0_66, %c64_67] : memref<2x4x16x160xf32, #tpu.memory_space<vmem>>, vector<2x1x16x32xf32>
    %50 = vector.shape_cast %49 : vector<2x1x16x32xf32> to vector<2x16x32xf32>
    %51 = vector.shape_cast %48 : vector<2x16x32xf32> to vector<2x1x16x32xf32>
    tpu.vector_store %arg9[%c0_64, %c1_65, %c0_66, %c64_67], %51 {strides = array<i32>} : memref<2x4x16x160xf32, #tpu.memory_space<vmem>>, vector<2x1x16x32xf32>,
    %c0_68 = arith.constant 0 : index
    %c3_69 = arith.constant 3 : index
    %c16_70 = arith.constant 16 : index
    %52 = vector.load %arg8[%c0_68, %c3_69, %c16_70] : memref<2x20x80xf32, #tpu.memory_space<vmem>>, vector<2x16x32xf32>
    %c0_71 = arith.constant 0 : index
    %c1_72 = arith.constant 1 : index
    %c0_73 = arith.constant 0 : index
    %c96_74 = arith.constant 96 : index
    %53 = vector.load %arg9[%c0_71, %c1_72, %c0_73, %c96_74] : memref<2x4x16x160xf32, #tpu.memory_space<vmem>>, vector<2x1x16x32xf32>
    %54 = vector.shape_cast %53 : vector<2x1x16x32xf32> to vector<2x16x32xf32>
    %55 = vector.shape_cast %52 : vector<2x16x32xf32> to vector<2x1x16x32xf32>
    tpu.vector_store %arg9[%c0_71, %c1_72, %c0_73, %c96_74], %55 {strides = array<i32>} : memref<2x4x16x160xf32, #tpu.memory_space<vmem>>, vector<2x1x16x32xf32>,
    %c0_75 = arith.constant 0 : index
    %c4_76 = arith.constant 4 : index
    %c16_77 = arith.constant 16 : index
    %56 = vector.load %arg8[%c0_75, %c4_76, %c16_77] : memref<2x20x80xf32, #tpu.memory_space<vmem>>, vector<2x16x32xf32>
    %c0_78 = arith.constant 0 : index
    %c1_79 = arith.constant 1 : index
    %c0_80 = arith.constant 0 : index
    %c128_81 = arith.constant 128 : index
    %57 = vector.load %arg9[%c0_78, %c1_79, %c0_80, %c128_81] : memref<2x4x16x160xf32, #tpu.memory_space<vmem>>, vector<2x1x16x32xf32>
    %58 = vector.shape_cast %57 : vector<2x1x16x32xf32> to vector<2x16x32xf32>
    %59 = vector.shape_cast %56 : vector<2x16x32xf32> to vector<2x1x16x32xf32>
    tpu.vector_store %arg9[%c0_78, %c1_79, %c0_80, %c128_81], %59 {strides = array<i32>} : memref<2x4x16x160xf32, #tpu.memory_space<vmem>>, vector<2x1x16x32xf32>,
    %c0_82 = arith.constant 0 : index
    %c0_83 = arith.constant 0 : index
    %c32_84 = arith.constant 32 : index
    %60 = vector.load %arg8[%c0_82, %c0_83, %c32_84] : memref<2x20x80xf32, #tpu.memory_space<vmem>>, vector<2x16x32xf32>
    %c0_85 = arith.constant 0 : index
    %c2_86 = arith.constant 2 : index
    %c0_87 = arith.constant 0 : index
    %c0_88 = arith.constant 0 : index
    %61 = vector.load %arg9[%c0_85, %c2_86, %c0_87, %c0_88] : memref<2x4x16x160xf32, #tpu.memory_space<vmem>>, vector<2x1x16x32xf32>
    %62 = vector.shape_cast %61 : vector<2x1x16x32xf32> to vector<2x16x32xf32>
    %63 = vector.shape_cast %60 : vector<2x16x32xf32> to vector<2x1x16x32xf32>
    tpu.vector_store %arg9[%c0_85, %c2_86, %c0_87, %c0_88], %63 {strides = array<i32>} : memref<2x4x16x160xf32, #tpu.memory_space<vmem>>, vector<2x1x16x32xf32>,
    %c0_89 = arith.constant 0 : index
    %c1_90 = arith.constant 1 : index
    %c32_91 = arith.constant 32 : index
    %64 = vector.load %arg8[%c0_89, %c1_90, %c32_91] : memref<2x20x80xf32, #tpu.memory_space<vmem>>, vector<2x16x32xf32>
    %c0_92 = arith.constant 0 : index
    %c2_93 = arith.constant 2 : index
    %c0_94 = arith.constant 0 : index
    %c32_95 = arith.constant 32 : index
    %65 = vector.load %arg9[%c0_92, %c2_93, %c0_94, %c32_95] : memref<2x4x16x160xf32, #tpu.memory_space<vmem>>, vector<2x1x16x32xf32>
    %66 = vector.shape_cast %65 : vector<2x1x16x32xf32> to vector<2x16x32xf32>
    %67 = vector.shape_cast %64 : vector<2x16x32xf32> to vector<2x1x16x32xf32>
    tpu.vector_store %arg9[%c0_92, %c2_93, %c0_94, %c32_95], %67 {strides = array<i32>} : memref<2x4x16x160xf32, #tpu.memory_space<vmem>>, vector<2x1x16x32xf32>,
    %c0_96 = arith.constant 0 : index
    %c2_97 = arith.constant 2 : index
    %c32_98 = arith.constant 32 : index
    %68 = vector.load %arg8[%c0_96, %c2_97, %c32_98] : memref<2x20x80xf32, #tpu.memory_space<vmem>>, vector<2x16x32xf32>
    %c0_99 = arith.constant 0 : index
    %c2_100 = arith.constant 2 : index
    %c0_101 = arith.constant 0 : index
    %c64_102 = arith.constant 64 : index
    %69 = vector.load %arg9[%c0_99, %c2_100, %c0_101, %c64_102] : memref<2x4x16x160xf32, #tpu.memory_space<vmem>>, vector<2x1x16x32xf32>
    %70 = vector.shape_cast %69 : vector<2x1x16x32xf32> to vector<2x16x32xf32>
    %71 = vector.shape_cast %68 : vector<2x16x32xf32> to vector<2x1x16x32xf32>
    tpu.vector_store %arg9[%c0_99, %c2_100, %c0_101, %c64_102], %71 {strides = array<i32>} : memref<2x4x16x160xf32, #tpu.memory_space<vmem>>, vector<2x1x16x32xf32>,
    %c0_103 = arith.constant 0 : index
    %c3_104 = arith.constant 3 : index
    %c32_105 = arith.constant 32 : index
    %72 = vector.load %arg8[%c0_103, %c3_104, %c32_105] : memref<2x20x80xf32, #tpu.memory_space<vmem>>, vector<2x16x32xf32>
    %c0_106 = arith.constant 0 : index
    %c2_107 = arith.constant 2 : index
    %c0_108 = arith.constant 0 : index
    %c96_109 = arith.constant 96 : index
    %73 = vector.load %arg9[%c0_106, %c2_107, %c0_108, %c96_109] : memref<2x4x16x160xf32, #tpu.memory_space<vmem>>, vector<2x1x16x32xf32>
    %74 = vector.shape_cast %73 : vector<2x1x16x32xf32> to vector<2x16x32xf32>
    %75 = vector.shape_cast %72 : vector<2x16x32xf32> to vector<2x1x16x32xf32>
    tpu.vector_store %arg9[%c0_106, %c2_107, %c0_108, %c96_109], %75 {strides = array<i32>} : memref<2x4x16x160xf32, #tpu.memory_space<vmem>>, vector<2x1x16x32xf32>,
    %c0_110 = arith.constant 0 : index
    %c4_111 = arith.constant 4 : index
    %c32_112 = arith.constant 32 : index
    %76 = vector.load %arg8[%c0_110, %c4_111, %c32_112] : memref<2x20x80xf32, #tpu.memory_space<vmem>>, vector<2x16x32xf32>
    %c0_113 = arith.constant 0 : index
    %c2_114 = arith.constant 2 : index
    %c0_115 = arith.constant 0 : index
    %c128_116 = arith.constant 128 : index
    %77 = vector.load %arg9[%c0_113, %c2_114, %c0_115, %c128_116] : memref<2x4x16x160xf32, #tpu.memory_space<vmem>>, vector<2x1x16x32xf32>
    %78 = vector.shape_cast %77 : vector<2x1x16x32xf32> to vector<2x16x32xf32>
    %79 = vector.shape_cast %76 : vector<2x16x32xf32> to vector<2x1x16x32xf32>
    tpu.vector_store %arg9[%c0_113, %c2_114, %c0_115, %c128_116], %79 {strides = array<i32>} : memref<2x4x16x160xf32, #tpu.memory_space<vmem>>, vector<2x1x16x32xf32>,
    %c0_117 = arith.constant 0 : index
    %c0_118 = arith.constant 0 : index
    %c48 = arith.constant 48 : index
    %80 = vector.load %arg8[%c0_117, %c0_118, %c48] : memref<2x20x80xf32, #tpu.memory_space<vmem>>, vector<2x16x32xf32>
    %c0_119 = arith.constant 0 : index
    %c3_120 = arith.constant 3 : index
    %c0_121 = arith.constant 0 : index
    %c0_122 = arith.constant 0 : index
    %81 = vector.load %arg9[%c0_119, %c3_120, %c0_121, %c0_122] : memref<2x4x16x160xf32, #tpu.memory_space<vmem>>, vector<2x1x16x32xf32>
    %82 = vector.shape_cast %81 : vector<2x1x16x32xf32> to vector<2x16x32xf32>
    %83 = vector.shape_cast %80 : vector<2x16x32xf32> to vector<2x1x16x32xf32>
    tpu.vector_store %arg9[%c0_119, %c3_120, %c0_121, %c0_122], %83 {strides = array<i32>} : memref<2x4x16x160xf32, #tpu.memory_space<vmem>>, vector<2x1x16x32xf32>,
    %c0_123 = arith.constant 0 : index
    %c1_124 = arith.constant 1 : index
    %c48_125 = arith.constant 48 : index
    %84 = vector.load %arg8[%c0_123, %c1_124, %c48_125] : memref<2x20x80xf32, #tpu.memory_space<vmem>>, vector<2x16x32xf32>
    %c0_126 = arith.constant 0 : index
    %c3_127 = arith.constant 3 : index
    %c0_128 = arith.constant 0 : index
    %c32_129 = arith.constant 32 : index
    %85 = vector.load %arg9[%c0_126, %c3_127, %c0_128, %c32_129] : memref<2x4x16x160xf32, #tpu.memory_space<vmem>>, vector<2x1x16x32xf32>
    %86 = vector.shape_cast %85 : vector<2x1x16x32xf32> to vector<2x16x32xf32>
    %87 = vector.shape_cast %84 : vector<2x16x32xf32> to vector<2x1x16x32xf32>
    tpu.vector_store %arg9[%c0_126, %c3_127, %c0_128, %c32_129], %87 {strides = array<i32>} : memref<2x4x16x160xf32, #tpu.memory_space<vmem>>, vector<2x1x16x32xf32>,
    %c0_130 = arith.constant 0 : index
    %c2_131 = arith.constant 2 : index
    %c48_132 = arith.constant 48 : index
    %88 = vector.load %arg8[%c0_130, %c2_131, %c48_132] : memref<2x20x80xf32, #tpu.memory_space<vmem>>, vector<2x16x32xf32>
    %c0_133 = arith.constant 0 : index
    %c3_134 = arith.constant 3 : index
    %c0_135 = arith.constant 0 : index
    %c64_136 = arith.constant 64 : index
    %89 = vector.load %arg9[%c0_133, %c3_134, %c0_135, %c64_136] : memref<2x4x16x160xf32, #tpu.memory_space<vmem>>, vector<2x1x16x32xf32>
    %90 = vector.shape_cast %89 : vector<2x1x16x32xf32> to vector<2x16x32xf32>
    %91 = vector.shape_cast %88 : vector<2x16x32xf32> to vector<2x1x16x32xf32>
    tpu.vector_store %arg9[%c0_133, %c3_134, %c0_135, %c64_136], %91 {strides = array<i32>} : memref<2x4x16x160xf32, #tpu.memory_space<vmem>>, vector<2x1x16x32xf32>,
    %c0_137 = arith.constant 0 : index
    %c3_138 = arith.constant 3 : index
    %c48_139 = arith.constant 48 : index
    %92 = vector.load %arg8[%c0_137, %c3_138, %c48_139] : memref<2x20x80xf32, #tpu.memory_space<vmem>>, vector<2x16x32xf32>
    %c0_140 = arith.constant 0 : index
    %c3_141 = arith.constant 3 : index
    %c0_142 = arith.constant 0 : index
    %c96_143 = arith.constant 96 : index
    %93 = vector.load %arg9[%c0_140, %c3_141, %c0_142, %c96_143] : memref<2x4x16x160xf32, #tpu.memory_space<vmem>>, vector<2x1x16x32xf32>
    %94 = vector.shape_cast %93 : vector<2x1x16x32xf32> to vector<2x16x32xf32>
    %95 = vector.shape_cast %92 : vector<2x16x32xf32> to vector<2x1x16x32xf32>
    tpu.vector_store %arg9[%c0_140, %c3_141, %c0_142, %c96_143], %95 {strides = array<i32>} : memref<2x4x16x160xf32, #tpu.memory_space<vmem>>, vector<2x1x16x32xf32>,
    %c0_144 = arith.constant 0 : index
    %c4_145 = arith.constant 4 : index
    %c48_146 = arith.constant 48 : index
    %96 = vector.load %arg8[%c0_144, %c4_145, %c48_146] : memref<2x20x80xf32, #tpu.memory_space<vmem>>, vector<2x16x32xf32>
    %c0_147 = arith.constant 0 : index
    %c3_148 = arith.constant 3 : index
    %c0_149 = arith.constant 0 : index
    %c128_150 = arith.constant 128 : index
    %97 = vector.load %arg9[%c0_147, %c3_148, %c0_149, %c128_150] : memref<2x4x16x160xf32, #tpu.memory_space<vmem>>, vector<2x1x16x32xf32>
    %98 = vector.shape_cast %97 : vector<2x1x16x32xf32> to vector<2x16x32xf32>
    %99 = vector.shape_cast %96 : vector<2x16x32xf32> to vector<2x1x16x32xf32>
    tpu.vector_store %arg9[%c0_147, %c3_148, %c0_149, %c128_150], %99 {strides = array<i32>} : memref<2x4x16x160xf32, #tpu.memory_space<vmem>>, vector<2x1x16x32xf32>,
    %c0_151 = arith.constant 0 : index
    %c0_152 = arith.constant 0 : index
    %c0_153 = arith.constant 0 : index
    %c0_154 = arith.constant 0 : index
    %100 = vector.load %arg9[%c0_151, %c0_152, %c0_153, %c0_154] : memref<2x4x16x160xf32, #tpu.memory_space<vmem>>, vector<2x4x16x160xf32>
    %101 = vector.shape_cast %100 : vector<2x4x16x160xf32> to vector<128x160xf32>
    %c0_155 = arith.constant 0 : index
    %c0_156 = arith.constant 0 : index
    %102 = vector.load %arg4[%c0_155, %c0_156] : memref<160x128xf32, #tpu.memory_space<vmem>>, vector<160x128xf32>
    %cst_157 = arith.constant dense<0.000000e+00> : vector<128x128xf32>
    %103 = tpu.matmul %101, %102, %cst_157 {dimension_numbers = #tpu.dot_dimension_numbers<[1], [0], [0], [1], [0, 0, 1, 1], [], []>} : vector<128x160xf32>, vector<160x128xf32>, vector<128x128xf32> -> vector<128x128xf32>
    %c0_158 = arith.constant 0 : index
    %c0_159 = arith.constant 0 : index
    %104 = vector.load %arg5[%c0_158, %c0_159] : memref<1x128xf32, #tpu.memory_space<vmem>>, vector<1x128xf32>
    %105 = vector.shape_cast %104 : vector<1x128xf32> to vector<128xf32>
    %106 = vector.shape_cast %105 : vector<128xf32> to vector<1x128xf32>
    %107 = vector.broadcast %106 : vector<1x128xf32> to vector<128x128xf32>
    %108 = arith.addf %103, %107 : vector<128x128xf32>
    %c0_160 = arith.constant 0 : index
    %109 = memref.load %arg6[%c0_160] : memref<1xf32, #tpu.memory_space<smem>>
    %cst_161 = arith.constant 0.000000e+00 : f32
    %110 = vector.broadcast %cst_161 : f32 to vector<128x128xf32>
    %111 = arith.cmpf ogt, %108, %110 : vector<128x128xf32>
    %112 = vector.broadcast %109 : f32 to vector<128x128xf32>
    %113 = arith.mulf %112, %108 : vector<128x128xf32>
    %114 = arith.select %111, %108, %113 : vector<128x128xi1>, vector<128x128xf32>
    %115 = vector.shape_cast %114 : vector<128x128xf32> to vector<2x64x128xf32>
    %c0_162 = arith.constant 0 : index
    %c0_163 = arith.constant 0 : index
    %c0_164 = arith.constant 0 : index
    %116 = vector.load %arg7[%c0_162, %c0_163, %c0_164] : memref<2x64x128xf32, #tpu.memory_space<vmem>>, vector<2x64x128xf32>
    tpu.vector_store %arg7[%c0_162, %c0_163, %c0_164], %115 {strides = array<i32>} : memref<2x64x128xf32, #tpu.memory_space<vmem>>, vector<2x64x128xf32>,
    return
  }
  func.func @transform_0(%arg0: i32) -> (i32, i32, i32) {
    %c0_i32 = arith.constant 0 : i32
    %c0_i32_0 = arith.constant 0 : i32
    %c0_i32_1 = arith.constant 0 : i32
    return %arg0, %c0_i32, %c0_i32_0 : i32, i32, i32
  }
  func.func @transform_1(%arg0: i32) -> (i32, i32) {
    %c0_i32 = arith.constant 0 : i32
    %c0_i32_0 = arith.constant 0 : i32
    %c0_i32_1 = arith.constant 0 : i32
    return %c0_i32, %c0_i32_0 : i32, i32
  }
  func.func @transform_2(%arg0: i32) -> (i32, i32) {
    %c0_i32 = arith.constant 0 : i32
    %c0_i32_0 = arith.constant 0 : i32
    %c0_i32_1 = arith.constant 0 : i32
    return %c0_i32, %c0_i32_0 : i32, i32
  }
  func.func @transform_3(%arg0: i32) -> (i32, i32) {
    %c0_i32 = arith.constant 0 : i32
    %c0_i32_0 = arith.constant 0 : i32
    %c0_i32_1 = arith.constant 0 : i32
    return %c0_i32, %c0_i32_0 : i32, i32
  }
  func.func @transform_4(%arg0: i32) -> (i32, i32) {
    %c0_i32 = arith.constant 0 : i32
    %c0_i32_0 = arith.constant 0 : i32
    %c0_i32_1 = arith.constant 0 : i32
    return %c0_i32, %c0_i32_0 : i32, i32
  }
  func.func @transform_5(%arg0: i32) -> i32 {
    %c0_i32 = arith.constant 0 : i32
    %c0_i32_0 = arith.constant 0 : i32
    return %c0_i32 : i32
  }
  func.func @transform_6(%arg0: i32) -> (i32, i32, i32) {
    %c0_i32 = arith.constant 0 : i32
    %c0_i32_0 = arith.constant 0 : i32
    %c0_i32_1 = arith.constant 0 : i32
    return %arg0, %c0_i32, %c0_i32_0 : i32, i32, i32
  }
}

module attributes {stable_mosaic.version = 11 : i64} {
  func.func @_linear_prelu_kernel(%arg0: i32, %arg1: memref<4x8192xf32, #tpu.memory_space<vmem>>, %arg2: memref<8192x16xf32, #tpu.memory_space<vmem>>, %arg3: memref<1x16xf32, #tpu.memory_space<vmem>>, %arg4: memref<1xf32, #tpu.memory_space<smem>>, %arg5: memref<4x16xf32, #tpu.memory_space<vmem>>) attributes {dimension_semantics = [#tpu.dimension_semantics<arbitrary>], iteration_bounds = array<i64: 1>, scalar_prefetch = 0 : i64, scratch_operands = 0 : i64, tpu.core_type = #tpu.core_type<tc>, window_params = [{pipeline_mode = #tpu.pipeline_mode<synchronous>, transform_indices = @transform_0, window_bounds = array<i64: 4, 8192>}, {pipeline_mode = #tpu.pipeline_mode<synchronous>, transform_indices = @transform_1, window_bounds = array<i64: 8192, 16>}, {pipeline_mode = #tpu.pipeline_mode<synchronous>, transform_indices = @transform_2, window_bounds = array<i64: 1, 16>}, {transform_indices = @transform_3, window_bounds = array<i64: 1>}, {pipeline_mode = #tpu.pipeline_mode<synchronous>, transform_indices = @transform_4, window_bounds = array<i64: 4, 16>}]} {
    %c0 = arith.constant 0 : index
    %c0_0 = arith.constant 0 : index
    %0 = vector.load %arg1[%c0, %c0_0] : memref<4x8192xf32, #tpu.memory_space<vmem>>, vector<4x8192xf32>
    %c0_1 = arith.constant 0 : index
    %c0_2 = arith.constant 0 : index
    %1 = vector.load %arg2[%c0_1, %c0_2] : memref<8192x16xf32, #tpu.memory_space<vmem>>, vector<8192x16xf32>
    %cst = arith.constant dense<0.000000e+00> : vector<4x16xf32>
    %2 = tpu.matmul %0, %1, %cst {dimension_numbers = #tpu.dot_dimension_numbers<[1], [0], [0], [1], [0, 0, 1, 1], [], []>} : vector<4x8192xf32>, vector<8192x16xf32>, vector<4x16xf32> -> vector<4x16xf32>
    %c0_3 = arith.constant 0 : index
    %c0_4 = arith.constant 0 : index
    %3 = vector.load %arg3[%c0_3, %c0_4] : memref<1x16xf32, #tpu.memory_space<vmem>>, vector<1x16xf32>
    %4 = vector.shape_cast %3 : vector<1x16xf32> to vector<16xf32>
    %5 = vector.shape_cast %4 : vector<16xf32> to vector<1x16xf32>
    %6 = vector.broadcast %5 : vector<1x16xf32> to vector<4x16xf32>
    %7 = arith.addf %2, %6 : vector<4x16xf32>
    %c0_5 = arith.constant 0 : index
    %8 = memref.load %arg4[%c0_5] : memref<1xf32, #tpu.memory_space<smem>>
    %cst_6 = arith.constant 0.000000e+00 : f32
    %9 = vector.broadcast %cst_6 : f32 to vector<4x16xf32>
    %10 = arith.cmpf ogt, %7, %9 : vector<4x16xf32>
    %11 = vector.broadcast %8 : f32 to vector<4x16xf32>
    %12 = arith.mulf %11, %7 : vector<4x16xf32>
    %13 = arith.select %10, %7, %12 : vector<4x16xi1>, vector<4x16xf32>
    %c0_7 = arith.constant 0 : index
    %c0_8 = arith.constant 0 : index
    %14 = vector.load %arg5[%c0_7, %c0_8] : memref<4x16xf32, #tpu.memory_space<vmem>>, vector<4x16xf32>
    tpu.vector_store %arg5[%c0_7, %c0_8], %13 {strides = array<i32>} : memref<4x16xf32, #tpu.memory_space<vmem>>, vector<4x16xf32>,
    return
  }
  func.func @transform_0(%arg0: i32) -> (i32, i32) {
    %c0_i32 = arith.constant 0 : i32
    %c0_i32_0 = arith.constant 0 : i32
    %c0_i32_1 = arith.constant 0 : i32
    return %c0_i32, %c0_i32_0 : i32, i32
  }
  func.func @transform_1(%arg0: i32) -> (i32, i32) {
    %c0_i32 = arith.constant 0 : i32
    %c0_i32_0 = arith.constant 0 : i32
    %c0_i32_1 = arith.constant 0 : i32
    return %c0_i32, %c0_i32_0 : i32, i32
  }
  func.func @transform_2(%arg0: i32) -> (i32, i32) {
    %c0_i32 = arith.constant 0 : i32
    %c0_i32_0 = arith.constant 0 : i32
    %c0_i32_1 = arith.constant 0 : i32
    return %c0_i32, %c0_i32_0 : i32, i32
  }
  func.func @transform_3(%arg0: i32) -> i32 {
    %c0_i32 = arith.constant 0 : i32
    %c0_i32_0 = arith.constant 0 : i32
    return %c0_i32 : i32
  }
  func.func @transform_4(%arg0: i32) -> (i32, i32) {
    %c0_i32 = arith.constant 0 : i32
    %c0_i32_0 = arith.constant 0 : i32
    %c0_i32_1 = arith.constant 0 : i32
    return %c0_i32, %c0_i32_0 : i32, i32
  }
}

</mosaic_0001>

<llo_original>
// kernel: rgbd_in_forward.2
$region0: #{rgbd_in_forward.2}
  #allocation0 [shape = 'u32[]', space=smem, size = 0x4, offset = 0x4, fixed_abs, tag = 'smem constant byte address 0x4 - core index']
  #allocation1 [shape = 'u32[72,128]{1,0:T(1,128)}', space=vmem, size = 0x9000, scoped, tag = 'internal scratch']
  #allocation2 [shape = 'f32[2,20,80]{2,1,0:T(8,128)}', space=vmem, size = 0x6000, scoped, tag = 'scratch operand']
  #allocation3 [shape = 'f32[2,4,16,160]{3,2,1,0:T(8,128)}', space=vmem, size = 0x20000, scoped, tag = 'scratch operand']
  #allocation4 [shape = 'f32[1]{0:T(128)S(6)}', space=smem, size = 0x200, scoped, tag = 'scoped memory for rgbd_in_forward.2']
  %s0 = inlined_call_operand.vmem [shape: f32[4,16,64], index: 0, kind: input, shape index: {}]
  %s1 = inlined_call_operand.hbm [shape: f32[1,64], index: 1, kind: input, shape index: {}]
  %s2 = inlined_call_operand.hbm [shape: f32[1,64], index: 2, kind: input, shape index: {}]
  %s3 = inlined_call_operand.hbm [shape: f32[160,128], index: 3, kind: input, shape index: {}]
  %s4 = inlined_call_operand.hbm [shape: f32[1,128], index: 4, kind: input, shape index: {}]
  %s5 = inlined_call_operand.<no memory space> [shape: f32[1], index: 5, kind: input, shape index: {}]
  %s6 = inlined_call_operand.vmem [shape: f32[4,64,128], index: 6, kind: output, shape index: {}]
  %s7 = sld [smem:[#allocation0]]
  $region73: #{rgbd_in_forward.2} parent=0
    _
  %s9 = ssub.s32 1, %s7
  %s10 = scalar_select 0, %s9, %s7
  %11 = sst [smem:[#allocation4]] %s5
  $region1: #{rgbd_in_forward.2} parent=0
    #allocation5 [shape = 'u8[512]{0}', space=vmem, size = 0x400, scoped, tag = 'input window, operand 1, single buffered']
    #allocation6 [shape = 's32[2]{0}', space=sflag, size = 0x8, scoped, tag = 'scoped memory for rgbd_in_forward.2']
    #allocation7 [shape = 'u8[512]{0}', space=vmem, size = 0x400, scoped, tag = 'input window, operand 2, single buffered']
    #allocation8 [shape = 's32[1]{0}', space=sflag, size = 0x4, scoped, tag = 'scoped memory for rgbd_in_forward.2']
    #allocation9 [shape = 'u8[81920]{0}', space=vmem, size = 0x14000, scoped, tag = 'input window, operand 3, single buffered']
    #allocation10 [shape = 'u8[512]{0}', space=vmem, size = 0x400, scoped, tag = 'input window, operand 4, single buffered']
    #allocation11 [shape = 's32[1]{0}', space=sflag, size = 0x4, scoped, tag = 'scoped memory for rgbd_in_forward.2']
    %12 = vsyncpa [#allocation6], 0
    %13 = vsyncpa [#allocation8], 0
    %14 = vsyncpa [#allocation11], 0
    loop: start=0, step=1, limit=4
    $region2: #{rgbd_in_forward.2} parent=1 // loop_pre_header
      _
    $region3: #{rgbd_in_forward.2} parent=1 // loop_header
      %s16 = sphi 0, %s20
      %p17 = scmp.ge.s32.totalorder %s16, 4
      %s26 = sphi 0, %s28
      %s29 = sphi 0, %s26
      %s30 = sphi 0, %s29
      %s46 = sphi 0, %s30
      %s50 = sphi 0, %s50
      %s52 = sphi 0, %s50
      %s53 = sphi 0, %s52
      %s67 = sphi 0, %s53
      %s71 = sphi 0, %s71
      %s73 = sphi 0, %s71
      %s74 = sphi 0, %s73
      %s88 = sphi 0, %s74
      %s92 = sphi 0, %s92
      %s94 = sphi 0, %s92
      %s95 = sphi 0, %s94
      %s109 = sphi 0, %s95
      %s113 = sphi 0, %s113
      %s115 = sphi 0, %s113
      %s116 = sphi 0, %s115
      %s130 = sphi 0, %s116
      %s134 = sphi 0, %s134
      %s136 = sphi 0, %s134
      %s137 = sphi 0, %s136
      %s151 = sphi 0, %s137
      %s157 = sphi 0, %s159
      %s160 = sphi 0, %s157
      %s161 = sphi 0, %s160
      %s177 = sphi 0, %s161
    $region4: #{rgbd_in_forward.2} parent=1 // loop_header_branch
      %19 = sbr.rel (%p17) target = $region8
    $region5: #{rgbd_in_forward.2} parent=1 // loop_body
      %s21 = ssub.s32 %s16, 1
      %s22 = ssub.s32 %s16, 2
      %s23 = sadd.s32 %s16, 1
      %s24 = ssub.s32 %s16, %s23
      %p25 = scmp.eq.s32.totalorder %s24, 0
      %s27 = sadd.s32 %s26, 1
      %s28 = scalar_select %p25, %s26, %s27
      %p31 = pneg %p25
      %p32 = scmp.eq.s32.totalorder %s16, 1
      %p33 = por %p31, %p32
      %p34 = scmp.ne.s32.totalorder %s26, %s29
      %p35 = scmp.eq.s32.totalorder %s16, 0
      %p36 = por %p34, %p35
      %p37 = scmp.ne.s32.totalorder %s26, %s29
      %p38 = scmp.eq.s32.totalorder %s21, 1
      %p39 = por %p37, %p38
      %p40 = scmp.ne.s32.totalorder %s29, %s30
      %p41 = scmp.eq.s32.totalorder %s21, 0
      %p42 = por %p40, %p41
      %p43 = scmp.ne.s32.totalorder %s29, %s30
      %p44 = scmp.eq.s32.totalorder %s22, 1
      %p45 = por %p43, %p44
      %p47 = scmp.ne.s32.totalorder %s30, %s46
      %p48 = scmp.eq.s32.totalorder %s22, 0
      %p49 = por %p47, %p48
      %s51 = sadd.s32 %s50, 1
      %p54 = scmp.eq.s32.totalorder %s16, 1
      %p55 = scmp.ne.s32.totalorder %s50, %s52
      %p56 = scmp.eq.s32.totalorder %s16, 0
      %p57 = por %p55, %p56
      %p58 = scmp.ne.s32.totalorder %s50, %s52
      %p59 = scmp.eq.s32.totalorder %s21, 1
      %p60 = por %p58, %p59
      %p61 = scmp.ne.s32.totalorder %s52, %s53
      %p62 = scmp.eq.s32.totalorder %s21, 0
      %p63 = por %p61, %p62
      %p64 = scmp.ne.s32.totalorder %s52, %s53
      %p65 = scmp.eq.s32.totalorder %s22, 1
      %p66 = por %p64, %p65
      %p68 = scmp.ne.s32.totalorder %s53, %s67
      %p69 = scmp.eq.s32.totalorder %s22, 0
      %p70 = por %p68, %p69
      %s72 = sadd.s32 %s71, 1
      %p75 = scmp.eq.s32.totalorder %s16, 1
      %p76 = scmp.ne.s32.totalorder %s71, %s73
      %p77 = scmp.eq.s32.totalorder %s16, 0
      %p78 = por %p76, %p77
      %p79 = scmp.ne.s32.totalorder %s71, %s73
      %p80 = scmp.eq.s32.totalorder %s21, 1
      %p81 = por %p79, %p80
      %p82 = scmp.ne.s32.totalorder %s73, %s74
      %p83 = scmp.eq.s32.totalorder %s21, 0
      %p84 = por %p82, %p83
      %p85 = scmp.ne.s32.totalorder %s73, %s74
      %p86 = scmp.eq.s32.totalorder %s22, 1
      %p87 = por %p85, %p86
      %p89 = scmp.ne.s32.totalorder %s74, %s88
      %p90 = scmp.eq.s32.totalorder %s22, 0
      %p91 = por %p89, %p90
      %s93 = sadd.s32 %s92, 1
      %p96 = scmp.eq.s32.totalorder %s16, 1
      %p97 = scmp.ne.s32.totalorder %s92, %s94
      %p98 = scmp.eq.s32.totalorder %s16, 0
      %p99 = por %p97, %p98
      %p100 = scmp.ne.s32.totalorder %s92, %s94
      %p101 = scmp.eq.s32.totalorder %s21, 1
      %p102 = por %p100, %p101
      %p103 = scmp.ne.s32.totalorder %s94, %s95
      %p104 = scmp.eq.s32.totalorder %s21, 0
      %p105 = por %p103, %p104
      %p106 = scmp.ne.s32.totalorder %s94, %s95
      %p107 = scmp.eq.s32.totalorder %s22, 1
      %p108 = por %p106, %p107
      %p110 = scmp.ne.s32.totalorder %s95, %s109
      %p111 = scmp.eq.s32.totalorder %s22, 0
      %p112 = por %p110, %p111
      %s114 = sadd.s32 %s113, 1
      %p117 = scmp.eq.s32.totalorder %s16, 1
      %p118 = scmp.ne.s32.totalorder %s113, %s115
      %p119 = scmp.eq.s32.totalorder %s16, 0
      %p120 = por %p118, %p119
      %p121 = scmp.ne.s32.totalorder %s113, %s115
      %p122 = scmp.eq.s32.totalorder %s21, 1
      %p123 = por %p121, %p122
      %p124 = scmp.ne.s32.totalorder %s115, %s116
      %p125 = scmp.eq.s32.totalorder %s21, 0
      %p126 = por %p124, %p125
      %p127 = scmp.ne.s32.totalorder %s115, %s116
      %p128 = scmp.eq.s32.totalorder %s22, 1
      %p129 = por %p127, %p128
      %p131 = scmp.ne.s32.totalorder %s116, %s130
      %p132 = scmp.eq.s32.totalorder %s22, 0
      %p133 = por %p131, %p132
      %s135 = sadd.s32 %s134, 1
      %p138 = scmp.eq.s32.totalorder %s16, 1
      %p139 = scmp.ne.s32.totalorder %s134, %s136
      %p140 = scmp.eq.s32.totalorder %s16, 0
      %p141 = por %p139, %p140
      %p142 = scmp.ne.s32.totalorder %s134, %s136
      %p143 = scmp.eq.s32.totalorder %s21, 1
      %p144 = por %p142, %p143
      %p145 = scmp.ne.s32.totalorder %s136, %s137
      %p146 = scmp.eq.s32.totalorder %s21, 0
      %p147 = por %p145, %p146
      %p148 = scmp.ne.s32.totalorder %s136, %s137
      %p149 = scmp.eq.s32.totalorder %s22, 1
      %p150 = por %p148, %p149
      %p152 = scmp.ne.s32.totalorder %s137, %s151
      %p153 = scmp.eq.s32.totalorder %s22, 0
      %p154 = por %p152, %p153
      %s155 = ssub.s32 %s16, %s23
      %p156 = scmp.eq.s32.totalorder %s155, 0
      %s158 = sadd.s32 %s157, 1
      %s159 = scalar_select %p156, %s157, %s158
      %p162 = pneg %p156
      %p163 = scmp.eq.s32.totalorder %s16, 1
      %p164 = por %p162, %p163
      %p165 = scmp.ne.s32.totalorder %s157, %s160
      %p166 = scmp.eq.s32.totalorder %s16, 0
      %p167 = por %p165, %p166
      %p168 = scmp.ne.s32.totalorder %s157, %s160
      %p169 = scmp.eq.s32.totalorder %s21, 1
      %p170 = por %p168, %p169
      %p171 = scmp.ne.s32.totalorder %s160, %s161
      %p172 = scmp.eq.s32.totalorder %s21, 0
      %p173 = por %p171, %p172
      %p174 = scmp.ne.s32.totalorder %s160, %s161
      %p175 = scmp.eq.s32.totalorder %s22, 1
      %p176 = por %p174, %p175
      %p178 = scmp.ne.s32.totalorder %s161, %s177
      %p179 = scmp.eq.s32.totalorder %s22, 0
      %p180 = por %p178, %p179
      %p181 = scmp.le.s32.totalorder 1, %s16
      %p182 = scmp.lt.s32.totalorder %s16, 3
      %p183 = pnand %p181, %p182
      %p184 = pneg %p183
      // Predicated region
      $region9: #{rgbd_in_forward.2} parent=5 // pred_check
        _
      $region10: #{rgbd_in_forward.2} parent=5 // pred_check_branch
        %186 = sbr.rel (%p183) target = $region12
      $region11: #{rgbd_in_forward.2} parent=5 // pred_region
        %s187 = ssub.s32 %s16, 1
        // Predicated region
        $region13: #{rgbd_in_forward.2} parent=11 // pred_check
          %p188 = pneg %p63
        $region14: #{rgbd_in_forward.2} parent=11 // pred_check_branch
          %190 = sbr.rel (%p188) target = $region16
        $region15: #{rgbd_in_forward.2} parent=11 // pred_region
          %192 = vsyncadd [#allocation6], 0
          %s194 = sshll.u32 %s1, 4
          %s195 = int_to_ptr.hbm [resolvable:$true] %s194
          %s196 = sshll.u32 [#allocation5], 4
          %s197 = int_to_ptr.vmem [resolvable:$true] %s196
          %199 = dma.hbm_to_vmem [thread:$0]  %s195, 16, %s197, [#allocation6]
        $region16: #{rgbd_in_forward.2} parent=11 // pred_fallthru
          _
        // Predicated region
        $region17: #{rgbd_in_forward.2} parent=11 // pred_check
          %p200 = pneg %p84
        $region18: #{rgbd_in_forward.2} parent=11 // pred_check_branch
          %202 = sbr.rel (%p200) target = $region20
        $region19: #{rgbd_in_forward.2} parent=11 // pred_region
          %204 = vsyncadd [#allocation8], 0
          %s206 = sshll.u32 %s2, 4
          %s207 = int_to_ptr.hbm [resolvable:$true] %s206
          %s208 = sshll.u32 [#allocation7], 4
          %s209 = int_to_ptr.vmem [resolvable:$true] %s208
          %211 = dma.hbm_to_vmem [thread:$0]  %s207, 16, %s209, [#allocation8]
        $region20: #{rgbd_in_forward.2} parent=11 // pred_fallthru
          _
        // Predicated region
        $region21: #{rgbd_in_forward.2} parent=11 // pred_check
          %p212 = pneg %p105
        $region22: #{rgbd_in_forward.2} parent=11 // pred_check_branch
          %214 = sbr.rel (%p212) target = $region24
        $region23: #{rgbd_in_forward.2} parent=11 // pred_region
          %216 = vsyncadd [#allocation8], 0
          %s217 = sshll.u32 %s3, 4
          %s218 = int_to_ptr.hbm [resolvable:$true] %s217
          %s219 = sshll.u32 [#allocation9], 4
          %s220 = int_to_ptr.vmem [resolvable:$true] %s219
          %225 = dma.hbm_to_vmem [thread:$0]  %s218, 2560, %s220, [#allocation8], 128, 128, 8
        $region24: #{rgbd_in_forward.2} parent=11 // pred_fallthru
          _
        // Predicated region
        $region25: #{rgbd_in_forward.2} parent=11 // pred_check
          %p226 = pneg %p126
        $region26: #{rgbd_in_forward.2} parent=11 // pred_check_branch
          %228 = sbr.rel (%p226) target = $region28
        $region27: #{rgbd_in_forward.2} parent=11 // pred_region
          %230 = vsyncadd [#allocation11], 0
          %s232 = sshll.u32 %s4, 4
          %s233 = int_to_ptr.hbm [resolvable:$true] %s232
          %s234 = sshll.u32 [#allocation10], 4
          %s235 = int_to_ptr.vmem [resolvable:$true] %s234
          %237 = dma.hbm_to_vmem [thread:$0]  %s233, 16, %s235, [#allocation11]
        $region28: #{rgbd_in_forward.2} parent=11 // pred_fallthru
          _
        // Predicated region
        $region29: #{rgbd_in_forward.2} parent=11 // pred_check
          %p238 = pneg %p147
        $region30: #{rgbd_in_forward.2} parent=11 // pred_check_branch
          %240 = sbr.rel (%p238) target = $region32
        $region31: #{rgbd_in_forward.2} parent=11 // pred_region
          _
        $region32: #{rgbd_in_forward.2} parent=11 // pred_fallthru
          _
      $region12: #{rgbd_in_forward.2} parent=5 // pred_fallthru
        _
      %p241 = scmp.lt.s32.totalorder %s16, 2
      // Predicated region
      $region33: #{rgbd_in_forward.2} parent=5 // pred_check
        %p242 = pneg %p241
      $region34: #{rgbd_in_forward.2} parent=5 // pred_check_branch
        %244 = sbr.rel (%p242) target = $region36
      $region35: #{rgbd_in_forward.2} parent=5 // pred_region
        // Predicated region
        $region37: #{rgbd_in_forward.2} parent=35 // pred_check
          %p245 = pneg %p36
        $region38: #{rgbd_in_forward.2} parent=35 // pred_check_branch
          %247 = sbr.rel (%p245) target = $region40
        $region39: #{rgbd_in_forward.2} parent=35 // pred_region
          %s248 = smul.u32 2, %s16
          %p249 = scmp.lt.s32.totalorder %s248, 3
          %s250 = scalar_select %p249, %s248, 3
          %s251 = smul.addr %s250, 2
          %s252 = smul.addr %s251, 8
          %s253 = scalar_lea.vmem %s0, %s252
          %s254 = smul.u32 2, %s16
        $region40: #{rgbd_in_forward.2} parent=35 // pred_fallthru
          _
      $region36: #{rgbd_in_forward.2} parent=5 // pred_fallthru
        _
      %p255 = scmp.le.s32.totalorder 1, %s16
      %p256 = scmp.lt.s32.totalorder %s16, 3
      %p257 = pnand %p255, %p256
      %p258 = pneg %p257
      // Predicated region
      $region41: #{rgbd_in_forward.2} parent=5 // pred_check
        _
      $region42: #{rgbd_in_forward.2} parent=5 // pred_check_branch
        %260 = sbr.rel (%p257) target = $region44
      $region43: #{rgbd_in_forward.2} parent=5 // pred_region
        %s261 = ssub.s32 %s16, 1
        // Predicated region
        $region45: #{rgbd_in_forward.2} parent=43 // pred_check
          %p262 = pneg %p63
        $region46: #{rgbd_in_forward.2} parent=43 // pred_check_branch
          %264 = sbr.rel (%p262) target = $region48
        $region47: #{rgbd_in_forward.2} parent=43 // pred_region
          %266 = dma.done [#allocation6], 16
        $region48: #{rgbd_in_forward.2} parent=43 // pred_fallthru
          _
        // Predicated region
        $region49: #{rgbd_in_forward.2} parent=43 // pred_check
          %p267 = pneg %p84
        $region50: #{rgbd_in_forward.2} parent=43 // pred_check_branch
          %269 = sbr.rel (%p267) target = $region52
        $region51: #{rgbd_in_forward.2} parent=43 // pred_region
          %271 = dma.done [#allocation8], 16
        $region52: #{rgbd_in_forward.2} parent=43 // pred_fallthru
          _
        // Predicated region
        $region53: #{rgbd_in_forward.2} parent=43 // pred_check
          %p272 = pneg %p105
        $region54: #{rgbd_in_forward.2} parent=43 // pred_check_branch
          %274 = sbr.rel (%p272) target = $region56
        $region55: #{rgbd_in_forward.2} parent=43 // pred_region
          %276 = dma.done [#allocation8], 2560
        $region56: #{rgbd_in_forward.2} parent=43 // pred_fallthru
          _
        // Predicated region
        $region57: #{rgbd_in_forward.2} parent=43 // pred_check
          %p277 = pneg %p126
        $region58: #{rgbd_in_forward.2} parent=43 // pred_check_branch
          %279 = sbr.rel (%p277) target = $region60
        $region59: #{rgbd_in_forward.2} parent=43 // pred_region
          %281 = dma.done [#allocation11], 16
        $region60: #{rgbd_in_forward.2} parent=43 // pred_fallthru
          _
        %s282 = smul.u32 2, %s21
        %p283 = scmp.lt.s32.totalorder %s282, 3
        %s284 = scalar_select %p283, %s282, 3
        %s285 = smul.addr %s284, 2
        %s286 = smul.addr %s285, 8
        %s287 = scalar_lea.vmem %s0, %s286
        %p288 = pneg %p42
        %p289 = pneg %p39
        %p290 = pneg %p63
        %p291 = pneg %p60
        %p292 = pneg %p84
        %p293 = pneg %p81
        %p294 = pneg %p105
        %p295 = pneg %p102
        %p296 = pneg %p126
        %p297 = pneg %p123
        %p298 = pneg %p147
        %p299 = pneg %p144
        %p300 = pneg %p173
        %p301 = pneg %p170
        %s302 = smul.u32 2, %s21
        %p303 = scmp.lt.s32.totalorder %s302, 3
        %s304 = scalar_select %p303, %s302, 3
        %s305 = smul.addr %s304, 8
        %s306 = smul.addr %s305, 8
        %s307 = scalar_lea.vmem %s6, %s306
        %s308 = smul.u32 2, %s21
        %p309 = scmp.lt.s32.totalorder %s308, 3
        %s310 = scalar_select %p309, %s308, 3
        %s311 = smul.addr %s310, 2
        %s312 = smul.addr %s311, 8
        %s313 = scalar_lea.vmem %s0, %s312
        %s314 = smul.u32 2, %s21
        %s315 = smul.u32 2, %s21
        %p316 = scmp.lt.s32.totalorder %s315, 3
        %s317 = scalar_select %p316, %s315, 3
        %s318 = smul.addr %s317, 8
        %s319 = smul.addr %s318, 8
        %s320 = scalar_lea.vmem %s6, %s319
        %s321 = smul.u32 2, %s21
        %vm322 = vcmask 648192
        %323 = vst.msk [vmem:[#allocation2] sm:$0x3] %vm322, 0.0
        %324 = vst.msk [vmem:[#allocation2 + $0x18] sm:$0x3] %vm322, 0.0
        %325 = vst.msk [vmem:[#allocation2 + $0x12] sm:$0x3] %vm322, 0.0
        %326 = vst.msk [vmem:[#allocation2 + $0x2a] sm:$0x3] %vm322, 0.0
        %vm327 = vcmask 64512
        %328 = vst.msk [vmem:[#allocation2 + $0x2] sm:$0xff] %vm327, 0.0
        %329 = vst.msk [vmem:[#allocation2 + $0xa] sm:$0xff] %vm327, 0.0
        %330 = vst.msk [vmem:[#allocation2 + $0x1a] sm:$0xff] %vm327, 0.0
        %331 = vst.msk [vmem:[#allocation2 + $0x22] sm:$0xff] %vm327, 0.0
        %vm332 = vcmask 654912
        %333 = vst.msk [vmem:[#allocation2 + $0x2] sm:$0xff] %vm332, 0.0
        %334 = vst.msk [vmem:[#allocation2 + $0xa] sm:$0xff] %vm332, 0.0
        %335 = vst.msk [vmem:[#allocation2 + $0x1a] sm:$0xff] %vm332, 0.0
        %336 = vst.msk [vmem:[#allocation2 + $0x22] sm:$0xff] %vm332, 0.0
        %v337 = vld [vmem:[%s313] sm:$0xff]
        %v338 = vld [vmem:[%s313 + $0x8] sm:$0xff]
        %v339 = vld [vmem:[%s313 + $0x10] sm:$0xff]
        %v340 = vld [vmem:[%s313 + $0x18] sm:$0xff]
        %v341 = vld [vmem:[#allocation5] sm:$0x1]
        %v343 = vperm.slane %v341, 0
        %v345 = vmul.f32 %v337, %v343
        %v346 = vmul.f32 %v338, %v343
        %v347 = vmul.f32 %v339, %v343
        %v348 = vmul.f32 %v340, %v343
        %v349 = vld [vmem:[#allocation7] sm:$0x1]
        %v351 = vperm.slane %v349, 0
        %v353 = vadd.f32 %v345, %v351
        %v354 = vadd.f32 %v346, %v351
        %v355 = vadd.f32 %v347, %v351
        %v356 = vadd.f32 %v348, %v351
        %361 = vrot.lane.b32.xlu0 %v353, 8
        %v362 = vpop.permute.xlu0 %361
        %363 = vrot.lane.b32.xlu0 %v354, 8
        %v364 = vpop.permute.xlu0 %363
        %365 = vrot.lane.b32.xlu0 %v355, 8
        %v366 = vpop.permute.xlu0 %365
        %367 = vrot.lane.b32.xlu0 %v356, 8
        %v368 = vpop.permute.xlu0 %367
        %vm373 = vcmask 588864
        %374 = vst.msk [vmem:[#allocation2 + $0x2] sm:$0xff] %vm373, %v362
        %375 = vst.msk [vmem:[#allocation2 + $0xa] sm:$0xff] %vm373, %v364
        %376 = vst.msk [vmem:[#allocation2 + $0x1a] sm:$0xff] %vm373, %v366
        %377 = vst.msk [vmem:[#allocation2 + $0x22] sm:$0xff] %vm373, %v368
        %v378 = vld [vmem:[#allocation2] sm:$0xff]
        %v379 = vld [vmem:[#allocation2 + $0x8] sm:$0xff]
        %v380 = vld [vmem:[#allocation2 + $0x18] sm:$0xff]
        %v381 = vld [vmem:[#allocation2 + $0x20] sm:$0xff]
        %vm382 = vcmask 261120
        %383 = vst.msk [vmem:[#allocation3] sm:$0xff] %vm382, %v378
        %384 = vst.msk [vmem:[#allocation3 + $0x10] sm:$0xff] %vm382, %v379
        %385 = vst.msk [vmem:[#allocation3 + $0x80] sm:$0xff] %vm382, %v380
        %386 = vst.msk [vmem:[#allocation3 + $0x90] sm:$0xff] %vm382, %v381
        %v387 = vld [vmem:[#allocation2 + $0x1] sm:$0xff]
        %v388 = vld [vmem:[#allocation2 + $0x9] sm:$0xff]
        %v389 = vld [vmem:[#allocation2 + $0x19] sm:$0xff]
        %v390 = vld [vmem:[#allocation2 + $0x21] sm:$0xff]
        %395 = vrot.lane.b32.xlu0 %v387, 32
        %v396 = vpop.permute.xlu0 %395
        %397 = vrot.lane.b32.xlu0 %v388, 32
        %v398 = vpop.permute.xlu0 %397
        %399 = vrot.lane.b32.xlu0 %v389, 32
        %v400 = vpop.permute.xlu0 %399
        %401 = vrot.lane.b32.xlu0 %v390, 32
        %v402 = vpop.permute.xlu0 %401
        %vm407 = vcmask 523520
        %408 = vst.msk [vmem:[#allocation3] sm:$0xff] %vm407, %v396
        %409 = vst.msk [vmem:[#allocation3 + $0x10] sm:$0xff] %vm407, %v398
        %410 = vst.msk [vmem:[#allocation3 + $0x80] sm:$0xff] %vm407, %v400
        %411 = vst.msk [vmem:[#allocation3 + $0x90] sm:$0xff] %vm407, %v402
        %v412 = vld [vmem:[#allocation2 + $0x2] sm:$0xff]
        %v413 = vld [vmem:[#allocation2 + $0xa] sm:$0xff]
        %v414 = vld [vmem:[#allocation2 + $0x1a] sm:$0xff]
        %v415 = vld [vmem:[#allocation2 + $0x22] sm:$0xff]
        %420 = vrot.lane.b32.xlu0 %v412, 64
        %v421 = vpop.permute.xlu0 %420
        %422 = vrot.lane.b32.xlu0 %v413, 64
        %v423 = vpop.permute.xlu0 %422
        %424 = vrot.lane.b32.xlu0 %v414, 64
        %v425 = vpop.permute.xlu0 %424
        %426 = vrot.lane.b32.xlu0 %v415, 64
        %v427 = vpop.permute.xlu0 %426
        %vm432 = vcmask 785920
        %433 = vst.msk [vmem:[#allocation3] sm:$0xff] %vm432, %v421
        %434 = vst.msk [vmem:[#allocation3 + $0x10] sm:$0xff] %vm432, %v423
        %435 = vst.msk [vmem:[#allocation3 + $0x80] sm:$0xff] %vm432, %v425
        %436 = vst.msk [vmem:[#allocation3 + $0x90] sm:$0xff] %vm432, %v427
        %v437 = vld [vmem:[#allocation2 + $0x3] sm:$0xff]
        %v438 = vld [vmem:[#allocation2 + $0xb] sm:$0xff]
        %v439 = vld [vmem:[#allocation2 + $0x1b] sm:$0xff]
        %v440 = vld [vmem:[#allocation2 + $0x23] sm:$0xff]
        %445 = vrot.lane.b32.xlu0 %v437, 96
        %v446 = vpop.permute.xlu0 %445
        %447 = vrot.lane.b32.xlu0 %v438, 96
        %v448 = vpop.permute.xlu0 %447
        %449 = vrot.lane.b32.xlu0 %v439, 96
        %v450 = vpop.permute.xlu0 %449
        %451 = vrot.lane.b32.xlu0 %v440, 96
        %v452 = vpop.permute.xlu0 %451
        %vm457 = vcmask 1048320
        %458 = vst.msk [vmem:[#allocation3] sm:$0xff] %vm457, %v446
        %459 = vst.msk [vmem:[#allocation3 + $0x10] sm:$0xff] %vm457, %v448
        %460 = vst.msk [vmem:[#allocation3 + $0x80] sm:$0xff] %vm457, %v450
        %461 = vst.msk [vmem:[#allocation3 + $0x90] sm:$0xff] %vm457, %v452
        %v462 = vld [vmem:[#allocation2 + $0x4] sm:$0xff]
        %v463 = vld [vmem:[#allocation2 + $0xc] sm:$0xff]
        %v464 = vld [vmem:[#allocation2 + $0x1c] sm:$0xff]
        %v465 = vld [vmem:[#allocation2 + $0x24] sm:$0xff]
        %466 = vst.msk [vmem:[#allocation3 + $0x8] sm:$0xff] %vm382, %v462
        %467 = vst.msk [vmem:[#allocation3 + $0x18] sm:$0xff] %vm382, %v463
        %468 = vst.msk [vmem:[#allocation3 + $0x88] sm:$0xff] %vm382, %v464
        %469 = vst.msk [vmem:[#allocation3 + $0x98] sm:$0xff] %vm382, %v465
        %v470 = vld [vmem:[#allocation2] sm:$0xff]
        %v471 = vld [vmem:[#allocation2 + $0x8] sm:$0xff]
        %v472 = vld [vmem:[#allocation2 + $0x18] sm:$0xff]
        %v473 = vld [vmem:[#allocation2 + $0x20] sm:$0xff]
        %478 = vrot.lane.b32.xlu0 %v470, 112
        %v479 = vpop.permute.xlu0 %478
        %480 = vrot.lane.b32.xlu0 %v471, 112
        %v481 = vpop.permute.xlu0 %480
        %482 = vrot.lane.b32.xlu0 %v472, 112
        %v483 = vpop.permute.xlu0 %482
        %484 = vrot.lane.b32.xlu0 %v473, 112
        %v485 = vpop.permute.xlu0 %484
        %s490 = scalar_lea.vmem [#allocation3], 32
        %491 = vst.msk [vmem:[%s490] sm:$0xff] %vm382, %v479
        %492 = vst.msk [vmem:[%s490 + $0x10] sm:$0xff] %vm382, %v481
        %493 = vst.msk [vmem:[%s490 + $0x80] sm:$0xff] %vm382, %v483
        %494 = vst.msk [vmem:[%s490 + $0x90] sm:$0xff] %vm382, %v485
        %v495 = vld [vmem:[#allocation2 + $0x1] sm:$0xff]
        %v496 = vld [vmem:[#allocation2 + $0x9] sm:$0xff]
        %v497 = vld [vmem:[#allocation2 + $0x19] sm:$0xff]
        %v498 = vld [vmem:[#allocation2 + $0x21] sm:$0xff]
        %503 = vrot.lane.b32.xlu0 %v495, 16
        %v504 = vpop.permute.xlu0 %503
        %505 = vrot.lane.b32.xlu0 %v496, 16
        %v506 = vpop.permute.xlu0 %505
        %507 = vrot.lane.b32.xlu0 %v497, 16
        %v508 = vpop.permute.xlu0 %507
        %509 = vrot.lane.b32.xlu0 %v498, 16
        %v510 = vpop.permute.xlu0 %509
        %515 = vst.msk [vmem:[%s490] sm:$0xff] %vm407, %v504
        %516 = vst.msk [vmem:[%s490 + $0x10] sm:$0xff] %vm407, %v506
        %517 = vst.msk [vmem:[%s490 + $0x80] sm:$0xff] %vm407, %v508
        %518 = vst.msk [vmem:[%s490 + $0x90] sm:$0xff] %vm407, %v510
        %v519 = vld [vmem:[#allocation2 + $0x2] sm:$0xff]
        %v520 = vld [vmem:[#allocation2 + $0xa] sm:$0xff]
        %v521 = vld [vmem:[#allocation2 + $0x1a] sm:$0xff]
        %v522 = vld [vmem:[#allocation2 + $0x22] sm:$0xff]
        %527 = vrot.lane.b32.xlu0 %v519, 48
        %v528 = vpop.permute.xlu0 %527
        %529 = vrot.lane.b32.xlu0 %v520, 48
        %v530 = vpop.permute.xlu0 %529
        %531 = vrot.lane.b32.xlu0 %v521, 48
        %v532 = vpop.permute.xlu0 %531
        %533 = vrot.lane.b32.xlu0 %v522, 48
        %v534 = vpop.permute.xlu0 %533
        %539 = vst.msk [vmem:[%s490] sm:$0xff] %vm432, %v528
        %540 = vst.msk [vmem:[%s490 + $0x10] sm:$0xff] %vm432, %v530
        %541 = vst.msk [vmem:[%s490 + $0x80] sm:$0xff] %vm432, %v532
        %542 = vst.msk [vmem:[%s490 + $0x90] sm:$0xff] %vm432, %v534
        %v543 = vld [vmem:[#allocation2 + $0x3] sm:$0xff]
        %v544 = vld [vmem:[#allocation2 + $0xb] sm:$0xff]
        %v545 = vld [vmem:[#allocation2 + $0x1b] sm:$0xff]
        %v546 = vld [vmem:[#allocation2 + $0x23] sm:$0xff]
        %551 = vrot.lane.b32.xlu0 %v543, 80
        %v552 = vpop.permute.xlu0 %551
        %553 = vrot.lane.b32.xlu0 %v544, 80
        %v554 = vpop.permute.xlu0 %553
        %555 = vrot.lane.b32.xlu0 %v545, 80
        %v556 = vpop.permute.xlu0 %555
        %557 = vrot.lane.b32.xlu0 %v546, 80
        %v558 = vpop.permute.xlu0 %557
        %563 = vst.msk [vmem:[%s490] sm:$0xff] %vm457, %v552
        %564 = vst.msk [vmem:[%s490 + $0x10] sm:$0xff] %vm457, %v554
        %565 = vst.msk [vmem:[%s490 + $0x80] sm:$0xff] %vm457, %v556
        %566 = vst.msk [vmem:[%s490 + $0x90] sm:$0xff] %vm457, %v558
        %v567 = vld [vmem:[#allocation2 + $0x4] sm:$0xff]
        %v568 = vld [vmem:[#allocation2 + $0xc] sm:$0xff]
        %v569 = vld [vmem:[#allocation2 + $0x1c] sm:$0xff]
        %v570 = vld [vmem:[#allocation2 + $0x24] sm:$0xff]
        %575 = vrot.lane.b32.xlu0 %v567, 112
        %v576 = vpop.permute.xlu0 %575
        %577 = vrot.lane.b32.xlu0 %v568, 112
        %v578 = vpop.permute.xlu0 %577
        %579 = vrot.lane.b32.xlu0 %v569, 112
        %v580 = vpop.permute.xlu0 %579
        %581 = vrot.lane.b32.xlu0 %v570, 112
        %v582 = vpop.permute.xlu0 %581
        %587 = vst.msk [vmem:[%s490 + $0x8] sm:$0xff] %vm382, %v576
        %588 = vst.msk [vmem:[%s490 + $0x18] sm:$0xff] %vm382, %v578
        %589 = vst.msk [vmem:[%s490 + $0x88] sm:$0xff] %vm382, %v580
        %590 = vst.msk [vmem:[%s490 + $0x98] sm:$0xff] %vm382, %v582
        %v591 = vld [vmem:[#allocation2] sm:$0xff]
        %v592 = vld [vmem:[#allocation2 + $0x8] sm:$0xff]
        %v593 = vld [vmem:[#allocation2 + $0x18] sm:$0xff]
        %v594 = vld [vmem:[#allocation2 + $0x20] sm:$0xff]
        %599 = vrot.lane.b32.xlu0 %v591, 96
        %v600 = vpop.permute.xlu0 %599
        %601 = vrot.lane.b32.xlu0 %v592, 96
        %v602 = vpop.permute.xlu0 %601
        %603 = vrot.lane.b32.xlu0 %v593, 96
        %v604 = vpop.permute.xlu0 %603
        %605 = vrot.lane.b32.xlu0 %v594, 96
        %v606 = vpop.permute.xlu0 %605
        %s611 = scalar_lea.vmem [#allocation3], 64
        %612 = vst.msk [vmem:[%s611] sm:$0xff] %vm382, %v600
        %613 = vst.msk [vmem:[%s611 + $0x10] sm:$0xff] %vm382, %v602
        %614 = vst.msk [vmem:[%s611 + $0x80] sm:$0xff] %vm382, %v604
        %615 = vst.msk [vmem:[%s611 + $0x90] sm:$0xff] %vm382, %v606
        %v616 = vld [vmem:[#allocation2 + $0x1] sm:$0xff]
        %v617 = vld [vmem:[#allocation2 + $0x9] sm:$0xff]
        %v618 = vld [vmem:[#allocation2 + $0x19] sm:$0xff]
        %v619 = vld [vmem:[#allocation2 + $0x21] sm:$0xff]
        %620 = vst.msk [vmem:[%s611] sm:$0xff] %vm407, %v616
        %621 = vst.msk [vmem:[%s611 + $0x10] sm:$0xff] %vm407, %v617
        %622 = vst.msk [vmem:[%s611 + $0x80] sm:$0xff] %vm407, %v618
        %623 = vst.msk [vmem:[%s611 + $0x90] sm:$0xff] %vm407, %v619
        %v624 = vld [vmem:[#allocation2 + $0x2] sm:$0xff]
        %v625 = vld [vmem:[#allocation2 + $0xa] sm:$0xff]
        %v626 = vld [vmem:[#allocation2 + $0x1a] sm:$0xff]
        %v627 = vld [vmem:[#allocation2 + $0x22] sm:$0xff]
        %632 = vrot.lane.b32.xlu0 %v624, 32
        %v633 = vpop.permute.xlu0 %632
        %634 = vrot.lane.b32.xlu0 %v625, 32
        %v635 = vpop.permute.xlu0 %634
        %636 = vrot.lane.b32.xlu0 %v626, 32
        %v637 = vpop.permute.xlu0 %636
        %638 = vrot.lane.b32.xlu0 %v627, 32
        %v639 = vpop.permute.xlu0 %638
        %644 = vst.msk [vmem:[%s611] sm:$0xff] %vm432, %v633
        %645 = vst.msk [vmem:[%s611 + $0x10] sm:$0xff] %vm432, %v635
        %646 = vst.msk [vmem:[%s611 + $0x80] sm:$0xff] %vm432, %v637
        %647 = vst.msk [vmem:[%s611 + $0x90] sm:$0xff] %vm432, %v639
        %v648 = vld [vmem:[#allocation2 + $0x3] sm:$0xff]
        %v649 = vld [vmem:[#allocation2 + $0xb] sm:$0xff]
        %v650 = vld [vmem:[#allocation2 + $0x1b] sm:$0xff]
        %v651 = vld [vmem:[#allocation2 + $0x23] sm:$0xff]
        %656 = vrot.lane.b32.xlu0 %v648, 64
        %v657 = vpop.permute.xlu0 %656
        %658 = vrot.lane.b32.xlu0 %v649, 64
        %v659 = vpop.permute.xlu0 %658
        %660 = vrot.lane.b32.xlu0 %v650, 64
        %v661 = vpop.permute.xlu0 %660
        %662 = vrot.lane.b32.xlu0 %v651, 64
        %v663 = vpop.permute.xlu0 %662
        %668 = vst.msk [vmem:[%s611] sm:$0xff] %vm457, %v657
        %669 = vst.msk [vmem:[%s611 + $0x10] sm:$0xff] %vm457, %v659
        %670 = vst.msk [vmem:[%s611 + $0x80] sm:$0xff] %vm457, %v661
        %671 = vst.msk [vmem:[%s611 + $0x90] sm:$0xff] %vm457, %v663
        %v672 = vld [vmem:[#allocation2 + $0x4] sm:$0xff]
        %v673 = vld [vmem:[#allocation2 + $0xc] sm:$0xff]
        %v674 = vld [vmem:[#allocation2 + $0x1c] sm:$0xff]
        %v675 = vld [vmem:[#allocation2 + $0x24] sm:$0xff]
        %680 = vrot.lane.b32.xlu0 %v672, 96
        %v681 = vpop.permute.xlu0 %680
        %682 = vrot.lane.b32.xlu0 %v673, 96
        %v683 = vpop.permute.xlu0 %682
        %684 = vrot.lane.b32.xlu0 %v674, 96
        %v685 = vpop.permute.xlu0 %684
        %686 = vrot.lane.b32.xlu0 %v675, 96
        %v687 = vpop.permute.xlu0 %686
        %692 = vst.msk [vmem:[%s611 + $0x8] sm:$0xff] %vm382, %v681
        %693 = vst.msk [vmem:[%s611 + $0x18] sm:$0xff] %vm382, %v683
        %694 = vst.msk [vmem:[%s611 + $0x88] sm:$0xff] %vm382, %v685
        %695 = vst.msk [vmem:[%s611 + $0x98] sm:$0xff] %vm382, %v687
        %v696 = vld [vmem:[#allocation2] sm:$0xff]
        %v697 = vld [vmem:[#allocation2 + $0x8] sm:$0xff]
        %v698 = vld [vmem:[#allocation2 + $0x18] sm:$0xff]
        %v699 = vld [vmem:[#allocation2 + $0x20] sm:$0xff]
        %704 = vrot.lane.b32.xlu0 %v696, 80
        %v705 = vpop.permute.xlu0 %704
        %706 = vrot.lane.b32.xlu0 %v697, 80
        %v707 = vpop.permute.xlu0 %706
        %708 = vrot.lane.b32.xlu0 %v698, 80
        %v709 = vpop.permute.xlu0 %708
        %710 = vrot.lane.b32.xlu0 %v699, 80
        %v711 = vpop.permute.xlu0 %710
        %s716 = scalar_lea.vmem [#allocation3], 96
        %717 = vst.msk [vmem:[%s716] sm:$0xff] %vm382, %v705
        %718 = vst.msk [vmem:[%s716 + $0x10] sm:$0xff] %vm382, %v707
        %719 = vst.msk [vmem:[%s716 + $0x80] sm:$0xff] %vm382, %v709
        %720 = vst.msk [vmem:[%s716 + $0x90] sm:$0xff] %vm382, %v711
        %v721 = vld [vmem:[#allocation2 + $0x1] sm:$0xff]
        %v722 = vld [vmem:[#allocation2 + $0x9] sm:$0xff]
        %v723 = vld [vmem:[#allocation2 + $0x19] sm:$0xff]
        %v724 = vld [vmem:[#allocation2 + $0x21] sm:$0xff]
        %729 = vrot.lane.b32.xlu0 %v721, 112
        %v730 = vpop.permute.xlu0 %729
        %731 = vrot.lane.b32.xlu0 %v722, 112
        %v732 = vpop.permute.xlu0 %731
        %733 = vrot.lane.b32.xlu0 %v723, 112
        %v734 = vpop.permute.xlu0 %733
        %735 = vrot.lane.b32.xlu0 %v724, 112
        %v736 = vpop.permute.xlu0 %735
        %741 = vst.msk [vmem:[%s716] sm:$0xff] %vm407, %v730
        %742 = vst.msk [vmem:[%s716 + $0x10] sm:$0xff] %vm407, %v732
        %743 = vst.msk [vmem:[%s716 + $0x80] sm:$0xff] %vm407, %v734
        %744 = vst.msk [vmem:[%s716 + $0x90] sm:$0xff] %vm407, %v736
        %v745 = vld [vmem:[#allocation2 + $0x2] sm:$0xff]
        %v746 = vld [vmem:[#allocation2 + $0xa] sm:$0xff]
        %v747 = vld [vmem:[#allocation2 + $0x1a] sm:$0xff]
        %v748 = vld [vmem:[#allocation2 + $0x22] sm:$0xff]
        %753 = vrot.lane.b32.xlu0 %v745, 16
        %v754 = vpop.permute.xlu0 %753
        %755 = vrot.lane.b32.xlu0 %v746, 16
        %v756 = vpop.permute.xlu0 %755
        %757 = vrot.lane.b32.xlu0 %v747, 16
        %v758 = vpop.permute.xlu0 %757
        %759 = vrot.lane.b32.xlu0 %v748, 16
        %v760 = vpop.permute.xlu0 %759
        %765 = vst.msk [vmem:[%s716] sm:$0xff] %vm432, %v754
        %766 = vst.msk [vmem:[%s716 + $0x10] sm:$0xff] %vm432, %v756
        %767 = vst.msk [vmem:[%s716 + $0x80] sm:$0xff] %vm432, %v758
        %768 = vst.msk [vmem:[%s716 + $0x90] sm:$0xff] %vm432, %v760
        %v769 = vld [vmem:[#allocation2 + $0x3] sm:$0xff]
        %v770 = vld [vmem:[#allocation2 + $0xb] sm:$0xff]
        %v771 = vld [vmem:[#allocation2 + $0x1b] sm:$0xff]
        %v772 = vld [vmem:[#allocation2 + $0x23] sm:$0xff]
        %777 = vrot.lane.b32.xlu0 %v769, 48
        %v778 = vpop.permute.xlu0 %777
        %779 = vrot.lane.b32.xlu0 %v770, 48
        %v780 = vpop.permute.xlu0 %779
        %781 = vrot.lane.b32.xlu0 %v771, 48
        %v782 = vpop.permute.xlu0 %781
        %783 = vrot.lane.b32.xlu0 %v772, 48
        %v784 = vpop.permute.xlu0 %783
        %789 = vst.msk [vmem:[%s716] sm:$0xff] %vm457, %v778
        %790 = vst.msk [vmem:[%s716 + $0x10] sm:$0xff] %vm457, %v780
        %791 = vst.msk [vmem:[%s716 + $0x80] sm:$0xff] %vm457, %v782
        %792 = vst.msk [vmem:[%s716 + $0x90] sm:$0xff] %vm457, %v784
        %v793 = vld [vmem:[#allocation2 + $0x4] sm:$0xff]
        %v794 = vld [vmem:[#allocation2 + $0xc] sm:$0xff]
        %v795 = vld [vmem:[#allocation2 + $0x1c] sm:$0xff]
        %v796 = vld [vmem:[#allocation2 + $0x24] sm:$0xff]
        %801 = vrot.lane.b32.xlu0 %v793, 80
        %v802 = vpop.permute.xlu0 %801
        %803 = vrot.lane.b32.xlu0 %v794, 80
        %v804 = vpop.permute.xlu0 %803
        %805 = vrot.lane.b32.xlu0 %v795, 80
        %v806 = vpop.permute.xlu0 %805
        %807 = vrot.lane.b32.xlu0 %v796, 80
        %v808 = vpop.permute.xlu0 %807
        %813 = vst.msk [vmem:[%s716 + $0x8] sm:$0xff] %vm382, %v802
        %814 = vst.msk [vmem:[%s716 + $0x18] sm:$0xff] %vm382, %v804
        %815 = vst.msk [vmem:[%s716 + $0x88] sm:$0xff] %vm382, %v806
        %816 = vst.msk [vmem:[%s716 + $0x98] sm:$0xff] %vm382, %v808
        %v817 = vld [vmem:[#allocation3] sm:$0xff]
        %v818 = vld [vmem:[#allocation3 + $0x8] sm:$0xff]
        %v819 = vld [vmem:[#allocation3 + $0x10] sm:$0xff]
        %v820 = vld [vmem:[#allocation3 + $0x18] sm:$0xff]
        %v821 = vld [vmem:[#allocation3 + $0x20] sm:$0xff]
        %v822 = vld [vmem:[#allocation3 + $0x28] sm:$0xff]
        %v823 = vld [vmem:[#allocation3 + $0x30] sm:$0xff]
        %v824 = vld [vmem:[#allocation3 + $0x38] sm:$0xff]
        %v825 = vld [vmem:[#allocation3 + $0x40] sm:$0xff]
        %v826 = vld [vmem:[#allocation3 + $0x48] sm:$0xff]
        %v827 = vld [vmem:[#allocation3 + $0x50] sm:$0xff]
        %v828 = vld [vmem:[#allocation3 + $0x58] sm:$0xff]
        %v829 = vld [vmem:[#allocation3 + $0x60] sm:$0xff]
        %v830 = vld [vmem:[#allocation3 + $0x68] sm:$0xff]
        %v831 = vld [vmem:[#allocation3 + $0x70] sm:$0xff]
        %v832 = vld [vmem:[#allocation3 + $0x78] sm:$0xff]
        %v833 = vld [vmem:[#allocation3 + $0x80] sm:$0xff]
        %v834 = vld [vmem:[#allocation3 + $0x88] sm:$0xff]
        %v835 = vld [vmem:[#allocation3 + $0x90] sm:$0xff]
        %v836 = vld [vmem:[#allocation3 + $0x98] sm:$0xff]
        %v837 = vld [vmem:[#allocation3 + $0xa0] sm:$0xff]
        %v838 = vld [vmem:[#allocation3 + $0xa8] sm:$0xff]
        %v839 = vld [vmem:[#allocation3 + $0xb0] sm:$0xff]
        %v840 = vld [vmem:[#allocation3 + $0xb8] sm:$0xff]
        %v841 = vld [vmem:[#allocation3 + $0xc0] sm:$0xff]
        %v842 = vld [vmem:[#allocation3 + $0xc8] sm:$0xff]
        %v843 = vld [vmem:[#allocation3 + $0xd0] sm:$0xff]
        %v844 = vld [vmem:[#allocation3 + $0xd8] sm:$0xff]
        %v845 = vld [vmem:[#allocation3 + $0xe0] sm:$0xff]
        %v846 = vld [vmem:[#allocation3 + $0xe8] sm:$0xff]
        %v847 = vld [vmem:[#allocation3 + $0xf0] sm:$0xff]
        %v848 = vld [vmem:[#allocation3 + $0xf8] sm:$0xff]
        %v849 = vld [vmem:[#allocation9] sm:$0xff]
        %v850 = vld [vmem:[#allocation9 + $0x8] sm:$0xff]
        %v851 = vld [vmem:[#allocation9 + $0x10] sm:$0xff]
        %v852 = vld [vmem:[#allocation9 + $0x18] sm:$0xff]
        %v853 = vld [vmem:[#allocation9 + $0x20] sm:$0xff]
        %v854 = vld [vmem:[#allocation9 + $0x28] sm:$0xff]
        %v855 = vld [vmem:[#allocation9 + $0x30] sm:$0xff]
        %v856 = vld [vmem:[#allocation9 + $0x38] sm:$0xff]
        %v857 = vld [vmem:[#allocation9 + $0x40] sm:$0xff]
        %v858 = vld [vmem:[#allocation9 + $0x48] sm:$0xff]
        %v859 = vld [vmem:[#allocation9 + $0x50] sm:$0xff]
        %v860 = vld [vmem:[#allocation9 + $0x58] sm:$0xff]
        %v861 = vld [vmem:[#allocation9 + $0x60] sm:$0xff]
        %v862 = vld [vmem:[#allocation9 + $0x68] sm:$0xff]
        %v863 = vld [vmem:[#allocation9 + $0x70] sm:$0xff]
        %v864 = vld [vmem:[#allocation9 + $0x78] sm:$0xff]
        %v865 = vld [vmem:[#allocation9 + $0x80] sm:$0xff]
        %v866 = vld [vmem:[#allocation9 + $0x88] sm:$0xff]
        %v867 = vld [vmem:[#allocation9 + $0x90] sm:$0xff]
        %v868 = vld [vmem:[#allocation9 + $0x98] sm:$0xff]
        %v869 = vld [vmem:[#allocation10] sm:$0x1]
        %v871 = vperm.slane %v869, 0
        %v874 = vsel %vm382, %v818, 0
        %v877 = vsel %vm382, %v820, 0
        %v880 = vsel %vm382, %v822, 0
        %v883 = vsel %vm382, %v824, 0
        %v886 = vsel %vm382, %v826, 0
        %v889 = vsel %vm382, %v828, 0
        %v892 = vsel %vm382, %v830, 0
        %v895 = vsel %vm382, %v832, 0
        %v898 = vsel %vm382, %v834, 0
        %v901 = vsel %vm382, %v836, 0
        %v904 = vsel %vm382, %v838, 0
        %v907 = vsel %vm382, %v840, 0
        %v910 = vsel %vm382, %v842, 0
        %v913 = vsel %vm382, %v844, 0
        %v916 = vsel %vm382, %v846, 0
        %v919 = vsel %vm382, %v848, 0
        %921 = vmatpush.msra.mxu0 %v864
        %922 = vmatpush.msra.mxu0 %v863
        %923 = vmatpush.msra.mxu0 %v862
        %924 = vmatpush.msra.mxu0 %v861
        %925 = vmatpush.msra.mxu0 %v860
        %926 = vmatpush.msra.mxu0 %v859
        %927 = vmatpush.msra.mxu0 %v858
        %928 = vmatpush.msra.mxu0 %v857
        %929 = vmatpush.msra.mxu0 %v856
        %930 = vmatpush.msra.mxu0 %v855
        %931 = vmatpush.msra.mxu0 %v854
        %932 = vmatpush.msra.mxu0 %v853
        %933 = vmatpush.msra.mxu0 %v852
        %934 = vmatpush.msra.mxu0 %v851
        %935 = vmatpush.msra.mxu0 %v850
        %936 = vmatpush.msra.mxu0 %v849
        %937 = vmatmul.f32.gmra.mxu0 %v817
        %v938 = vpop.f32.mrf.mxu0
        %v939 = vadd.f32 %v871, %v938
        %940 = vmatmul.f32.gmra.mxu0 %v819
        %v941 = vpop.f32.mrf.mxu0
        %v942 = vadd.f32 %v871, %v941
        %943 = vmatmul.f32.gmra.mxu0 %v821
        %v944 = vpop.f32.mrf.mxu0
        %v945 = vadd.f32 %v871, %v944
        %946 = vmatmul.f32.gmra.mxu0 %v823
        %v947 = vpop.f32.mrf.mxu0
        %v948 = vadd.f32 %v871, %v947
        %949 = vmatmul.f32.gmra.mxu0 %v825
        %v950 = vpop.f32.mrf.mxu0
        %v951 = vadd.f32 %v871, %v950
        %952 = vmatmul.f32.gmra.mxu0 %v827
        %v953 = vpop.f32.mrf.mxu0
        %v954 = vadd.f32 %v871, %v953
        %955 = vmatmul.f32.gmra.mxu0 %v829
        %v956 = vpop.f32.mrf.mxu0
        %v957 = vadd.f32 %v871, %v956
        %958 = vmatmul.f32.gmra.mxu0 %v831
        %v959 = vpop.f32.mrf.mxu0
        %v960 = vadd.f32 %v871, %v959
        %961 = vmatmul.f32.gmra.mxu0 %v833
        %v962 = vpop.f32.mrf.mxu0
        %v963 = vadd.f32 %v871, %v962
        %964 = vmatmul.f32.gmra.mxu0 %v835
        %v965 = vpop.f32.mrf.mxu0
        %v966 = vadd.f32 %v871, %v965
        %967 = vmatmul.f32.gmra.mxu0 %v837
        %v968 = vpop.f32.mrf.mxu0
        %v969 = vadd.f32 %v871, %v968
        %970 = vmatmul.f32.gmra.mxu0 %v839
        %v971 = vpop.f32.mrf.mxu0
        %v972 = vadd.f32 %v871, %v971
        %973 = vmatmul.f32.gmra.mxu0 %v841
        %v974 = vpop.f32.mrf.mxu0
        %v975 = vadd.f32 %v871, %v974
        %976 = vmatmul.f32.gmra.mxu0 %v843
        %v977 = vpop.f32.mrf.mxu0
        %v978 = vadd.f32 %v871, %v977
        %979 = vmatmul.f32.gmra.mxu0 %v845
        %v980 = vpop.f32.mrf.mxu0
        %v981 = vadd.f32 %v871, %v980
        %982 = vmatmul.f32.gmra.mxu0 %v847
        %v983 = vpop.f32.mrf.mxu0
        %v984 = vadd.f32 %v871, %v983
        %985 = vdwg.mxu0
        %986 = vmatpush.msra.mxu0 0.0
        %987 = vmatpush.msra.mxu0 0.0
        %988 = vmatpush.msra.mxu0 0.0
        %989 = vmatpush.msra.mxu0 0.0
        %990 = vmatpush.msra.mxu0 0.0
        %991 = vmatpush.msra.mxu0 0.0
        %992 = vmatpush.msra.mxu0 0.0
        %993 = vmatpush.msra.mxu0 0.0
        %994 = vmatpush.msra.mxu0 0.0
        %995 = vmatpush.msra.mxu0 0.0
        %996 = vmatpush.msra.mxu0 0.0
        %997 = vmatpush.msra.mxu0 0.0
        %998 = vmatpush.msra.mxu0 %v868
        %999 = vmatpush.msra.mxu0 %v867
        %1000 = vmatpush.msra.mxu0 %v866
        %1001 = vmatpush.msra.mxu0 %v865
        %1002 = vmatmul.f32.gmra.mxu0 %v874
        %v1003 = vpop.f32.mrf.mxu0
        %v1004 = vadd.f32 %v939, %v1003
        %1005 = vmatmul.f32.gmra.mxu0 %v877
        %v1006 = vpop.f32.mrf.mxu0
        %v1007 = vadd.f32 %v942, %v1006
        %1008 = vmatmul.f32.gmra.mxu0 %v880
        %v1009 = vpop.f32.mrf.mxu0
        %v1010 = vadd.f32 %v945, %v1009
        %1011 = vmatmul.f32.gmra.mxu0 %v883
        %v1012 = vpop.f32.mrf.mxu0
        %v1013 = vadd.f32 %v948, %v1012
        %1014 = vmatmul.f32.gmra.mxu0 %v886
        %v1015 = vpop.f32.mrf.mxu0
        %v1016 = vadd.f32 %v951, %v1015
        %1017 = vmatmul.f32.gmra.mxu0 %v889
        %v1018 = vpop.f32.mrf.mxu0
        %v1019 = vadd.f32 %v954, %v1018
        %1020 = vmatmul.f32.gmra.mxu0 %v892
        %v1021 = vpop.f32.mrf.mxu0
        %v1022 = vadd.f32 %v957, %v1021
        %1023 = vmatmul.f32.gmra.mxu0 %v895
        %v1024 = vpop.f32.mrf.mxu0
        %v1025 = vadd.f32 %v960, %v1024
        %1026 = vmatmul.f32.gmra.mxu0 %v898
        %v1027 = vpop.f32.mrf.mxu0
        %v1028 = vadd.f32 %v963, %v1027
        %1029 = vmatmul.f32.gmra.mxu0 %v901
        %v1030 = vpop.f32.mrf.mxu0
        %v1031 = vadd.f32 %v966, %v1030
        %1032 = vmatmul.f32.gmra.mxu0 %v904
        %v1033 = vpop.f32.mrf.mxu0
        %v1034 = vadd.f32 %v969, %v1033
        %1035 = vmatmul.f32.gmra.mxu0 %v907
        %v1036 = vpop.f32.mrf.mxu0
        %v1037 = vadd.f32 %v972, %v1036
        %1038 = vmatmul.f32.gmra.mxu0 %v910
        %v1039 = vpop.f32.mrf.mxu0
        %v1040 = vadd.f32 %v975, %v1039
        %1041 = vmatmul.f32.gmra.mxu0 %v913
        %v1042 = vpop.f32.mrf.mxu0
        %v1043 = vadd.f32 %v978, %v1042
        %1044 = vmatmul.f32.gmra.mxu0 %v916
        %v1045 = vpop.f32.mrf.mxu0
        %v1046 = vadd.f32 %v981, %v1045
        %1047 = vmatmul.f32.gmra.mxu0 %v919
        %v1048 = vpop.f32.mrf.mxu0
        %v1049 = vadd.f32 %v984, %v1048
        %1050 = vdwg.mxu0
        %s1051 = sld [smem:[#allocation4]]
        %vm1052 = vcmp.gt.f32.partialorder %v1004, 0.0
        %vm1053 = vcmp.gt.f32.partialorder %v1007, 0.0
        %vm1054 = vcmp.gt.f32.partialorder %v1010, 0.0
        %vm1055 = vcmp.gt.f32.partialorder %v1013, 0.0
        %vm1056 = vcmp.gt.f32.partialorder %v1016, 0.0
        %vm1057 = vcmp.gt.f32.partialorder %v1019, 0.0
        %vm1058 = vcmp.gt.f32.partialorder %v1022, 0.0
        %vm1059 = vcmp.gt.f32.partialorder %v1025, 0.0
        %vm1060 = vcmp.gt.f32.partialorder %v1028, 0.0
        %vm1061 = vcmp.gt.f32.partialorder %v1031, 0.0
        %vm1062 = vcmp.gt.f32.partialorder %v1034, 0.0
        %vm1063 = vcmp.gt.f32.partialorder %v1037, 0.0
        %vm1064 = vcmp.gt.f32.partialorder %v1040, 0.0
        %vm1065 = vcmp.gt.f32.partialorder %v1043, 0.0
        %vm1066 = vcmp.gt.f32.partialorder %v1046, 0.0
        %vm1067 = vcmp.gt.f32.partialorder %v1049, 0.0
        %v1068 = vstv %s1051
        %v1069 = vmul.f32 %v1068, %v1004
        %v1070 = vmul.f32 %v1068, %v1007
        %v1071 = vmul.f32 %v1068, %v1010
        %v1072 = vmul.f32 %v1068, %v1013
        %v1073 = vmul.f32 %v1068, %v1016
        %v1074 = vmul.f32 %v1068, %v1019
        %v1075 = vmul.f32 %v1068, %v1022
        %v1076 = vmul.f32 %v1068, %v1025
        %v1077 = vmul.f32 %v1068, %v1028
        %v1078 = vmul.f32 %v1068, %v1031
        %v1079 = vmul.f32 %v1068, %v1034
        %v1080 = vmul.f32 %v1068, %v1037
        %v1081 = vmul.f32 %v1068, %v1040
        %v1082 = vmul.f32 %v1068, %v1043
        %v1083 = vmul.f32 %v1068, %v1046
        %v1084 = vmul.f32 %v1068, %v1049
        %v1085 = vsel %vm1052, %v1004, %v1069
        %v1086 = vsel %vm1053, %v1007, %v1070
        %v1087 = vsel %vm1054, %v1010, %v1071
        %v1088 = vsel %vm1055, %v1013, %v1072
        %v1089 = vsel %vm1056, %v1016, %v1073
        %v1090 = vsel %vm1057, %v1019, %v1074
        %v1091 = vsel %vm1058, %v1022, %v1075
        %v1092 = vsel %vm1059, %v1025, %v1076
        %v1093 = vsel %vm1060, %v1028, %v1077
        %v1094 = vsel %vm1061, %v1031, %v1078
        %v1095 = vsel %vm1062, %v1034, %v1079
        %v1096 = vsel %vm1063, %v1037, %v1080
        %v1097 = vsel %vm1064, %v1040, %v1081
        %v1098 = vsel %vm1065, %v1043, %v1082
        %v1099 = vsel %vm1066, %v1046, %v1083
        %v1100 = vsel %vm1067, %v1049, %v1084
        %1101 = vst [vmem:[%s320] sm:$0xff] %v1085
        %1102 = vst [vmem:[%s320 + $0x8] sm:$0xff] %v1086
        %1103 = vst [vmem:[%s320 + $0x10] sm:$0xff] %v1087
        %1104 = vst [vmem:[%s320 + $0x18] sm:$0xff] %v1088
        %1105 = vst [vmem:[%s320 + $0x20] sm:$0xff] %v1089
        %1106 = vst [vmem:[%s320 + $0x28] sm:$0xff] %v1090
        %1107 = vst [vmem:[%s320 + $0x30] sm:$0xff] %v1091
        %1108 = vst [vmem:[%s320 + $0x38] sm:$0xff] %v1092
        %1109 = vst [vmem:[%s320 + $0x40] sm:$0xff] %v1093
        %1110 = vst [vmem:[%s320 + $0x48] sm:$0xff] %v1094
        %1111 = vst [vmem:[%s320 + $0x50] sm:$0xff] %v1095
        %1112 = vst [vmem:[%s320 + $0x58] sm:$0xff] %v1096
        %1113 = vst [vmem:[%s320 + $0x60] sm:$0xff] %v1097
        %1114 = vst [vmem:[%s320 + $0x68] sm:$0xff] %v1098
        %1115 = vst [vmem:[%s320 + $0x70] sm:$0xff] %v1099
        %1116 = vst [vmem:[%s320 + $0x78] sm:$0xff] %v1100
        %s1117 = smul.u32 2, %s21
        %p1118 = scmp.lt.s32.totalorder %s1117, 3
        %s1119 = scalar_select %p1118, %s1117, 3
        %s1120 = smul.addr %s1119, 8
        %s1121 = smul.addr %s1120, 8
        %s1122 = scalar_lea.vmem %s6, %s1121
        // Predicated region
        $region61: #{rgbd_in_forward.2} parent=43 // pred_check
          %p1123 = pneg %p170
        $region62: #{rgbd_in_forward.2} parent=43 // pred_check_branch
          %1125 = sbr.rel (%p1123) target = $region64
        $region63: #{rgbd_in_forward.2} parent=43 // pred_region
          %s1126 = smul.u32 2, %s21
        $region64: #{rgbd_in_forward.2} parent=43 // pred_fallthru
          _
      $region44: #{rgbd_in_forward.2} parent=5 // pred_fallthru
        _
      %p1127 = scmp.le.s32.totalorder 2, %s16
      // Predicated region
      $region65: #{rgbd_in_forward.2} parent=5 // pred_check
        %p1128 = pneg %p1127
      $region66: #{rgbd_in_forward.2} parent=5 // pred_check_branch
        %1130 = sbr.rel (%p1128) target = $region68
      $region67: #{rgbd_in_forward.2} parent=5 // pred_region
        %s1131 = ssub.s32 %s16, 2
        // Predicated region
        $region69: #{rgbd_in_forward.2} parent=67 // pred_check
          %p1132 = pneg %p176
        $region70: #{rgbd_in_forward.2} parent=67 // pred_check_branch
          %1134 = sbr.rel (%p1132) target = $region72
        $region71: #{rgbd_in_forward.2} parent=67 // pred_region
          %s1135 = smul.u32 2, %s22
          %p1136 = scmp.lt.s32.totalorder %s1135, 3
          %s1137 = scalar_select %p1136, %s1135, 3
          %s1138 = smul.addr %s1137, 8
          %s1139 = smul.addr %s1138, 8
          %s1140 = scalar_lea.vmem %s6, %s1139
        $region72: #{rgbd_in_forward.2} parent=67 // pred_fallthru
          _
      $region68: #{rgbd_in_forward.2} parent=5 // pred_fallthru
        _
    $region6: #{rgbd_in_forward.2} parent=1 // loop_footer
      %s20 = sadd.s32 1, %s16
    $region7: #{rgbd_in_forward.2} parent=1 // loop_footer_branch
      %15 = sbr.rel target = $region3
    $region8: #{rgbd_in_forward.2} parent=1 // loop_exit
      _
    %1141 = vsyncpa [#allocation6], 1
    %s1142 = scalar_lea.sflag [#allocation6], 1
    %1143 = vsyncpa %s1142, 1
    %1144 = vsyncpa [#allocation8], 1
    %1145 = vsyncpa [#allocation11], 1

// kernel: rgbd_in_forward.3
$region0: #{rgbd_in_forward.3}
  #allocation0 [shape = 'u32[]', space=smem, size = 0x4, offset = 0x4, fixed_abs, tag = 'smem constant byte address 0x4 - core index']
  #allocation1 [shape = 'u32[72,128]{1,0:T(1,128)}', space=vmem, size = 0x9000, scoped, tag = 'internal scratch']
  #allocation2 [shape = 'f32[1]{0:T(128)S(6)}', space=smem, size = 0x200, scoped, tag = 'scoped memory for rgbd_in_forward.3']
  %s0 = inlined_call_operand.vmem [shape: f32[4,8192], index: 0, kind: input, shape index: {}]
  %s1 = inlined_call_operand.vmem [shape: f32[8192,16], index: 1, kind: input, shape index: {}]
  %s2 = inlined_call_operand.vmem [shape: f32[1,16], index: 2, kind: input, shape index: {}]
  %s3 = inlined_call_operand.<no memory space> [shape: f32[1], index: 3, kind: input, shape index: {}]
  %s4 = inlined_call_operand.hbm [shape: f32[4,16], index: 4, kind: output, shape index: {}]
  %s5 = sld [smem:[#allocation0]]
  $region26: #{rgbd_in_forward.3} parent=0
    _
  %s7 = ssub.s32 1, %s5
  %s8 = scalar_select 0, %s7, %s5
  %9 = sst [smem:[#allocation2]] %s3
  $region1: #{rgbd_in_forward.3} parent=0
    #allocation3 [shape = 'u8[2048]{0}', space=vmem, size = 0x800, scoped, tag = 'output window, operand 0, single buffered']
    #allocation4 [shape = 's32[1]{0}', space=sflag, size = 0x4, scoped, tag = 'scoped memory for rgbd_in_forward.3']
    %10 = vsyncpa [#allocation4], 0
    // Predicated region
    $region2: #{rgbd_in_forward.3} parent=1 // pred_check
      _
    $region3: #{rgbd_in_forward.3} parent=1 // pred_check_branch
      %12 = sbr.rel (0) target = $region5
    $region4: #{rgbd_in_forward.3} parent=1 // pred_region
      _
    $region5: #{rgbd_in_forward.3} parent=1 // pred_fallthru
      _
    // Predicated region
    $region6: #{rgbd_in_forward.3} parent=1 // pred_check
      _
    $region7: #{rgbd_in_forward.3} parent=1 // pred_check_branch
      %14 = sbr.rel (0) target = $region9
    $region8: #{rgbd_in_forward.3} parent=1 // pred_region
      _
    $region9: #{rgbd_in_forward.3} parent=1 // pred_fallthru
      _
    // Predicated region
    $region10: #{rgbd_in_forward.3} parent=1 // pred_check
      _
    $region11: #{rgbd_in_forward.3} parent=1 // pred_check_branch
      %16 = sbr.rel (0) target = $region13
    $region12: #{rgbd_in_forward.3} parent=1 // pred_region
      _
    $region13: #{rgbd_in_forward.3} parent=1 // pred_fallthru
      _
    // Predicated region
    $region14: #{rgbd_in_forward.3} parent=1 // pred_check
      _
    $region15: #{rgbd_in_forward.3} parent=1 // pred_check_branch
      %18 = sbr.rel (0) target = $region17
    $region16: #{rgbd_in_forward.3} parent=1 // pred_region
      _
    $region17: #{rgbd_in_forward.3} parent=1 // pred_fallthru
      _
    %v19 = vld [vmem:[%s0] sm:$0xff]
    %v20 = vld [vmem:[%s0 + $0x8] sm:$0xff]
    %v21 = vld [vmem:[%s0 + $0x10] sm:$0xff]
    %v22 = vld [vmem:[%s0 + $0x18] sm:$0xff]
    %v23 = vld [vmem:[%s0 + $0x20] sm:$0xff]
    %v24 = vld [vmem:[%s0 + $0x28] sm:$0xff]
    %v25 = vld [vmem:[%s0 + $0x30] sm:$0xff]
    %v26 = vld [vmem:[%s0 + $0x38] sm:$0xff]
    %v27 = vld [vmem:[%s0 + $0x40] sm:$0xff]
    %v28 = vld [vmem:[%s0 + $0x48] sm:$0xff]
    %v29 = vld [vmem:[%s0 + $0x50] sm:$0xff]
    %v30 = vld [vmem:[%s0 + $0x58] sm:$0xff]
    %v31 = vld [vmem:[%s0 + $0x60] sm:$0xff]
    %v32 = vld [vmem:[%s0 + $0x68] sm:$0xff]
    %v33 = vld [vmem:[%s0 + $0x70] sm:$0xff]
    %v34 = vld [vmem:[%s0 + $0x78] sm:$0xff]
    %v35 = vld [vmem:[%s0 + $0x80] sm:$0xff]
    %v36 = vld [vmem:[%s0 + $0x88] sm:$0xff]
    %v37 = vld [vmem:[%s0 + $0x90] sm:$0xff]
    %v38 = vld [vmem:[%s0 + $0x98] sm:$0xff]
    %v39 = vld [vmem:[%s0 + $0xa0] sm:$0xff]
    %v40 = vld [vmem:[%s0 + $0xa8] sm:$0xff]
    %v41 = vld [vmem:[%s0 + $0xb0] sm:$0xff]
    %v42 = vld [vmem:[%s0 + $0xb8] sm:$0xff]
    %v43 = vld [vmem:[%s0 + $0xc0] sm:$0xff]
    %v44 = vld [vmem:[%s0 + $0xc8] sm:$0xff]
    %v45 = vld [vmem:[%s0 + $0xd0] sm:$0xff]
    %v46 = vld [vmem:[%s0 + $0xd8] sm:$0xff]
    %v47 = vld [vmem:[%s0 + $0xe0] sm:$0xff]
    %v48 = vld [vmem:[%s0 + $0xe8] sm:$0xff]
    %v49 = vld [vmem:[%s0 + $0xf0] sm:$0xff]
    %v50 = vld [vmem:[%s0 + $0xf8] sm:$0xff]
    %v51 = vld [vmem:[%s1] sm:$0xff]
    %v52 = vld [vmem:[%s1 + $0x8] sm:$0xff]
    %v53 = vld [vmem:[%s1 + $0x10] sm:$0xff]
    %v54 = vld [vmem:[%s1 + $0x18] sm:$0xff]
    %v55 = vld [vmem:[%s1 + $0x20] sm:$0xff]
    %v56 = vld [vmem:[%s1 + $0x28] sm:$0xff]
    %v57 = vld [vmem:[%s1 + $0x30] sm:$0xff]
    %v58 = vld [vmem:[%s1 + $0x38] sm:$0xff]
    %v59 = vld [vmem:[%s1 + $0x40] sm:$0xff]
    %v60 = vld [vmem:[%s1 + $0x48] sm:$0xff]
    %v61 = vld [vmem:[%s1 + $0x50] sm:$0xff]
    %v62 = vld [vmem:[%s1 + $0x58] sm:$0xff]
    %v63 = vld [vmem:[%s1 + $0x60] sm:$0xff]
    %v64 = vld [vmem:[%s1 + $0x68] sm:$0xff]
    %v65 = vld [vmem:[%s1 + $0x70] sm:$0xff]
    %v66 = vld [vmem:[%s1 + $0x78] sm:$0xff]
    %v67 = vld [vmem:[%s1 + $0x80] sm:$0xff]
    %v68 = vld [vmem:[%s1 + $0x88] sm:$0xff]
    %v69 = vld [vmem:[%s1 + $0x90] sm:$0xff]
    %v70 = vld [vmem:[%s1 + $0x98] sm:$0xff]
    %v71 = vld [vmem:[%s1 + $0xa0] sm:$0xff]
    %v72 = vld [vmem:[%s1 + $0xa8] sm:$0xff]
    %v73 = vld [vmem:[%s1 + $0xb0] sm:$0xff]
    %v74 = vld [vmem:[%s1 + $0xb8] sm:$0xff]
    %v75 = vld [vmem:[%s1 + $0xc0] sm:$0xff]
    %v76 = vld [vmem:[%s1 + $0xc8] sm:$0xff]
    %v77 = vld [vmem:[%s1 + $0xd0] sm:$0xff]
    %v78 = vld [vmem:[%s1 + $0xd8] sm:$0xff]
    %v79 = vld [vmem:[%s1 + $0xe0] sm:$0xff]
    %v80 = vld [vmem:[%s1 + $0xe8] sm:$0xff]
    %v81 = vld [vmem:[%s1 + $0xf0] sm:$0xff]
    %v82 = vld [vmem:[%s1 + $0xf8] sm:$0xff]
    %v83 = vld [vmem:[%s1 + $0x100] sm:$0xff]
    %v84 = vld [vmem:[%s1 + $0x108] sm:$0xff]
    %v85 = vld [vmem:[%s1 + $0x110] sm:$0xff]
    %v86 = vld [vmem:[%s1 + $0x118] sm:$0xff]
    %v87 = vld [vmem:[%s1 + $0x120] sm:$0xff]
    %v88 = vld [vmem:[%s1 + $0x128] sm:$0xff]
    %v89 = vld [vmem:[%s1 + $0x130] sm:$0xff]
    %v90 = vld [vmem:[%s1 + $0x138] sm:$0xff]
    %v91 = vld [vmem:[%s1 + $0x140] sm:$0xff]
    %v92 = vld [vmem:[%s1 + $0x148] sm:$0xff]
    %v93 = vld [vmem:[%s1 + $0x150] sm:$0xff]
    %v94 = vld [vmem:[%s1 + $0x158] sm:$0xff]
    %v95 = vld [vmem:[%s1 + $0x160] sm:$0xff]
    %v96 = vld [vmem:[%s1 + $0x168] sm:$0xff]
    %v97 = vld [vmem:[%s1 + $0x170] sm:$0xff]
    %v98 = vld [vmem:[%s1 + $0x178] sm:$0xff]
    %v99 = vld [vmem:[%s1 + $0x180] sm:$0xff]
    %v100 = vld [vmem:[%s1 + $0x188] sm:$0xff]
    %v101 = vld [vmem:[%s1 + $0x190] sm:$0xff]
    %v102 = vld [vmem:[%s1 + $0x198] sm:$0xff]
    %v103 = vld [vmem:[%s1 + $0x1a0] sm:$0xff]
    %v104 = vld [vmem:[%s1 + $0x1a8] sm:$0xff]
    %v105 = vld [vmem:[%s1 + $0x1b0] sm:$0xff]
    %v106 = vld [vmem:[%s1 + $0x1b8] sm:$0xff]
    %v107 = vld [vmem:[%s1 + $0x1c0] sm:$0xff]
    %v108 = vld [vmem:[%s1 + $0x1c8] sm:$0xff]
    %v109 = vld [vmem:[%s1 + $0x1d0] sm:$0xff]
    %v110 = vld [vmem:[%s1 + $0x1d8] sm:$0xff]
    %v111 = vld [vmem:[%s1 + $0x1e0] sm:$0xff]
    %v112 = vld [vmem:[%s1 + $0x1e8] sm:$0xff]
    %v113 = vld [vmem:[%s1 + $0x1f0] sm:$0xff]
    %v114 = vld [vmem:[%s1 + $0x1f8] sm:$0xff]
    %v115 = vld [vmem:[%s1 + $0x200] sm:$0xff]
    %v116 = vld [vmem:[%s1 + $0x208] sm:$0xff]
    %v117 = vld [vmem:[%s1 + $0x210] sm:$0xff]
    %v118 = vld [vmem:[%s1 + $0x218] sm:$0xff]
    %v119 = vld [vmem:[%s1 + $0x220] sm:$0xff]
    %v120 = vld [vmem:[%s1 + $0x228] sm:$0xff]
    %v121 = vld [vmem:[%s1 + $0x230] sm:$0xff]
    %v122 = vld [vmem:[%s1 + $0x238] sm:$0xff]
    %v123 = vld [vmem:[%s1 + $0x240] sm:$0xff]
    %v124 = vld [vmem:[%s1 + $0x248] sm:$0xff]
    %v125 = vld [vmem:[%s1 + $0x250] sm:$0xff]
    %v126 = vld [vmem:[%s1 + $0x258] sm:$0xff]
    %v127 = vld [vmem:[%s1 + $0x260] sm:$0xff]
    %v128 = vld [vmem:[%s1 + $0x268] sm:$0xff]
    %v129 = vld [vmem:[%s1 + $0x270] sm:$0xff]
    %v130 = vld [vmem:[%s1 + $0x278] sm:$0xff]
    %v131 = vld [vmem:[%s1 + $0x280] sm:$0xff]
    %v132 = vld [vmem:[%s1 + $0x288] sm:$0xff]
    %v133 = vld [vmem:[%s1 + $0x290] sm:$0xff]
    %v134 = vld [vmem:[%s1 + $0x298] sm:$0xff]
    %v135 = vld [vmem:[%s1 + $0x2a0] sm:$0xff]
    %v136 = vld [vmem:[%s1 + $0x2a8] sm:$0xff]
    %v137 = vld [vmem:[%s1 + $0x2b0] sm:$0xff]
    %v138 = vld [vmem:[%s1 + $0x2b8] sm:$0xff]
    %v139 = vld [vmem:[%s1 + $0x2c0] sm:$0xff]
    %v140 = vld [vmem:[%s1 + $0x2c8] sm:$0xff]
    %v141 = vld [vmem:[%s1 + $0x2d0] sm:$0xff]
    %v142 = vld [vmem:[%s1 + $0x2d8] sm:$0xff]
    %v143 = vld [vmem:[%s1 + $0x2e0] sm:$0xff]
    %v144 = vld [vmem:[%s1 + $0x2e8] sm:$0xff]
    %v145 = vld [vmem:[%s1 + $0x2f0] sm:$0xff]
    %v146 = vld [vmem:[%s1 + $0x2f8] sm:$0xff]
    %v147 = vld [vmem:[%s1 + $0x300] sm:$0xff]
    %v148 = vld [vmem:[%s1 + $0x308] sm:$0xff]
    %v149 = vld [vmem:[%s1 + $0x310] sm:$0xff]
    %v150 = vld [vmem:[%s1 + $0x318] sm:$0xff]
    %v151 = vld [vmem:[%s1 + $0x320] sm:$0xff]
    %v152 = vld [vmem:[%s1 + $0x328] sm:$0xff]
    %v153 = vld [vmem:[%s1 + $0x330] sm:$0xff]
    %v154 = vld [vmem:[%s1 + $0x338] sm:$0xff]
    %v155 = vld [vmem:[%s1 + $0x340] sm:$0xff]
    %v156 = vld [vmem:[%s1 + $0x348] sm:$0xff]
    %v157 = vld [vmem:[%s1 + $0x350] sm:$0xff]
    %v158 = vld [vmem:[%s1 + $0x358] sm:$0xff]
    %v159 = vld [vmem:[%s1 + $0x360] sm:$0xff]
    %v160 = vld [vmem:[%s1 + $0x368] sm:$0xff]
    %v161 = vld [vmem:[%s1 + $0x370] sm:$0xff]
    %v162 = vld [vmem:[%s1 + $0x378] sm:$0xff]
    %v163 = vld [vmem:[%s1 + $0x380] sm:$0xff]
    %v164 = vld [vmem:[%s1 + $0x388] sm:$0xff]
    %v165 = vld [vmem:[%s1 + $0x390] sm:$0xff]
    %v166 = vld [vmem:[%s1 + $0x398] sm:$0xff]
    %v167 = vld [vmem:[%s1 + $0x3a0] sm:$0xff]
    %v168 = vld [vmem:[%s1 + $0x3a8] sm:$0xff]
    %v169 = vld [vmem:[%s1 + $0x3b0] sm:$0xff]
    %v170 = vld [vmem:[%s1 + $0x3b8] sm:$0xff]
    %v171 = vld [vmem:[%s1 + $0x3c0] sm:$0xff]
    %v172 = vld [vmem:[%s1 + $0x3c8] sm:$0xff]
    %v173 = vld [vmem:[%s1 + $0x3d0] sm:$0xff]
    %v174 = vld [vmem:[%s1 + $0x3d8] sm:$0xff]
    %v175 = vld [vmem:[%s1 + $0x3e0] sm:$0xff]
    %v176 = vld [vmem:[%s1 + $0x3e8] sm:$0xff]
    %v177 = vld [vmem:[%s1 + $0x3f0] sm:$0xff]
    %v178 = vld [vmem:[%s1 + $0x3f8] sm:$0xff]
    %v179 = vld [vmem:[%s1 + $0x400] sm:$0xff]
    %v180 = vld [vmem:[%s1 + $0x408] sm:$0xff]
    %v181 = vld [vmem:[%s1 + $0x410] sm:$0xff]
    %v182 = vld [vmem:[%s1 + $0x418] sm:$0xff]
    %v183 = vld [vmem:[%s1 + $0x420] sm:$0xff]
    %v184 = vld [vmem:[%s1 + $0x428] sm:$0xff]
    %v185 = vld [vmem:[%s1 + $0x430] sm:$0xff]
    %v186 = vld [vmem:[%s1 + $0x438] sm:$0xff]
    %v187 = vld [vmem:[%s1 + $0x440] sm:$0xff]
    %v188 = vld [vmem:[%s1 + $0x448] sm:$0xff]
    %v189 = vld [vmem:[%s1 + $0x450] sm:$0xff]
    %v190 = vld [vmem:[%s1 + $0x458] sm:$0xff]
    %v191 = vld [vmem:[%s1 + $0x460] sm:$0xff]
    %v192 = vld [vmem:[%s1 + $0x468] sm:$0xff]
    %v193 = vld [vmem:[%s1 + $0x470] sm:$0xff]
    %v194 = vld [vmem:[%s1 + $0x478] sm:$0xff]
    %v195 = vld [vmem:[%s1 + $0x480] sm:$0xff]
    %v196 = vld [vmem:[%s1 + $0x488] sm:$0xff]
    %v197 = vld [vmem:[%s1 + $0x490] sm:$0xff]
    %v198 = vld [vmem:[%s1 + $0x498] sm:$0xff]
    %v199 = vld [vmem:[%s1 + $0x4a0] sm:$0xff]
    %v200 = vld [vmem:[%s1 + $0x4a8] sm:$0xff]
    %v201 = vld [vmem:[%s1 + $0x4b0] sm:$0xff]
    %v202 = vld [vmem:[%s1 + $0x4b8] sm:$0xff]
    %v203 = vld [vmem:[%s1 + $0x4c0] sm:$0xff]
    %v204 = vld [vmem:[%s1 + $0x4c8] sm:$0xff]
    %v205 = vld [vmem:[%s1 + $0x4d0] sm:$0xff]
    %v206 = vld [vmem:[%s1 + $0x4d8] sm:$0xff]
    %v207 = vld [vmem:[%s1 + $0x4e0] sm:$0xff]
    %v208 = vld [vmem:[%s1 + $0x4e8] sm:$0xff]
    %v209 = vld [vmem:[%s1 + $0x4f0] sm:$0xff]
    %v210 = vld [vmem:[%s1 + $0x4f8] sm:$0xff]
    %v211 = vld [vmem:[%s1 + $0x500] sm:$0xff]
    %v212 = vld [vmem:[%s1 + $0x508] sm:$0xff]
    %v213 = vld [vmem:[%s1 + $0x510] sm:$0xff]
    %v214 = vld [vmem:[%s1 + $0x518] sm:$0xff]
    %v215 = vld [vmem:[%s1 + $0x520] sm:$0xff]
    %v216 = vld [vmem:[%s1 + $0x528] sm:$0xff]
    %v217 = vld [vmem:[%s1 + $0x530] sm:$0xff]
    %v218 = vld [vmem:[%s1 + $0x538] sm:$0xff]
    %v219 = vld [vmem:[%s1 + $0x540] sm:$0xff]
    %v220 = vld [vmem:[%s1 + $0x548] sm:$0xff]
    %v221 = vld [vmem:[%s1 + $0x550] sm:$0xff]
    %v222 = vld [vmem:[%s1 + $0x558] sm:$0xff]
    %v223 = vld [vmem:[%s1 + $0x560] sm:$0xff]
    %v224 = vld [vmem:[%s1 + $0x568] sm:$0xff]
    %v225 = vld [vmem:[%s1 + $0x570] sm:$0xff]
    %v226 = vld [vmem:[%s1 + $0x578] sm:$0xff]
    %v227 = vld [vmem:[%s1 + $0x580] sm:$0xff]
    %v228 = vld [vmem:[%s1 + $0x588] sm:$0xff]
    %v229 = vld [vmem:[%s1 + $0x590] sm:$0xff]
    %v230 = vld [vmem:[%s1 + $0x598] sm:$0xff]
    %v231 = vld [vmem:[%s1 + $0x5a0] sm:$0xff]
    %v232 = vld [vmem:[%s1 + $0x5a8] sm:$0xff]
    %v233 = vld [vmem:[%s1 + $0x5b0] sm:$0xff]
    %v234 = vld [vmem:[%s1 + $0x5b8] sm:$0xff]
    %v235 = vld [vmem:[%s1 + $0x5c0] sm:$0xff]
    %v236 = vld [vmem:[%s1 + $0x5c8] sm:$0xff]
    %v237 = vld [vmem:[%s1 + $0x5d0] sm:$0xff]
    %v238 = vld [vmem:[%s1 + $0x5d8] sm:$0xff]
    %v239 = vld [vmem:[%s1 + $0x5e0] sm:$0xff]
    %v240 = vld [vmem:[%s1 + $0x5e8] sm:$0xff]
    %v241 = vld [vmem:[%s1 + $0x5f0] sm:$0xff]
    %v242 = vld [vmem:[%s1 + $0x5f8] sm:$0xff]
    %v243 = vld [vmem:[%s1 + $0x600] sm:$0xff]
    %v244 = vld [vmem:[%s1 + $0x608] sm:$0xff]
    %v245 = vld [vmem:[%s1 + $0x610] sm:$0xff]
    %v246 = vld [vmem:[%s1 + $0x618] sm:$0xff]
    %v247 = vld [vmem:[%s1 + $0x620] sm:$0xff]
    %v248 = vld [vmem:[%s1 + $0x628] sm:$0xff]
    %v249 = vld [vmem:[%s1 + $0x630] sm:$0xff]
    %v250 = vld [vmem:[%s1 + $0x638] sm:$0xff]
    %v251 = vld [vmem:[%s1 + $0x640] sm:$0xff]
    %v252 = vld [vmem:[%s1 + $0x648] sm:$0xff]
    %v253 = vld [vmem:[%s1 + $0x650] sm:$0xff]
    %v254 = vld [vmem:[%s1 + $0x658] sm:$0xff]
    %v255 = vld [vmem:[%s1 + $0x660] sm:$0xff]
    %v256 = vld [vmem:[%s1 + $0x668] sm:$0xff]
    %v257 = vld [vmem:[%s1 + $0x670] sm:$0xff]
    %v258 = vld [vmem:[%s1 + $0x678] sm:$0xff]
    %v259 = vld [vmem:[%s1 + $0x680] sm:$0xff]
    %v260 = vld [vmem:[%s1 + $0x688] sm:$0xff]
    %v261 = vld [vmem:[%s1 + $0x690] sm:$0xff]
    %v262 = vld [vmem:[%s1 + $0x698] sm:$0xff]
    %v263 = vld [vmem:[%s1 + $0x6a0] sm:$0xff]
    %v264 = vld [vmem:[%s1 + $0x6a8] sm:$0xff]
    %v265 = vld [vmem:[%s1 + $0x6b0] sm:$0xff]
    %v266 = vld [vmem:[%s1 + $0x6b8] sm:$0xff]
    %v267 = vld [vmem:[%s1 + $0x6c0] sm:$0xff]
    %v268 = vld [vmem:[%s1 + $0x6c8] sm:$0xff]
    %v269 = vld [vmem:[%s1 + $0x6d0] sm:$0xff]
    %v270 = vld [vmem:[%s1 + $0x6d8] sm:$0xff]
    %v271 = vld [vmem:[%s1 + $0x6e0] sm:$0xff]
    %v272 = vld [vmem:[%s1 + $0x6e8] sm:$0xff]
    %v273 = vld [vmem:[%s1 + $0x6f0] sm:$0xff]
    %v274 = vld [vmem:[%s1 + $0x6f8] sm:$0xff]
    %v275 = vld [vmem:[%s1 + $0x700] sm:$0xff]
    %v276 = vld [vmem:[%s1 + $0x708] sm:$0xff]
    %v277 = vld [vmem:[%s1 + $0x710] sm:$0xff]
    %v278 = vld [vmem:[%s1 + $0x718] sm:$0xff]
    %v279 = vld [vmem:[%s1 + $0x720] sm:$0xff]
    %v280 = vld [vmem:[%s1 + $0x728] sm:$0xff]
    %v281 = vld [vmem:[%s1 + $0x730] sm:$0xff]
    %v282 = vld [vmem:[%s1 + $0x738] sm:$0xff]
    %v283 = vld [vmem:[%s1 + $0x740] sm:$0xff]
    %v284 = vld [vmem:[%s1 + $0x748] sm:$0xff]
    %v285 = vld [vmem:[%s1 + $0x750] sm:$0xff]
    %v286 = vld [vmem:[%s1 + $0x758] sm:$0xff]
    %v287 = vld [vmem:[%s1 + $0x760] sm:$0xff]
    %v288 = vld [vmem:[%s1 + $0x768] sm:$0xff]
    %v289 = vld [vmem:[%s1 + $0x770] sm:$0xff]
    %v290 = vld [vmem:[%s1 + $0x778] sm:$0xff]
    %v291 = vld [vmem:[%s1 + $0x780] sm:$0xff]
    %v292 = vld [vmem:[%s1 + $0x788] sm:$0xff]
    %v293 = vld [vmem:[%s1 + $0x790] sm:$0xff]
    %v294 = vld [vmem:[%s1 + $0x798] sm:$0xff]
    %v295 = vld [vmem:[%s1 + $0x7a0] sm:$0xff]
    %v296 = vld [vmem:[%s1 + $0x7a8] sm:$0xff]
    %v297 = vld [vmem:[%s1 + $0x7b0] sm:$0xff]
    %v298 = vld [vmem:[%s1 + $0x7b8] sm:$0xff]
    %v299 = vld [vmem:[%s1 + $0x7c0] sm:$0xff]
    %v300 = vld [vmem:[%s1 + $0x7c8] sm:$0xff]
    %v301 = vld [vmem:[%s1 + $0x7d0] sm:$0xff]
    %v302 = vld [vmem:[%s1 + $0x7d8] sm:$0xff]
    %v303 = vld [vmem:[%s1 + $0x7e0] sm:$0xff]
    %v304 = vld [vmem:[%s1 + $0x7e8] sm:$0xff]
    %v305 = vld [vmem:[%s1 + $0x7f0] sm:$0xff]
    %v306 = vld [vmem:[%s1 + $0x7f8] sm:$0xff]
    %v307 = vld [vmem:[%s1 + $0x800] sm:$0xff]
    %v308 = vld [vmem:[%s1 + $0x808] sm:$0xff]
    %v309 = vld [vmem:[%s1 + $0x810] sm:$0xff]
    %v310 = vld [vmem:[%s1 + $0x818] sm:$0xff]
    %v311 = vld [vmem:[%s1 + $0x820] sm:$0xff]
    %v312 = vld [vmem:[%s1 + $0x828] sm:$0xff]
    %v313 = vld [vmem:[%s1 + $0x830] sm:$0xff]
    %v314 = vld [vmem:[%s1 + $0x838] sm:$0xff]
    %v315 = vld [vmem:[%s1 + $0x840] sm:$0xff]
    %v316 = vld [vmem:[%s1 + $0x848] sm:$0xff]
    %v317 = vld [vmem:[%s1 + $0x850] sm:$0xff]
    %v318 = vld [vmem:[%s1 + $0x858] sm:$0xff]
    %v319 = vld [vmem:[%s1 + $0x860] sm:$0xff]
    %v320 = vld [vmem:[%s1 + $0x868] sm:$0xff]
    %v321 = vld [vmem:[%s1 + $0x870] sm:$0xff]
    %v322 = vld [vmem:[%s1 + $0x878] sm:$0xff]
    %v323 = vld [vmem:[%s1 + $0x880] sm:$0xff]
    %v324 = vld [vmem:[%s1 + $0x888] sm:$0xff]
    %v325 = vld [vmem:[%s1 + $0x890] sm:$0xff]
    %v326 = vld [vmem:[%s1 + $0x898] sm:$0xff]
    %v327 = vld [vmem:[%s1 + $0x8a0] sm:$0xff]
    %v328 = vld [vmem:[%s1 + $0x8a8] sm:$0xff]
    %v329 = vld [vmem:[%s1 + $0x8b0] sm:$0xff]
    %v330 = vld [vmem:[%s1 + $0x8b8] sm:$0xff]
    %v331 = vld [vmem:[%s1 + $0x8c0] sm:$0xff]
    %v332 = vld [vmem:[%s1 + $0x8c8] sm:$0xff]
    %v333 = vld [vmem:[%s1 + $0x8d0] sm:$0xff]
    %v334 = vld [vmem:[%s1 + $0x8d8] sm:$0xff]
    %v335 = vld [vmem:[%s1 + $0x8e0] sm:$0xff]
    %v336 = vld [vmem:[%s1 + $0x8e8] sm:$0xff]
    %v337 = vld [vmem:[%s1 + $0x8f0] sm:$0xff]
    %v338 = vld [vmem:[%s1 + $0x8f8] sm:$0xff]
    %v339 = vld [vmem:[%s1 + $0x900] sm:$0xff]
    %v340 = vld [vmem:[%s1 + $0x908] sm:$0xff]
    %v341 = vld [vmem:[%s1 + $0x910] sm:$0xff]
    %v342 = vld [vmem:[%s1 + $0x918] sm:$0xff]
    %v343 = vld [vmem:[%s1 + $0x920] sm:$0xff]
    %v344 = vld [vmem:[%s1 + $0x928] sm:$0xff]
    %v345 = vld [vmem:[%s1 + $0x930] sm:$0xff]
    %v346 = vld [vmem:[%s1 + $0x938] sm:$0xff]
    %v347 = vld [vmem:[%s1 + $0x940] sm:$0xff]
    %v348 = vld [vmem:[%s1 + $0x948] sm:$0xff]
    %v349 = vld [vmem:[%s1 + $0x950] sm:$0xff]
    %v350 = vld [vmem:[%s1 + $0x958] sm:$0xff]
    %v351 = vld [vmem:[%s1 + $0x960] sm:$0xff]
    %v352 = vld [vmem:[%s1 + $0x968] sm:$0xff]
    %v353 = vld [vmem:[%s1 + $0x970] sm:$0xff]
    %v354 = vld [vmem:[%s1 + $0x978] sm:$0xff]
    %v355 = vld [vmem:[%s1 + $0x980] sm:$0xff]
    %v356 = vld [vmem:[%s1 + $0x988] sm:$0xff]
    %v357 = vld [vmem:[%s1 + $0x990] sm:$0xff]
    %v358 = vld [vmem:[%s1 + $0x998] sm:$0xff]
    %v359 = vld [vmem:[%s1 + $0x9a0] sm:$0xff]
    %v360 = vld [vmem:[%s1 + $0x9a8] sm:$0xff]
    %v361 = vld [vmem:[%s1 + $0x9b0] sm:$0xff]
    %v362 = vld [vmem:[%s1 + $0x9b8] sm:$0xff]
    %v363 = vld [vmem:[%s1 + $0x9c0] sm:$0xff]
    %v364 = vld [vmem:[%s1 + $0x9c8] sm:$0xff]
    %v365 = vld [vmem:[%s1 + $0x9d0] sm:$0xff]
    %v366 = vld [vmem:[%s1 + $0x9d8] sm:$0xff]
    %v367 = vld [vmem:[%s1 + $0x9e0] sm:$0xff]
    %v368 = vld [vmem:[%s1 + $0x9e8] sm:$0xff]
    %v369 = vld [vmem:[%s1 + $0x9f0] sm:$0xff]
    %v370 = vld [vmem:[%s1 + $0x9f8] sm:$0xff]
    %v371 = vld [vmem:[%s1 + $0xa00] sm:$0xff]
    %v372 = vld [vmem:[%s1 + $0xa08] sm:$0xff]
    %v373 = vld [vmem:[%s1 + $0xa10] sm:$0xff]
    %v374 = vld [vmem:[%s1 + $0xa18] sm:$0xff]
    %v375 = vld [vmem:[%s1 + $0xa20] sm:$0xff]
    %v376 = vld [vmem:[%s1 + $0xa28] sm:$0xff]
    %v377 = vld [vmem:[%s1 + $0xa30] sm:$0xff]
    %v378 = vld [vmem:[%s1 + $0xa38] sm:$0xff]
    %v379 = vld [vmem:[%s1 + $0xa40] sm:$0xff]
    %v380 = vld [vmem:[%s1 + $0xa48] sm:$0xff]
    %v381 = vld [vmem:[%s1 + $0xa50] sm:$0xff]
    %v382 = vld [vmem:[%s1 + $0xa58] sm:$0xff]
    %v383 = vld [vmem:[%s1 + $0xa60] sm:$0xff]
    %v384 = vld [vmem:[%s1 + $0xa68] sm:$0xff]
    %v385 = vld [vmem:[%s1 + $0xa70] sm:$0xff]
    %v386 = vld [vmem:[%s1 + $0xa78] sm:$0xff]
    %v387 = vld [vmem:[%s1 + $0xa80] sm:$0xff]
    %v388 = vld [vmem:[%s1 + $0xa88] sm:$0xff]
    %v389 = vld [vmem:[%s1 + $0xa90] sm:$0xff]
    %v390 = vld [vmem:[%s1 + $0xa98] sm:$0xff]
    %v391 = vld [vmem:[%s1 + $0xaa0] sm:$0xff]
    %v392 = vld [vmem:[%s1 + $0xaa8] sm:$0xff]
    %v393 = vld [vmem:[%s1 + $0xab0] sm:$0xff]
    %v394 = vld [vmem:[%s1 + $0xab8] sm:$0xff]
    %v395 = vld [vmem:[%s1 + $0xac0] sm:$0xff]
    %v396 = vld [vmem:[%s1 + $0xac8] sm:$0xff]
    %v397 = vld [vmem:[%s1 + $0xad0] sm:$0xff]
    %v398 = vld [vmem:[%s1 + $0xad8] sm:$0xff]
    %v399 = vld [vmem:[%s1 + $0xae0] sm:$0xff]
    %v400 = vld [vmem:[%s1 + $0xae8] sm:$0xff]
    %v401 = vld [vmem:[%s1 + $0xaf0] sm:$0xff]
    %v402 = vld [vmem:[%s1 + $0xaf8] sm:$0xff]
    %v403 = vld [vmem:[%s1 + $0xb00] sm:$0xff]
    %v404 = vld [vmem:[%s1 + $0xb08] sm:$0xff]
    %v405 = vld [vmem:[%s1 + $0xb10] sm:$0xff]
    %v406 = vld [vmem:[%s1 + $0xb18] sm:$0xff]
    %v407 = vld [vmem:[%s1 + $0xb20] sm:$0xff]
    %v408 = vld [vmem:[%s1 + $0xb28] sm:$0xff]
    %v409 = vld [vmem:[%s1 + $0xb30] sm:$0xff]
    %v410 = vld [vmem:[%s1 + $0xb38] sm:$0xff]
    %v411 = vld [vmem:[%s1 + $0xb40] sm:$0xff]
    %v412 = vld [vmem:[%s1 + $0xb48] sm:$0xff]
    %v413 = vld [vmem:[%s1 + $0xb50] sm:$0xff]
    %v414 = vld [vmem:[%s1 + $0xb58] sm:$0xff]
    %v415 = vld [vmem:[%s1 + $0xb60] sm:$0xff]
    %v416 = vld [vmem:[%s1 + $0xb68] sm:$0xff]
    %v417 = vld [vmem:[%s1 + $0xb70] sm:$0xff]
    %v418 = vld [vmem:[%s1 + $0xb78] sm:$0xff]
    %v419 = vld [vmem:[%s1 + $0xb80] sm:$0xff]
    %v420 = vld [vmem:[%s1 + $0xb88] sm:$0xff]
    %v421 = vld [vmem:[%s1 + $0xb90] sm:$0xff]
    %v422 = vld [vmem:[%s1 + $0xb98] sm:$0xff]
    %v423 = vld [vmem:[%s1 + $0xba0] sm:$0xff]
    %v424 = vld [vmem:[%s1 + $0xba8] sm:$0xff]
    %v425 = vld [vmem:[%s1 + $0xbb0] sm:$0xff]
    %v426 = vld [vmem:[%s1 + $0xbb8] sm:$0xff]
    %v427 = vld [vmem:[%s1 + $0xbc0] sm:$0xff]
    %v428 = vld [vmem:[%s1 + $0xbc8] sm:$0xff]
    %v429 = vld [vmem:[%s1 + $0xbd0] sm:$0xff]
    %v430 = vld [vmem:[%s1 + $0xbd8] sm:$0xff]
    %v431 = vld [vmem:[%s1 + $0xbe0] sm:$0xff]
    %v432 = vld [vmem:[%s1 + $0xbe8] sm:$0xff]
    %v433 = vld [vmem:[%s1 + $0xbf0] sm:$0xff]
    %v434 = vld [vmem:[%s1 + $0xbf8] sm:$0xff]
    %v435 = vld [vmem:[%s1 + $0xc00] sm:$0xff]
    %v436 = vld [vmem:[%s1 + $0xc08] sm:$0xff]
    %v437 = vld [vmem:[%s1 + $0xc10] sm:$0xff]
    %v438 = vld [vmem:[%s1 + $0xc18] sm:$0xff]
    %v439 = vld [vmem:[%s1 + $0xc20] sm:$0xff]
    %v440 = vld [vmem:[%s1 + $0xc28] sm:$0xff]
    %v441 = vld [vmem:[%s1 + $0xc30] sm:$0xff]
    %v442 = vld [vmem:[%s1 + $0xc38] sm:$0xff]
    %v443 = vld [vmem:[%s1 + $0xc40] sm:$0xff]
    %v444 = vld [vmem:[%s1 + $0xc48] sm:$0xff]
    %v445 = vld [vmem:[%s1 + $0xc50] sm:$0xff]
    %v446 = vld [vmem:[%s1 + $0xc58] sm:$0xff]
    %v447 = vld [vmem:[%s1 + $0xc60] sm:$0xff]
    %v448 = vld [vmem:[%s1 + $0xc68] sm:$0xff]
    %v449 = vld [vmem:[%s1 + $0xc70] sm:$0xff]
    %v450 = vld [vmem:[%s1 + $0xc78] sm:$0xff]
    %v451 = vld [vmem:[%s1 + $0xc80] sm:$0xff]
    %v452 = vld [vmem:[%s1 + $0xc88] sm:$0xff]
    %v453 = vld [vmem:[%s1 + $0xc90] sm:$0xff]
    %v454 = vld [vmem:[%s1 + $0xc98] sm:$0xff]
    %v455 = vld [vmem:[%s1 + $0xca0] sm:$0xff]
    %v456 = vld [vmem:[%s1 + $0xca8] sm:$0xff]
    %v457 = vld [vmem:[%s1 + $0xcb0] sm:$0xff]
    %v458 = vld [vmem:[%s1 + $0xcb8] sm:$0xff]
    %v459 = vld [vmem:[%s1 + $0xcc0] sm:$0xff]
    %v460 = vld [vmem:[%s1 + $0xcc8] sm:$0xff]
    %v461 = vld [vmem:[%s1 + $0xcd0] sm:$0xff]
    %v462 = vld [vmem:[%s1 + $0xcd8] sm:$0xff]
    %v463 = vld [vmem:[%s1 + $0xce0] sm:$0xff]
    %v464 = vld [vmem:[%s1 + $0xce8] sm:$0xff]
    %v465 = vld [vmem:[%s1 + $0xcf0] sm:$0xff]
    %v466 = vld [vmem:[%s1 + $0xcf8] sm:$0xff]
    %v467 = vld [vmem:[%s1 + $0xd00] sm:$0xff]
    %v468 = vld [vmem:[%s1 + $0xd08] sm:$0xff]
    %v469 = vld [vmem:[%s1 + $0xd10] sm:$0xff]
    %v470 = vld [vmem:[%s1 + $0xd18] sm:$0xff]
    %v471 = vld [vmem:[%s1 + $0xd20] sm:$0xff]
    %v472 = vld [vmem:[%s1 + $0xd28] sm:$0xff]
    %v473 = vld [vmem:[%s1 + $0xd30] sm:$0xff]
    %v474 = vld [vmem:[%s1 + $0xd38] sm:$0xff]
    %v475 = vld [vmem:[%s1 + $0xd40] sm:$0xff]
    %v476 = vld [vmem:[%s1 + $0xd48] sm:$0xff]
    %v477 = vld [vmem:[%s1 + $0xd50] sm:$0xff]
    %v478 = vld [vmem:[%s1 + $0xd58] sm:$0xff]
    %v479 = vld [vmem:[%s1 + $0xd60] sm:$0xff]
    %v480 = vld [vmem:[%s1 + $0xd68] sm:$0xff]
    %v481 = vld [vmem:[%s1 + $0xd70] sm:$0xff]
    %v482 = vld [vmem:[%s1 + $0xd78] sm:$0xff]
    %v483 = vld [vmem:[%s1 + $0xd80] sm:$0xff]
    %v484 = vld [vmem:[%s1 + $0xd88] sm:$0xff]
    %v485 = vld [vmem:[%s1 + $0xd90] sm:$0xff]
    %v486 = vld [vmem:[%s1 + $0xd98] sm:$0xff]
    %v487 = vld [vmem:[%s1 + $0xda0] sm:$0xff]
    %v488 = vld [vmem:[%s1 + $0xda8] sm:$0xff]
    %v489 = vld [vmem:[%s1 + $0xdb0] sm:$0xff]
    %v490 = vld [vmem:[%s1 + $0xdb8] sm:$0xff]
    %v491 = vld [vmem:[%s1 + $0xdc0] sm:$0xff]
    %v492 = vld [vmem:[%s1 + $0xdc8] sm:$0xff]
    %v493 = vld [vmem:[%s1 + $0xdd0] sm:$0xff]
    %v494 = vld [vmem:[%s1 + $0xdd8] sm:$0xff]
    %v495 = vld [vmem:[%s1 + $0xde0] sm:$0xff]
    %v496 = vld [vmem:[%s1 + $0xde8] sm:$0xff]
    %v497 = vld [vmem:[%s1 + $0xdf0] sm:$0xff]
    %v498 = vld [vmem:[%s1 + $0xdf8] sm:$0xff]
    %v499 = vld [vmem:[%s1 + $0xe00] sm:$0xff]
    %v500 = vld [vmem:[%s1 + $0xe08] sm:$0xff]
    %v501 = vld [vmem:[%s1 + $0xe10] sm:$0xff]
    %v502 = vld [vmem:[%s1 + $0xe18] sm:$0xff]
    %v503 = vld [vmem:[%s1 + $0xe20] sm:$0xff]
    %v504 = vld [vmem:[%s1 + $0xe28] sm:$0xff]
    %v505 = vld [vmem:[%s1 + $0xe30] sm:$0xff]
    %v506 = vld [vmem:[%s1 + $0xe38] sm:$0xff]
    %v507 = vld [vmem:[%s1 + $0xe40] sm:$0xff]
    %v508 = vld [vmem:[%s1 + $0xe48] sm:$0xff]
    %v509 = vld [vmem:[%s1 + $0xe50] sm:$0xff]
    %v510 = vld [vmem:[%s1 + $0xe58] sm:$0xff]
    %v511 = vld [vmem:[%s1 + $0xe60] sm:$0xff]
    %v512 = vld [vmem:[%s1 + $0xe68] sm:$0xff]
    %v513 = vld [vmem:[%s1 + $0xe70] sm:$0xff]
    %v514 = vld [vmem:[%s1 + $0xe78] sm:$0xff]
    %v515 = vld [vmem:[%s1 + $0xe80] sm:$0xff]
    %v516 = vld [vmem:[%s1 + $0xe88] sm:$0xff]
    %v517 = vld [vmem:[%s1 + $0xe90] sm:$0xff]
    %v518 = vld [vmem:[%s1 + $0xe98] sm:$0xff]
    %v519 = vld [vmem:[%s1 + $0xea0] sm:$0xff]
    %v520 = vld [vmem:[%s1 + $0xea8] sm:$0xff]
    %v521 = vld [vmem:[%s1 + $0xeb0] sm:$0xff]
    %v522 = vld [vmem:[%s1 + $0xeb8] sm:$0xff]
    %v523 = vld [vmem:[%s1 + $0xec0] sm:$0xff]
    %v524 = vld [vmem:[%s1 + $0xec8] sm:$0xff]
    %v525 = vld [vmem:[%s1 + $0xed0] sm:$0xff]
    %v526 = vld [vmem:[%s1 + $0xed8] sm:$0xff]
    %v527 = vld [vmem:[%s1 + $0xee0] sm:$0xff]
    %v528 = vld [vmem:[%s1 + $0xee8] sm:$0xff]
    %v529 = vld [vmem:[%s1 + $0xef0] sm:$0xff]
    %v530 = vld [vmem:[%s1 + $0xef8] sm:$0xff]
    %v531 = vld [vmem:[%s1 + $0xf00] sm:$0xff]
    %v532 = vld [vmem:[%s1 + $0xf08] sm:$0xff]
    %v533 = vld [vmem:[%s1 + $0xf10] sm:$0xff]
    %v534 = vld [vmem:[%s1 + $0xf18] sm:$0xff]
    %v535 = vld [vmem:[%s1 + $0xf20] sm:$0xff]
    %v536 = vld [vmem:[%s1 + $0xf28] sm:$0xff]
    %v537 = vld [vmem:[%s1 + $0xf30] sm:$0xff]
    %v538 = vld [vmem:[%s1 + $0xf38] sm:$0xff]
    %v539 = vld [vmem:[%s1 + $0xf40] sm:$0xff]
    %v540 = vld [vmem:[%s1 + $0xf48] sm:$0xff]
    %v541 = vld [vmem:[%s1 + $0xf50] sm:$0xff]
    %v542 = vld [vmem:[%s1 + $0xf58] sm:$0xff]
    %v543 = vld [vmem:[%s1 + $0xf60] sm:$0xff]
    %v544 = vld [vmem:[%s1 + $0xf68] sm:$0xff]
    %v545 = vld [vmem:[%s1 + $0xf70] sm:$0xff]
    %v546 = vld [vmem:[%s1 + $0xf78] sm:$0xff]
    %v547 = vld [vmem:[%s1 + $0xf80] sm:$0xff]
    %v548 = vld [vmem:[%s1 + $0xf88] sm:$0xff]
    %v549 = vld [vmem:[%s1 + $0xf90] sm:$0xff]
    %v550 = vld [vmem:[%s1 + $0xf98] sm:$0xff]
    %v551 = vld [vmem:[%s1 + $0xfa0] sm:$0xff]
    %v552 = vld [vmem:[%s1 + $0xfa8] sm:$0xff]
    %v553 = vld [vmem:[%s1 + $0xfb0] sm:$0xff]
    %v554 = vld [vmem:[%s1 + $0xfb8] sm:$0xff]
    %v555 = vld [vmem:[%s1 + $0xfc0] sm:$0xff]
    %v556 = vld [vmem:[%s1 + $0xfc8] sm:$0xff]
    %v557 = vld [vmem:[%s1 + $0xfd0] sm:$0xff]
    %v558 = vld [vmem:[%s1 + $0xfd8] sm:$0xff]
    %v559 = vld [vmem:[%s1 + $0xfe0] sm:$0xff]
    %v560 = vld [vmem:[%s1 + $0xfe8] sm:$0xff]
    %v561 = vld [vmem:[%s1 + $0xff0] sm:$0xff]
    %v562 = vld [vmem:[%s1 + $0xff8] sm:$0xff]
    %v563 = vld [vmem:[%s1 + $0x1000] sm:$0xff]
    %v564 = vld [vmem:[%s1 + $0x1008] sm:$0xff]
    %v565 = vld [vmem:[%s1 + $0x1010] sm:$0xff]
    %v566 = vld [vmem:[%s1 + $0x1018] sm:$0xff]
    %v567 = vld [vmem:[%s1 + $0x1020] sm:$0xff]
    %v568 = vld [vmem:[%s1 + $0x1028] sm:$0xff]
    %v569 = vld [vmem:[%s1 + $0x1030] sm:$0xff]
    %v570 = vld [vmem:[%s1 + $0x1038] sm:$0xff]
    %v571 = vld [vmem:[%s1 + $0x1040] sm:$0xff]
    %v572 = vld [vmem:[%s1 + $0x1048] sm:$0xff]
    %v573 = vld [vmem:[%s1 + $0x1050] sm:$0xff]
    %v574 = vld [vmem:[%s1 + $0x1058] sm:$0xff]
    %v575 = vld [vmem:[%s1 + $0x1060] sm:$0xff]
    %v576 = vld [vmem:[%s1 + $0x1068] sm:$0xff]
    %v577 = vld [vmem:[%s1 + $0x1070] sm:$0xff]
    %v578 = vld [vmem:[%s1 + $0x1078] sm:$0xff]
    %v579 = vld [vmem:[%s1 + $0x1080] sm:$0xff]
    %v580 = vld [vmem:[%s1 + $0x1088] sm:$0xff]
    %v581 = vld [vmem:[%s1 + $0x1090] sm:$0xff]
    %v582 = vld [vmem:[%s1 + $0x1098] sm:$0xff]
    %v583 = vld [vmem:[%s1 + $0x10a0] sm:$0xff]
    %v584 = vld [vmem:[%s1 + $0x10a8] sm:$0xff]
    %v585 = vld [vmem:[%s1 + $0x10b0] sm:$0xff]
    %v586 = vld [vmem:[%s1 + $0x10b8] sm:$0xff]
    %v587 = vld [vmem:[%s1 + $0x10c0] sm:$0xff]
    %v588 = vld [vmem:[%s1 + $0x10c8] sm:$0xff]
    %v589 = vld [vmem:[%s1 + $0x10d0] sm:$0xff]
    %v590 = vld [vmem:[%s1 + $0x10d8] sm:$0xff]
    %v591 = vld [vmem:[%s1 + $0x10e0] sm:$0xff]
    %v592 = vld [vmem:[%s1 + $0x10e8] sm:$0xff]
    %v593 = vld [vmem:[%s1 + $0x10f0] sm:$0xff]
    %v594 = vld [vmem:[%s1 + $0x10f8] sm:$0xff]
    %v595 = vld [vmem:[%s1 + $0x1100] sm:$0xff]
    %v596 = vld [vmem:[%s1 + $0x1108] sm:$0xff]
    %v597 = vld [vmem:[%s1 + $0x1110] sm:$0xff]
    %v598 = vld [vmem:[%s1 + $0x1118] sm:$0xff]
    %v599 = vld [vmem:[%s1 + $0x1120] sm:$0xff]
    %v600 = vld [vmem:[%s1 + $0x1128] sm:$0xff]
    %v601 = vld [vmem:[%s1 + $0x1130] sm:$0xff]
    %v602 = vld [vmem:[%s1 + $0x1138] sm:$0xff]
    %v603 = vld [vmem:[%s1 + $0x1140] sm:$0xff]
    %v604 = vld [vmem:[%s1 + $0x1148] sm:$0xff]
    %v605 = vld [vmem:[%s1 + $0x1150] sm:$0xff]
    %v606 = vld [vmem:[%s1 + $0x1158] sm:$0xff]
    %v607 = vld [vmem:[%s1 + $0x1160] sm:$0xff]
    %v608 = vld [vmem:[%s1 + $0x1168] sm:$0xff]
    %v609 = vld [vmem:[%s1 + $0x1170] sm:$0xff]
    %v610 = vld [vmem:[%s1 + $0x1178] sm:$0xff]
    %v611 = vld [vmem:[%s1 + $0x1180] sm:$0xff]
    %v612 = vld [vmem:[%s1 + $0x1188] sm:$0xff]
    %v613 = vld [vmem:[%s1 + $0x1190] sm:$0xff]
    %v614 = vld [vmem:[%s1 + $0x1198] sm:$0xff]
    %v615 = vld [vmem:[%s1 + $0x11a0] sm:$0xff]
    %v616 = vld [vmem:[%s1 + $0x11a8] sm:$0xff]
    %v617 = vld [vmem:[%s1 + $0x11b0] sm:$0xff]
    %v618 = vld [vmem:[%s1 + $0x11b8] sm:$0xff]
    %v619 = vld [vmem:[%s1 + $0x11c0] sm:$0xff]
    %v620 = vld [vmem:[%s1 + $0x11c8] sm:$0xff]
    %v621 = vld [vmem:[%s1 + $0x11d0] sm:$0xff]
    %v622 = vld [vmem:[%s1 + $0x11d8] sm:$0xff]
    %v623 = vld [vmem:[%s1 + $0x11e0] sm:$0xff]
    %v624 = vld [vmem:[%s1 + $0x11e8] sm:$0xff]
    %v625 = vld [vmem:[%s1 + $0x11f0] sm:$0xff]
    %v626 = vld [vmem:[%s1 + $0x11f8] sm:$0xff]
    %v627 = vld [vmem:[%s1 + $0x1200] sm:$0xff]
    %v628 = vld [vmem:[%s1 + $0x1208] sm:$0xff]
    %v629 = vld [vmem:[%s1 + $0x1210] sm:$0xff]
    %v630 = vld [vmem:[%s1 + $0x1218] sm:$0xff]
    %v631 = vld [vmem:[%s1 + $0x1220] sm:$0xff]
    %v632 = vld [vmem:[%s1 + $0x1228] sm:$0xff]
    %v633 = vld [vmem:[%s1 + $0x1230] sm:$0xff]
    %v634 = vld [vmem:[%s1 + $0x1238] sm:$0xff]
    %v635 = vld [vmem:[%s1 + $0x1240] sm:$0xff]
    %v636 = vld [vmem:[%s1 + $0x1248] sm:$0xff]
    %v637 = vld [vmem:[%s1 + $0x1250] sm:$0xff]
    %v638 = vld [vmem:[%s1 + $0x1258] sm:$0xff]
    %v639 = vld [vmem:[%s1 + $0x1260] sm:$0xff]
    %v640 = vld [vmem:[%s1 + $0x1268] sm:$0xff]
    %v641 = vld [vmem:[%s1 + $0x1270] sm:$0xff]
    %v642 = vld [vmem:[%s1 + $0x1278] sm:$0xff]
    %v643 = vld [vmem:[%s1 + $0x1280] sm:$0xff]
    %v644 = vld [vmem:[%s1 + $0x1288] sm:$0xff]
    %v645 = vld [vmem:[%s1 + $0x1290] sm:$0xff]
    %v646 = vld [vmem:[%s1 + $0x1298] sm:$0xff]
    %v647 = vld [vmem:[%s1 + $0x12a0] sm:$0xff]
    %v648 = vld [vmem:[%s1 + $0x12a8] sm:$0xff]
    %v649 = vld [vmem:[%s1 + $0x12b0] sm:$0xff]
    %v650 = vld [vmem:[%s1 + $0x12b8] sm:$0xff]
    %v651 = vld [vmem:[%s1 + $0x12c0] sm:$0xff]
    %v652 = vld [vmem:[%s1 + $0x12c8] sm:$0xff]
    %v653 = vld [vmem:[%s1 + $0x12d0] sm:$0xff]
    %v654 = vld [vmem:[%s1 + $0x12d8] sm:$0xff]
    %v655 = vld [vmem:[%s1 + $0x12e0] sm:$0xff]
    %v656 = vld [vmem:[%s1 + $0x12e8] sm:$0xff]
    %v657 = vld [vmem:[%s1 + $0x12f0] sm:$0xff]
    %v658 = vld [vmem:[%s1 + $0x12f8] sm:$0xff]
    %v659 = vld [vmem:[%s1 + $0x1300] sm:$0xff]
    %v660 = vld [vmem:[%s1 + $0x1308] sm:$0xff]
    %v661 = vld [vmem:[%s1 + $0x1310] sm:$0xff]
    %v662 = vld [vmem:[%s1 + $0x1318] sm:$0xff]
    %v663 = vld [vmem:[%s1 + $0x1320] sm:$0xff]
    %v664 = vld [vmem:[%s1 + $0x1328] sm:$0xff]
    %v665 = vld [vmem:[%s1 + $0x1330] sm:$0xff]
    %v666 = vld [vmem:[%s1 + $0x1338] sm:$0xff]
    %v667 = vld [vmem:[%s1 + $0x1340] sm:$0xff]
    %v668 = vld [vmem:[%s1 + $0x1348] sm:$0xff]
    %v669 = vld [vmem:[%s1 + $0x1350] sm:$0xff]
    %v670 = vld [vmem:[%s1 + $0x1358] sm:$0xff]
    %v671 = vld [vmem:[%s1 + $0x1360] sm:$0xff]
    %v672 = vld [vmem:[%s1 + $0x1368] sm:$0xff]
    %v673 = vld [vmem:[%s1 + $0x1370] sm:$0xff]
    %v674 = vld [vmem:[%s1 + $0x1378] sm:$0xff]
    %v675 = vld [vmem:[%s1 + $0x1380] sm:$0xff]
    %v676 = vld [vmem:[%s1 + $0x1388] sm:$0xff]
    %v677 = vld [vmem:[%s1 + $0x1390] sm:$0xff]
    %v678 = vld [vmem:[%s1 + $0x1398] sm:$0xff]
    %v679 = vld [vmem:[%s1 + $0x13a0] sm:$0xff]
    %v680 = vld [vmem:[%s1 + $0x13a8] sm:$0xff]
    %v681 = vld [vmem:[%s1 + $0x13b0] sm:$0xff]
    %v682 = vld [vmem:[%s1 + $0x13b8] sm:$0xff]
    %v683 = vld [vmem:[%s1 + $0x13c0] sm:$0xff]
    %v684 = vld [vmem:[%s1 + $0x13c8] sm:$0xff]
    %v685 = vld [vmem:[%s1 + $0x13d0] sm:$0xff]
    %v686 = vld [vmem:[%s1 + $0x13d8] sm:$0xff]
    %v687 = vld [vmem:[%s1 + $0x13e0] sm:$0xff]
    %v688 = vld [vmem:[%s1 + $0x13e8] sm:$0xff]
    %v689 = vld [vmem:[%s1 + $0x13f0] sm:$0xff]
    %v690 = vld [vmem:[%s1 + $0x13f8] sm:$0xff]
    %v691 = vld [vmem:[%s1 + $0x1400] sm:$0xff]
    %v692 = vld [vmem:[%s1 + $0x1408] sm:$0xff]
    %v693 = vld [vmem:[%s1 + $0x1410] sm:$0xff]
    %v694 = vld [vmem:[%s1 + $0x1418] sm:$0xff]
    %v695 = vld [vmem:[%s1 + $0x1420] sm:$0xff]
    %v696 = vld [vmem:[%s1 + $0x1428] sm:$0xff]
    %v697 = vld [vmem:[%s1 + $0x1430] sm:$0xff]
    %v698 = vld [vmem:[%s1 + $0x1438] sm:$0xff]
    %v699 = vld [vmem:[%s1 + $0x1440] sm:$0xff]
    %v700 = vld [vmem:[%s1 + $0x1448] sm:$0xff]
    %v701 = vld [vmem:[%s1 + $0x1450] sm:$0xff]
    %v702 = vld [vmem:[%s1 + $0x1458] sm:$0xff]
    %v703 = vld [vmem:[%s1 + $0x1460] sm:$0xff]
    %v704 = vld [vmem:[%s1 + $0x1468] sm:$0xff]
    %v705 = vld [vmem:[%s1 + $0x1470] sm:$0xff]
    %v706 = vld [vmem:[%s1 + $0x1478] sm:$0xff]
    %v707 = vld [vmem:[%s1 + $0x1480] sm:$0xff]
    %v708 = vld [vmem:[%s1 + $0x1488] sm:$0xff]
    %v709 = vld [vmem:[%s1 + $0x1490] sm:$0xff]
    %v710 = vld [vmem:[%s1 + $0x1498] sm:$0xff]
    %v711 = vld [vmem:[%s1 + $0x14a0] sm:$0xff]
    %v712 = vld [vmem:[%s1 + $0x14a8] sm:$0xff]
    %v713 = vld [vmem:[%s1 + $0x14b0] sm:$0xff]
    %v714 = vld [vmem:[%s1 + $0x14b8] sm:$0xff]
    %v715 = vld [vmem:[%s1 + $0x14c0] sm:$0xff]
    %v716 = vld [vmem:[%s1 + $0x14c8] sm:$0xff]
    %v717 = vld [vmem:[%s1 + $0x14d0] sm:$0xff]
    %v718 = vld [vmem:[%s1 + $0x14d8] sm:$0xff]
    %v719 = vld [vmem:[%s1 + $0x14e0] sm:$0xff]
    %v720 = vld [vmem:[%s1 + $0x14e8] sm:$0xff]
    %v721 = vld [vmem:[%s1 + $0x14f0] sm:$0xff]
    %v722 = vld [vmem:[%s1 + $0x14f8] sm:$0xff]
    %v723 = vld [vmem:[%s1 + $0x1500] sm:$0xff]
    %v724 = vld [vmem:[%s1 + $0x1508] sm:$0xff]
    %v725 = vld [vmem:[%s1 + $0x1510] sm:$0xff]
    %v726 = vld [vmem:[%s1 + $0x1518] sm:$0xff]
    %v727 = vld [vmem:[%s1 + $0x1520] sm:$0xff]
    %v728 = vld [vmem:[%s1 + $0x1528] sm:$0xff]
    %v729 = vld [vmem:[%s1 + $0x1530] sm:$0xff]
    %v730 = vld [vmem:[%s1 + $0x1538] sm:$0xff]
    %v731 = vld [vmem:[%s1 + $0x1540] sm:$0xff]
    %v732 = vld [vmem:[%s1 + $0x1548] sm:$0xff]
    %v733 = vld [vmem:[%s1 + $0x1550] sm:$0xff]
    %v734 = vld [vmem:[%s1 + $0x1558] sm:$0xff]
    %v735 = vld [vmem:[%s1 + $0x1560] sm:$0xff]
    %v736 = vld [vmem:[%s1 + $0x1568] sm:$0xff]
    %v737 = vld [vmem:[%s1 + $0x1570] sm:$0xff]
    %v738 = vld [vmem:[%s1 + $0x1578] sm:$0xff]
    %v739 = vld [vmem:[%s1 + $0x1580] sm:$0xff]
    %v740 = vld [vmem:[%s1 + $0x1588] sm:$0xff]
    %v741 = vld [vmem:[%s1 + $0x1590] sm:$0xff]
    %v742 = vld [vmem:[%s1 + $0x1598] sm:$0xff]
    %v743 = vld [vmem:[%s1 + $0x15a0] sm:$0xff]
    %v744 = vld [vmem:[%s1 + $0x15a8] sm:$0xff]
    %v745 = vld [vmem:[%s1 + $0x15b0] sm:$0xff]
    %v746 = vld [vmem:[%s1 + $0x15b8] sm:$0xff]
    %v747 = vld [vmem:[%s1 + $0x15c0] sm:$0xff]
    %v748 = vld [vmem:[%s1 + $0x15c8] sm:$0xff]
    %v749 = vld [vmem:[%s1 + $0x15d0] sm:$0xff]
    %v750 = vld [vmem:[%s1 + $0x15d8] sm:$0xff]
    %v751 = vld [vmem:[%s1 + $0x15e0] sm:$0xff]
    %v752 = vld [vmem:[%s1 + $0x15e8] sm:$0xff]
    %v753 = vld [vmem:[%s1 + $0x15f0] sm:$0xff]
    %v754 = vld [vmem:[%s1 + $0x15f8] sm:$0xff]
    %v755 = vld [vmem:[%s1 + $0x1600] sm:$0xff]
    %v756 = vld [vmem:[%s1 + $0x1608] sm:$0xff]
    %v757 = vld [vmem:[%s1 + $0x1610] sm:$0xff]
    %v758 = vld [vmem:[%s1 + $0x1618] sm:$0xff]
    %v759 = vld [vmem:[%s1 + $0x1620] sm:$0xff]
    %v760 = vld [vmem:[%s1 + $0x1628] sm:$0xff]
    %v761 = vld [vmem:[%s1 + $0x1630] sm:$0xff]
    %v762 = vld [vmem:[%s1 + $0x1638] sm:$0xff]
    %v763 = vld [vmem:[%s1 + $0x1640] sm:$0xff]
    %v764 = vld [vmem:[%s1 + $0x1648] sm:$0xff]
    %v765 = vld [vmem:[%s1 + $0x1650] sm:$0xff]
    %v766 = vld [vmem:[%s1 + $0x1658] sm:$0xff]
    %v767 = vld [vmem:[%s1 + $0x1660] sm:$0xff]
    %v768 = vld [vmem:[%s1 + $0x1668] sm:$0xff]
    %v769 = vld [vmem:[%s1 + $0x1670] sm:$0xff]
    %v770 = vld [vmem:[%s1 + $0x1678] sm:$0xff]
    %v771 = vld [vmem:[%s1 + $0x1680] sm:$0xff]
    %v772 = vld [vmem:[%s1 + $0x1688] sm:$0xff]
    %v773 = vld [vmem:[%s1 + $0x1690] sm:$0xff]
    %v774 = vld [vmem:[%s1 + $0x1698] sm:$0xff]
    %v775 = vld [vmem:[%s1 + $0x16a0] sm:$0xff]
    %v776 = vld [vmem:[%s1 + $0x16a8] sm:$0xff]
    %v777 = vld [vmem:[%s1 + $0x16b0] sm:$0xff]
    %v778 = vld [vmem:[%s1 + $0x16b8] sm:$0xff]
    %v779 = vld [vmem:[%s1 + $0x16c0] sm:$0xff]
    %v780 = vld [vmem:[%s1 + $0x16c8] sm:$0xff]
    %v781 = vld [vmem:[%s1 + $0x16d0] sm:$0xff]
    %v782 = vld [vmem:[%s1 + $0x16d8] sm:$0xff]
    %v783 = vld [vmem:[%s1 + $0x16e0] sm:$0xff]
    %v784 = vld [vmem:[%s1 + $0x16e8] sm:$0xff]
    %v785 = vld [vmem:[%s1 + $0x16f0] sm:$0xff]
    %v786 = vld [vmem:[%s1 + $0x16f8] sm:$0xff]
    %v787 = vld [vmem:[%s1 + $0x1700] sm:$0xff]
    %v788 = vld [vmem:[%s1 + $0x1708] sm:$0xff]
    %v789 = vld [vmem:[%s1 + $0x1710] sm:$0xff]
    %v790 = vld [vmem:[%s1 + $0x1718] sm:$0xff]
    %v791 = vld [vmem:[%s1 + $0x1720] sm:$0xff]
    %v792 = vld [vmem:[%s1 + $0x1728] sm:$0xff]
    %v793 = vld [vmem:[%s1 + $0x1730] sm:$0xff]
    %v794 = vld [vmem:[%s1 + $0x1738] sm:$0xff]
    %v795 = vld [vmem:[%s1 + $0x1740] sm:$0xff]
    %v796 = vld [vmem:[%s1 + $0x1748] sm:$0xff]
    %v797 = vld [vmem:[%s1 + $0x1750] sm:$0xff]
    %v798 = vld [vmem:[%s1 + $0x1758] sm:$0xff]
    %v799 = vld [vmem:[%s1 + $0x1760] sm:$0xff]
    %v800 = vld [vmem:[%s1 + $0x1768] sm:$0xff]
    %v801 = vld [vmem:[%s1 + $0x1770] sm:$0xff]
    %v802 = vld [vmem:[%s1 + $0x1778] sm:$0xff]
    %v803 = vld [vmem:[%s1 + $0x1780] sm:$0xff]
    %v804 = vld [vmem:[%s1 + $0x1788] sm:$0xff]
    %v805 = vld [vmem:[%s1 + $0x1790] sm:$0xff]
    %v806 = vld [vmem:[%s1 + $0x1798] sm:$0xff]
    %v807 = vld [vmem:[%s1 + $0x17a0] sm:$0xff]
    %v808 = vld [vmem:[%s1 + $0x17a8] sm:$0xff]
    %v809 = vld [vmem:[%s1 + $0x17b0] sm:$0xff]
    %v810 = vld [vmem:[%s1 + $0x17b8] sm:$0xff]
    %v811 = vld [vmem:[%s1 + $0x17c0] sm:$0xff]
    %v812 = vld [vmem:[%s1 + $0x17c8] sm:$0xff]
    %v813 = vld [vmem:[%s1 + $0x17d0] sm:$0xff]
    %v814 = vld [vmem:[%s1 + $0x17d8] sm:$0xff]
    %v815 = vld [vmem:[%s1 + $0x17e0] sm:$0xff]
    %v816 = vld [vmem:[%s1 + $0x17e8] sm:$0xff]
    %v817 = vld [vmem:[%s1 + $0x17f0] sm:$0xff]
    %v818 = vld [vmem:[%s1 + $0x17f8] sm:$0xff]
    %v819 = vld [vmem:[%s1 + $0x1800] sm:$0xff]
    %v820 = vld [vmem:[%s1 + $0x1808] sm:$0xff]
    %v821 = vld [vmem:[%s1 + $0x1810] sm:$0xff]
    %v822 = vld [vmem:[%s1 + $0x1818] sm:$0xff]
    %v823 = vld [vmem:[%s1 + $0x1820] sm:$0xff]
    %v824 = vld [vmem:[%s1 + $0x1828] sm:$0xff]
    %v825 = vld [vmem:[%s1 + $0x1830] sm:$0xff]
    %v826 = vld [vmem:[%s1 + $0x1838] sm:$0xff]
    %v827 = vld [vmem:[%s1 + $0x1840] sm:$0xff]
    %v828 = vld [vmem:[%s1 + $0x1848] sm:$0xff]
    %v829 = vld [vmem:[%s1 + $0x1850] sm:$0xff]
    %v830 = vld [vmem:[%s1 + $0x1858] sm:$0xff]
    %v831 = vld [vmem:[%s1 + $0x1860] sm:$0xff]
    %v832 = vld [vmem:[%s1 + $0x1868] sm:$0xff]
    %v833 = vld [vmem:[%s1 + $0x1870] sm:$0xff]
    %v834 = vld [vmem:[%s1 + $0x1878] sm:$0xff]
    %v835 = vld [vmem:[%s1 + $0x1880] sm:$0xff]
    %v836 = vld [vmem:[%s1 + $0x1888] sm:$0xff]
    %v837 = vld [vmem:[%s1 + $0x1890] sm:$0xff]
    %v838 = vld [vmem:[%s1 + $0x1898] sm:$0xff]
    %v839 = vld [vmem:[%s1 + $0x18a0] sm:$0xff]
    %v840 = vld [vmem:[%s1 + $0x18a8] sm:$0xff]
    %v841 = vld [vmem:[%s1 + $0x18b0] sm:$0xff]
    %v842 = vld [vmem:[%s1 + $0x18b8] sm:$0xff]
    %v843 = vld [vmem:[%s1 + $0x18c0] sm:$0xff]
    %v844 = vld [vmem:[%s1 + $0x18c8] sm:$0xff]
    %v845 = vld [vmem:[%s1 + $0x18d0] sm:$0xff]
    %v846 = vld [vmem:[%s1 + $0x18d8] sm:$0xff]
    %v847 = vld [vmem:[%s1 + $0x18e0] sm:$0xff]
    %v848 = vld [vmem:[%s1 + $0x18e8] sm:$0xff]
    %v849 = vld [vmem:[%s1 + $0x18f0] sm:$0xff]
    %v850 = vld [vmem:[%s1 + $0x18f8] sm:$0xff]
    %v851 = vld [vmem:[%s1 + $0x1900] sm:$0xff]
    %v852 = vld [vmem:[%s1 + $0x1908] sm:$0xff]
    %v853 = vld [vmem:[%s1 + $0x1910] sm:$0xff]
    %v854 = vld [vmem:[%s1 + $0x1918] sm:$0xff]
    %v855 = vld [vmem:[%s1 + $0x1920] sm:$0xff]
    %v856 = vld [vmem:[%s1 + $0x1928] sm:$0xff]
    %v857 = vld [vmem:[%s1 + $0x1930] sm:$0xff]
    %v858 = vld [vmem:[%s1 + $0x1938] sm:$0xff]
    %v859 = vld [vmem:[%s1 + $0x1940] sm:$0xff]
    %v860 = vld [vmem:[%s1 + $0x1948] sm:$0xff]
    %v861 = vld [vmem:[%s1 + $0x1950] sm:$0xff]
    %v862 = vld [vmem:[%s1 + $0x1958] sm:$0xff]
    %v863 = vld [vmem:[%s1 + $0x1960] sm:$0xff]
    %v864 = vld [vmem:[%s1 + $0x1968] sm:$0xff]
    %v865 = vld [vmem:[%s1 + $0x1970] sm:$0xff]
    %v866 = vld [vmem:[%s1 + $0x1978] sm:$0xff]
    %v867 = vld [vmem:[%s1 + $0x1980] sm:$0xff]
    %v868 = vld [vmem:[%s1 + $0x1988] sm:$0xff]
    %v869 = vld [vmem:[%s1 + $0x1990] sm:$0xff]
    %v870 = vld [vmem:[%s1 + $0x1998] sm:$0xff]
    %v871 = vld [vmem:[%s1 + $0x19a0] sm:$0xff]
    %v872 = vld [vmem:[%s1 + $0x19a8] sm:$0xff]
    %v873 = vld [vmem:[%s1 + $0x19b0] sm:$0xff]
    %v874 = vld [vmem:[%s1 + $0x19b8] sm:$0xff]
    %v875 = vld [vmem:[%s1 + $0x19c0] sm:$0xff]
    %v876 = vld [vmem:[%s1 + $0x19c8] sm:$0xff]
    %v877 = vld [vmem:[%s1 + $0x19d0] sm:$0xff]
    %v878 = vld [vmem:[%s1 + $0x19d8] sm:$0xff]
    %v879 = vld [vmem:[%s1 + $0x19e0] sm:$0xff]
    %v880 = vld [vmem:[%s1 + $0x19e8] sm:$0xff]
    %v881 = vld [vmem:[%s1 + $0x19f0] sm:$0xff]
    %v882 = vld [vmem:[%s1 + $0x19f8] sm:$0xff]
    %v883 = vld [vmem:[%s1 + $0x1a00] sm:$0xff]
    %v884 = vld [vmem:[%s1 + $0x1a08] sm:$0xff]
    %v885 = vld [vmem:[%s1 + $0x1a10] sm:$0xff]
    %v886 = vld [vmem:[%s1 + $0x1a18] sm:$0xff]
    %v887 = vld [vmem:[%s1 + $0x1a20] sm:$0xff]
    %v888 = vld [vmem:[%s1 + $0x1a28] sm:$0xff]
    %v889 = vld [vmem:[%s1 + $0x1a30] sm:$0xff]
    %v890 = vld [vmem:[%s1 + $0x1a38] sm:$0xff]
    %v891 = vld [vmem:[%s1 + $0x1a40] sm:$0xff]
    %v892 = vld [vmem:[%s1 + $0x1a48] sm:$0xff]
    %v893 = vld [vmem:[%s1 + $0x1a50] sm:$0xff]
    %v894 = vld [vmem:[%s1 + $0x1a58] sm:$0xff]
    %v895 = vld [vmem:[%s1 + $0x1a60] sm:$0xff]
    %v896 = vld [vmem:[%s1 + $0x1a68] sm:$0xff]
    %v897 = vld [vmem:[%s1 + $0x1a70] sm:$0xff]
    %v898 = vld [vmem:[%s1 + $0x1a78] sm:$0xff]
    %v899 = vld [vmem:[%s1 + $0x1a80] sm:$0xff]
    %v900 = vld [vmem:[%s1 + $0x1a88] sm:$0xff]
    %v901 = vld [vmem:[%s1 + $0x1a90] sm:$0xff]
    %v902 = vld [vmem:[%s1 + $0x1a98] sm:$0xff]
    %v903 = vld [vmem:[%s1 + $0x1aa0] sm:$0xff]
    %v904 = vld [vmem:[%s1 + $0x1aa8] sm:$0xff]
    %v905 = vld [vmem:[%s1 + $0x1ab0] sm:$0xff]
    %v906 = vld [vmem:[%s1 + $0x1ab8] sm:$0xff]
    %v907 = vld [vmem:[%s1 + $0x1ac0] sm:$0xff]
    %v908 = vld [vmem:[%s1 + $0x1ac8] sm:$0xff]
    %v909 = vld [vmem:[%s1 + $0x1ad0] sm:$0xff]
    %v910 = vld [vmem:[%s1 + $0x1ad8] sm:$0xff]
    %v911 = vld [vmem:[%s1 + $0x1ae0] sm:$0xff]
    %v912 = vld [vmem:[%s1 + $0x1ae8] sm:$0xff]
    %v913 = vld [vmem:[%s1 + $0x1af0] sm:$0xff]
    %v914 = vld [vmem:[%s1 + $0x1af8] sm:$0xff]
    %v915 = vld [vmem:[%s1 + $0x1b00] sm:$0xff]
    %v916 = vld [vmem:[%s1 + $0x1b08] sm:$0xff]
    %v917 = vld [vmem:[%s1 + $0x1b10] sm:$0xff]
    %v918 = vld [vmem:[%s1 + $0x1b18] sm:$0xff]
    %v919 = vld [vmem:[%s1 + $0x1b20] sm:$0xff]
    %v920 = vld [vmem:[%s1 + $0x1b28] sm:$0xff]
    %v921 = vld [vmem:[%s1 + $0x1b30] sm:$0xff]
    %v922 = vld [vmem:[%s1 + $0x1b38] sm:$0xff]
    %v923 = vld [vmem:[%s1 + $0x1b40] sm:$0xff]
    %v924 = vld [vmem:[%s1 + $0x1b48] sm:$0xff]
    %v925 = vld [vmem:[%s1 + $0x1b50] sm:$0xff]
    %v926 = vld [vmem:[%s1 + $0x1b58] sm:$0xff]
    %v927 = vld [vmem:[%s1 + $0x1b60] sm:$0xff]
    %v928 = vld [vmem:[%s1 + $0x1b68] sm:$0xff]
    %v929 = vld [vmem:[%s1 + $0x1b70] sm:$0xff]
    %v930 = vld [vmem:[%s1 + $0x1b78] sm:$0xff]
    %v931 = vld [vmem:[%s1 + $0x1b80] sm:$0xff]
    %v932 = vld [vmem:[%s1 + $0x1b88] sm:$0xff]
    %v933 = vld [vmem:[%s1 + $0x1b90] sm:$0xff]
    %v934 = vld [vmem:[%s1 + $0x1b98] sm:$0xff]
    %v935 = vld [vmem:[%s1 + $0x1ba0] sm:$0xff]
    %v936 = vld [vmem:[%s1 + $0x1ba8] sm:$0xff]
    %v937 = vld [vmem:[%s1 + $0x1bb0] sm:$0xff]
    %v938 = vld [vmem:[%s1 + $0x1bb8] sm:$0xff]
    %v939 = vld [vmem:[%s1 + $0x1bc0] sm:$0xff]
    %v940 = vld [vmem:[%s1 + $0x1bc8] sm:$0xff]
    %v941 = vld [vmem:[%s1 + $0x1bd0] sm:$0xff]
    %v942 = vld [vmem:[%s1 + $0x1bd8] sm:$0xff]
    %v943 = vld [vmem:[%s1 + $0x1be0] sm:$0xff]
    %v944 = vld [vmem:[%s1 + $0x1be8] sm:$0xff]
    %v945 = vld [vmem:[%s1 + $0x1bf0] sm:$0xff]
    %v946 = vld [vmem:[%s1 + $0x1bf8] sm:$0xff]
    %v947 = vld [vmem:[%s1 + $0x1c00] sm:$0xff]
    %v948 = vld [vmem:[%s1 + $0x1c08] sm:$0xff]
    %v949 = vld [vmem:[%s1 + $0x1c10] sm:$0xff]
    %v950 = vld [vmem:[%s1 + $0x1c18] sm:$0xff]
    %v951 = vld [vmem:[%s1 + $0x1c20] sm:$0xff]
    %v952 = vld [vmem:[%s1 + $0x1c28] sm:$0xff]
    %v953 = vld [vmem:[%s1 + $0x1c30] sm:$0xff]
    %v954 = vld [vmem:[%s1 + $0x1c38] sm:$0xff]
    %v955 = vld [vmem:[%s1 + $0x1c40] sm:$0xff]
    %v956 = vld [vmem:[%s1 + $0x1c48] sm:$0xff]
    %v957 = vld [vmem:[%s1 + $0x1c50] sm:$0xff]
    %v958 = vld [vmem:[%s1 + $0x1c58] sm:$0xff]
    %v959 = vld [vmem:[%s1 + $0x1c60] sm:$0xff]
    %v960 = vld [vmem:[%s1 + $0x1c68] sm:$0xff]
    %v961 = vld [vmem:[%s1 + $0x1c70] sm:$0xff]
    %v962 = vld [vmem:[%s1 + $0x1c78] sm:$0xff]
    %v963 = vld [vmem:[%s1 + $0x1c80] sm:$0xff]
    %v964 = vld [vmem:[%s1 + $0x1c88] sm:$0xff]
    %v965 = vld [vmem:[%s1 + $0x1c90] sm:$0xff]
    %v966 = vld [vmem:[%s1 + $0x1c98] sm:$0xff]
    %v967 = vld [vmem:[%s1 + $0x1ca0] sm:$0xff]
    %v968 = vld [vmem:[%s1 + $0x1ca8] sm:$0xff]
    %v969 = vld [vmem:[%s1 + $0x1cb0] sm:$0xff]
    %v970 = vld [vmem:[%s1 + $0x1cb8] sm:$0xff]
    %v971 = vld [vmem:[%s1 + $0x1cc0] sm:$0xff]
    %v972 = vld [vmem:[%s1 + $0x1cc8] sm:$0xff]
    %v973 = vld [vmem:[%s1 + $0x1cd0] sm:$0xff]
    %v974 = vld [vmem:[%s1 + $0x1cd8] sm:$0xff]
    %v975 = vld [vmem:[%s1 + $0x1ce0] sm:$0xff]
    %v976 = vld [vmem:[%s1 + $0x1ce8] sm:$0xff]
    %v977 = vld [vmem:[%s1 + $0x1cf0] sm:$0xff]
    %v978 = vld [vmem:[%s1 + $0x1cf8] sm:$0xff]
    %v979 = vld [vmem:[%s1 + $0x1d00] sm:$0xff]
    %v980 = vld [vmem:[%s1 + $0x1d08] sm:$0xff]
    %v981 = vld [vmem:[%s1 + $0x1d10] sm:$0xff]
    %v982 = vld [vmem:[%s1 + $0x1d18] sm:$0xff]
    %v983 = vld [vmem:[%s1 + $0x1d20] sm:$0xff]
    %v984 = vld [vmem:[%s1 + $0x1d28] sm:$0xff]
    %v985 = vld [vmem:[%s1 + $0x1d30] sm:$0xff]
    %v986 = vld [vmem:[%s1 + $0x1d38] sm:$0xff]
    %v987 = vld [vmem:[%s1 + $0x1d40] sm:$0xff]
    %v988 = vld [vmem:[%s1 + $0x1d48] sm:$0xff]
    %v989 = vld [vmem:[%s1 + $0x1d50] sm:$0xff]
    %v990 = vld [vmem:[%s1 + $0x1d58] sm:$0xff]
    %v991 = vld [vmem:[%s1 + $0x1d60] sm:$0xff]
    %v992 = vld [vmem:[%s1 + $0x1d68] sm:$0xff]
    %v993 = vld [vmem:[%s1 + $0x1d70] sm:$0xff]
    %v994 = vld [vmem:[%s1 + $0x1d78] sm:$0xff]
    %v995 = vld [vmem:[%s1 + $0x1d80] sm:$0xff]
    %v996 = vld [vmem:[%s1 + $0x1d88] sm:$0xff]
    %v997 = vld [vmem:[%s1 + $0x1d90] sm:$0xff]
    %v998 = vld [vmem:[%s1 + $0x1d98] sm:$0xff]
    %v999 = vld [vmem:[%s1 + $0x1da0] sm:$0xff]
    %v1000 = vld [vmem:[%s1 + $0x1da8] sm:$0xff]
    %v1001 = vld [vmem:[%s1 + $0x1db0] sm:$0xff]
    %v1002 = vld [vmem:[%s1 + $0x1db8] sm:$0xff]
    %v1003 = vld [vmem:[%s1 + $0x1dc0] sm:$0xff]
    %v1004 = vld [vmem:[%s1 + $0x1dc8] sm:$0xff]
    %v1005 = vld [vmem:[%s1 + $0x1dd0] sm:$0xff]
    %v1006 = vld [vmem:[%s1 + $0x1dd8] sm:$0xff]
    %v1007 = vld [vmem:[%s1 + $0x1de0] sm:$0xff]
    %v1008 = vld [vmem:[%s1 + $0x1de8] sm:$0xff]
    %v1009 = vld [vmem:[%s1 + $0x1df0] sm:$0xff]
    %v1010 = vld [vmem:[%s1 + $0x1df8] sm:$0xff]
    %v1011 = vld [vmem:[%s1 + $0x1e00] sm:$0xff]
    %v1012 = vld [vmem:[%s1 + $0x1e08] sm:$0xff]
    %v1013 = vld [vmem:[%s1 + $0x1e10] sm:$0xff]
    %v1014 = vld [vmem:[%s1 + $0x1e18] sm:$0xff]
    %v1015 = vld [vmem:[%s1 + $0x1e20] sm:$0xff]
    %v1016 = vld [vmem:[%s1 + $0x1e28] sm:$0xff]
    %v1017 = vld [vmem:[%s1 + $0x1e30] sm:$0xff]
    %v1018 = vld [vmem:[%s1 + $0x1e38] sm:$0xff]
    %v1019 = vld [vmem:[%s1 + $0x1e40] sm:$0xff]
    %v1020 = vld [vmem:[%s1 + $0x1e48] sm:$0xff]
    %v1021 = vld [vmem:[%s1 + $0x1e50] sm:$0xff]
    %v1022 = vld [vmem:[%s1 + $0x1e58] sm:$0xff]
    %v1023 = vld [vmem:[%s1 + $0x1e60] sm:$0xff]
    %v1024 = vld [vmem:[%s1 + $0x1e68] sm:$0xff]
    %v1025 = vld [vmem:[%s1 + $0x1e70] sm:$0xff]
    %v1026 = vld [vmem:[%s1 + $0x1e78] sm:$0xff]
    %v1027 = vld [vmem:[%s1 + $0x1e80] sm:$0xff]
    %v1028 = vld [vmem:[%s1 + $0x1e88] sm:$0xff]
    %v1029 = vld [vmem:[%s1 + $0x1e90] sm:$0xff]
    %v1030 = vld [vmem:[%s1 + $0x1e98] sm:$0xff]
    %v1031 = vld [vmem:[%s1 + $0x1ea0] sm:$0xff]
    %v1032 = vld [vmem:[%s1 + $0x1ea8] sm:$0xff]
    %v1033 = vld [vmem:[%s1 + $0x1eb0] sm:$0xff]
    %v1034 = vld [vmem:[%s1 + $0x1eb8] sm:$0xff]
    %v1035 = vld [vmem:[%s1 + $0x1ec0] sm:$0xff]
    %v1036 = vld [vmem:[%s1 + $0x1ec8] sm:$0xff]
    %v1037 = vld [vmem:[%s1 + $0x1ed0] sm:$0xff]
    %v1038 = vld [vmem:[%s1 + $0x1ed8] sm:$0xff]
    %v1039 = vld [vmem:[%s1 + $0x1ee0] sm:$0xff]
    %v1040 = vld [vmem:[%s1 + $0x1ee8] sm:$0xff]
    %v1041 = vld [vmem:[%s1 + $0x1ef0] sm:$0xff]
    %v1042 = vld [vmem:[%s1 + $0x1ef8] sm:$0xff]
    %v1043 = vld [vmem:[%s1 + $0x1f00] sm:$0xff]
    %v1044 = vld [vmem:[%s1 + $0x1f08] sm:$0xff]
    %v1045 = vld [vmem:[%s1 + $0x1f10] sm:$0xff]
    %v1046 = vld [vmem:[%s1 + $0x1f18] sm:$0xff]
    %v1047 = vld [vmem:[%s1 + $0x1f20] sm:$0xff]
    %v1048 = vld [vmem:[%s1 + $0x1f28] sm:$0xff]
    %v1049 = vld [vmem:[%s1 + $0x1f30] sm:$0xff]
    %v1050 = vld [vmem:[%s1 + $0x1f38] sm:$0xff]
    %v1051 = vld [vmem:[%s1 + $0x1f40] sm:$0xff]
    %v1052 = vld [vmem:[%s1 + $0x1f48] sm:$0xff]
    %v1053 = vld [vmem:[%s1 + $0x1f50] sm:$0xff]
    %v1054 = vld [vmem:[%s1 + $0x1f58] sm:$0xff]
    %v1055 = vld [vmem:[%s1 + $0x1f60] sm:$0xff]
    %v1056 = vld [vmem:[%s1 + $0x1f68] sm:$0xff]
    %v1057 = vld [vmem:[%s1 + $0x1f70] sm:$0xff]
    %v1058 = vld [vmem:[%s1 + $0x1f78] sm:$0xff]
    %v1059 = vld [vmem:[%s1 + $0x1f80] sm:$0xff]
    %v1060 = vld [vmem:[%s1 + $0x1f88] sm:$0xff]
    %v1061 = vld [vmem:[%s1 + $0x1f90] sm:$0xff]
    %v1062 = vld [vmem:[%s1 + $0x1f98] sm:$0xff]
    %v1063 = vld [vmem:[%s1 + $0x1fa0] sm:$0xff]
    %v1064 = vld [vmem:[%s1 + $0x1fa8] sm:$0xff]
    %v1065 = vld [vmem:[%s1 + $0x1fb0] sm:$0xff]
    %v1066 = vld [vmem:[%s1 + $0x1fb8] sm:$0xff]
    %v1067 = vld [vmem:[%s1 + $0x1fc0] sm:$0xff]
    %v1068 = vld [vmem:[%s1 + $0x1fc8] sm:$0xff]
    %v1069 = vld [vmem:[%s1 + $0x1fd0] sm:$0xff]
    %v1070 = vld [vmem:[%s1 + $0x1fd8] sm:$0xff]
    %v1071 = vld [vmem:[%s1 + $0x1fe0] sm:$0xff]
    %v1072 = vld [vmem:[%s1 + $0x1fe8] sm:$0xff]
    %v1073 = vld [vmem:[%s1 + $0x1ff0] sm:$0xff]
    %v1074 = vld [vmem:[%s1 + $0x1ff8] sm:$0xff]
    %v1075 = vld [vmem:[%s2] sm:$0x1]
    %v1077 = vperm.slane %v1075, 0
    %1111 = vst [vmem:[#allocation1] ss:$2 sm:$0xff] %v19
    %s1112 = scalar_lea.vmem [#allocation1], 16
    %1113 = vst [vmem:[%s1112] ss:$2 sm:$0xff] %v20
    %s1114 = scalar_lea.vmem [#allocation1], 32
    %1115 = vst [vmem:[%s1114] ss:$2 sm:$0xff] %v21
    %s1116 = scalar_lea.vmem [#allocation1], 48
    %1117 = vst [vmem:[%s1116] ss:$2 sm:$0xff] %v22
    %v1118 = vld.sshfl [vmem:[#allocation1] sm:$0xff pattern:$0x75316420]
    %v1119 = vld.sshfl [vmem:[#allocation1 + $0x8] sm:$0xff pattern:$0x75316420]
    %v1120 = vld.sshfl [vmem:[#allocation1 + $0x10] sm:$0xff pattern:$0x75316420]
    %v1121 = vld.sshfl [vmem:[#allocation1 + $0x18] sm:$0xff pattern:$0x75316420]
    %v1122 = vld.sshfl [vmem:[#allocation1 + $0x20] sm:$0xff pattern:$0x75316420]
    %v1123 = vld.sshfl [vmem:[#allocation1 + $0x28] sm:$0xff pattern:$0x75316420]
    %v1124 = vld.sshfl [vmem:[#allocation1 + $0x30] sm:$0xff pattern:$0x75316420]
    %v1125 = vld.sshfl [vmem:[#allocation1 + $0x38] sm:$0xff pattern:$0x75316420]
    %1126 = vst [vmem:[#allocation1] ss:$2 sm:$0xff] %v23
    %1127 = vst [vmem:[%s1112] ss:$2 sm:$0xff] %v24
    %1128 = vst [vmem:[%s1114] ss:$2 sm:$0xff] %v25
    %1129 = vst [vmem:[%s1116] ss:$2 sm:$0xff] %v26
    %v1130 = vld.sshfl [vmem:[#allocation1] sm:$0xff pattern:$0x75316420]
    %v1131 = vld.sshfl [vmem:[#allocation1 + $0x8] sm:$0xff pattern:$0x75316420]
    %v1132 = vld.sshfl [vmem:[#allocation1 + $0x10] sm:$0xff pattern:$0x75316420]
    %v1133 = vld.sshfl [vmem:[#allocation1 + $0x18] sm:$0xff pattern:$0x75316420]
    %v1134 = vld.sshfl [vmem:[#allocation1 + $0x20] sm:$0xff pattern:$0x75316420]
    %v1135 = vld.sshfl [vmem:[#allocation1 + $0x28] sm:$0xff pattern:$0x75316420]
    %v1136 = vld.sshfl [vmem:[#allocation1 + $0x30] sm:$0xff pattern:$0x75316420]
    %v1137 = vld.sshfl [vmem:[#allocation1 + $0x38] sm:$0xff pattern:$0x75316420]
    %1138 = vst [vmem:[#allocation1] ss:$2 sm:$0xff] %v27
    %1139 = vst [vmem:[%s1112] ss:$2 sm:$0xff] %v28
    %1140 = vst [vmem:[%s1114] ss:$2 sm:$0xff] %v29
    %1141 = vst [vmem:[%s1116] ss:$2 sm:$0xff] %v30
    %v1142 = vld.sshfl [vmem:[#allocation1] sm:$0xff pattern:$0x75316420]
    %v1143 = vld.sshfl [vmem:[#allocation1 + $0x8] sm:$0xff pattern:$0x75316420]
    %v1144 = vld.sshfl [vmem:[#allocation1 + $0x10] sm:$0xff pattern:$0x75316420]
    %v1145 = vld.sshfl [vmem:[#allocation1 + $0x18] sm:$0xff pattern:$0x75316420]
    %v1146 = vld.sshfl [vmem:[#allocation1 + $0x20] sm:$0xff pattern:$0x75316420]
    %v1147 = vld.sshfl [vmem:[#allocation1 + $0x28] sm:$0xff pattern:$0x75316420]
    %v1148 = vld.sshfl [vmem:[#allocation1 + $0x30] sm:$0xff pattern:$0x75316420]
    %v1149 = vld.sshfl [vmem:[#allocation1 + $0x38] sm:$0xff pattern:$0x75316420]
    %1150 = vst [vmem:[#allocation1] ss:$2 sm:$0xff] %v31
    %1151 = vst [vmem:[%s1112] ss:$2 sm:$0xff] %v32
    %1152 = vst [vmem:[%s1114] ss:$2 sm:$0xff] %v33
    %1153 = vst [vmem:[%s1116] ss:$2 sm:$0xff] %v34
    %v1154 = vld.sshfl [vmem:[#allocation1] sm:$0xff pattern:$0x75316420]
    %v1155 = vld.sshfl [vmem:[#allocation1 + $0x8] sm:$0xff pattern:$0x75316420]
    %v1156 = vld.sshfl [vmem:[#allocation1 + $0x10] sm:$0xff pattern:$0x75316420]
    %v1157 = vld.sshfl [vmem:[#allocation1 + $0x18] sm:$0xff pattern:$0x75316420]
    %v1158 = vld.sshfl [vmem:[#allocation1 + $0x20] sm:$0xff pattern:$0x75316420]
    %v1159 = vld.sshfl [vmem:[#allocation1 + $0x28] sm:$0xff pattern:$0x75316420]
    %v1160 = vld.sshfl [vmem:[#allocation1 + $0x30] sm:$0xff pattern:$0x75316420]
    %v1161 = vld.sshfl [vmem:[#allocation1 + $0x38] sm:$0xff pattern:$0x75316420]
    %1162 = vst [vmem:[#allocation1] ss:$2 sm:$0xff] %v35
    %1163 = vst [vmem:[%s1112] ss:$2 sm:$0xff] %v36
    %1164 = vst [vmem:[%s1114] ss:$2 sm:$0xff] %v37
    %1165 = vst [vmem:[%s1116] ss:$2 sm:$0xff] %v38
    %v1166 = vld.sshfl [vmem:[#allocation1] sm:$0xff pattern:$0x75316420]
    %v1167 = vld.sshfl [vmem:[#allocation1 + $0x8] sm:$0xff pattern:$0x75316420]
    %v1168 = vld.sshfl [vmem:[#allocation1 + $0x10] sm:$0xff pattern:$0x75316420]
    %v1169 = vld.sshfl [vmem:[#allocation1 + $0x18] sm:$0xff pattern:$0x75316420]
    %v1170 = vld.sshfl [vmem:[#allocation1 + $0x20] sm:$0xff pattern:$0x75316420]
    %v1171 = vld.sshfl [vmem:[#allocation1 + $0x28] sm:$0xff pattern:$0x75316420]
    %v1172 = vld.sshfl [vmem:[#allocation1 + $0x30] sm:$0xff pattern:$0x75316420]
    %v1173 = vld.sshfl [vmem:[#allocation1 + $0x38] sm:$0xff pattern:$0x75316420]
    %1174 = vst [vmem:[#allocation1] ss:$2 sm:$0xff] %v39
    %1175 = vst [vmem:[%s1112] ss:$2 sm:$0xff] %v40
    %1176 = vst [vmem:[%s1114] ss:$2 sm:$0xff] %v41
    %1177 = vst [vmem:[%s1116] ss:$2 sm:$0xff] %v42
    %v1178 = vld.sshfl [vmem:[#allocation1] sm:$0xff pattern:$0x75316420]
    %v1179 = vld.sshfl [vmem:[#allocation1 + $0x8] sm:$0xff pattern:$0x75316420]
    %v1180 = vld.sshfl [vmem:[#allocation1 + $0x10] sm:$0xff pattern:$0x75316420]
    %v1181 = vld.sshfl [vmem:[#allocation1 + $0x18] sm:$0xff pattern:$0x75316420]
    %v1182 = vld.sshfl [vmem:[#allocation1 + $0x20] sm:$0xff pattern:$0x75316420]
    %v1183 = vld.sshfl [vmem:[#allocation1 + $0x28] sm:$0xff pattern:$0x75316420]
    %v1184 = vld.sshfl [vmem:[#allocation1 + $0x30] sm:$0xff pattern:$0x75316420]
    %v1185 = vld.sshfl [vmem:[#allocation1 + $0x38] sm:$0xff pattern:$0x75316420]
    %1186 = vst [vmem:[#allocation1] ss:$2 sm:$0xff] %v43
    %1187 = vst [vmem:[%s1112] ss:$2 sm:$0xff] %v44
    %1188 = vst [vmem:[%s1114] ss:$2 sm:$0xff] %v45
    %1189 = vst [vmem:[%s1116] ss:$2 sm:$0xff] %v46
    %v1190 = vld.sshfl [vmem:[#allocation1] sm:$0xff pattern:$0x75316420]
    %v1191 = vld.sshfl [vmem:[#allocation1 + $0x8] sm:$0xff pattern:$0x75316420]
    %v1192 = vld.sshfl [vmem:[#allocation1 + $0x10] sm:$0xff pattern:$0x75316420]
    %v1193 = vld.sshfl [vmem:[#allocation1 + $0x18] sm:$0xff pattern:$0x75316420]
    %v1194 = vld.sshfl [vmem:[#allocation1 + $0x20] sm:$0xff pattern:$0x75316420]
    %v1195 = vld.sshfl [vmem:[#allocation1 + $0x28] sm:$0xff pattern:$0x75316420]
    %v1196 = vld.sshfl [vmem:[#allocation1 + $0x30] sm:$0xff pattern:$0x75316420]
    %v1197 = vld.sshfl [vmem:[#allocation1 + $0x38] sm:$0xff pattern:$0x75316420]
    %1198 = vst [vmem:[#allocation1] ss:$2 sm:$0xff] %v47
    %1199 = vst [vmem:[%s1112] ss:$2 sm:$0xff] %v48
    %1200 = vst [vmem:[%s1114] ss:$2 sm:$0xff] %v49
    %1201 = vst [vmem:[%s1116] ss:$2 sm:$0xff] %v50
    %v1202 = vld.sshfl [vmem:[#allocation1] sm:$0xff pattern:$0x75316420]
    %v1203 = vld.sshfl [vmem:[#allocation1 + $0x8] sm:$0xff pattern:$0x75316420]
    %v1204 = vld.sshfl [vmem:[#allocation1 + $0x10] sm:$0xff pattern:$0x75316420]
    %v1205 = vld.sshfl [vmem:[#allocation1 + $0x18] sm:$0xff pattern:$0x75316420]
    %v1206 = vld.sshfl [vmem:[#allocation1 + $0x20] sm:$0xff pattern:$0x75316420]
    %v1207 = vld.sshfl [vmem:[#allocation1 + $0x28] sm:$0xff pattern:$0x75316420]
    %v1208 = vld.sshfl [vmem:[#allocation1 + $0x30] sm:$0xff pattern:$0x75316420]
    %v1209 = vld.sshfl [vmem:[#allocation1 + $0x38] sm:$0xff pattern:$0x75316420]
    %1274 = vmatpush.msra.mxu0 %v66
    %1275 = vmatpush.msra.mxu0 %v65
    %1276 = vmatpush.msra.mxu0 %v64
    %1277 = vmatpush.msra.mxu0 %v63
    %1278 = vmatpush.msra.mxu0 %v62
    %1279 = vmatpush.msra.mxu0 %v61
    %1280 = vmatpush.msra.mxu0 %v60
    %1281 = vmatpush.msra.mxu0 %v59
    %1282 = vmatpush.msra.mxu0 %v58
    %1283 = vmatpush.msra.mxu0 %v57
    %1284 = vmatpush.msra.mxu0 %v56
    %1285 = vmatpush.msra.mxu0 %v55
    %1286 = vmatpush.msra.mxu0 %v54
    %1287 = vmatpush.msra.mxu0 %v53
    %1288 = vmatpush.msra.mxu0 %v52
    %1289 = vmatpush.msra.mxu0 %v51
    %1290 = vmatmul.f32.gmra.mxu0 %v1118
    %v1291 = vpop.f32.mrf.mxu0
    %v1292 = vadd.f32 %v1077, %v1291
    %1293 = vdwg.mxu0
    %1294 = vmatpush.msra.mxu0 %v82
    %1295 = vmatpush.msra.mxu0 %v81
    %1296 = vmatpush.msra.mxu0 %v80
    %1297 = vmatpush.msra.mxu0 %v79
    %1298 = vmatpush.msra.mxu0 %v78
    %1299 = vmatpush.msra.mxu0 %v77
    %1300 = vmatpush.msra.mxu0 %v76
    %1301 = vmatpush.msra.mxu0 %v75
    %1302 = vmatpush.msra.mxu0 %v74
    %1303 = vmatpush.msra.mxu0 %v73
    %1304 = vmatpush.msra.mxu0 %v72
    %1305 = vmatpush.msra.mxu0 %v71
    %1306 = vmatpush.msra.mxu0 %v70
    %1307 = vmatpush.msra.mxu0 %v69
    %1308 = vmatpush.msra.mxu0 %v68
    %1309 = vmatpush.msra.mxu0 %v67
    %1310 = vmatmul.f32.gmra.mxu0 %v1119
    %v1311 = vpop.f32.mrf.mxu0
    %v1312 = vadd.f32 %v1292, %v1311
    %1313 = vdwg.mxu0
    %1314 = vmatpush.msra.mxu0 %v98
    %1315 = vmatpush.msra.mxu0 %v97
    %1316 = vmatpush.msra.mxu0 %v96
    %1317 = vmatpush.msra.mxu0 %v95
    %1318 = vmatpush.msra.mxu0 %v94
    %1319 = vmatpush.msra.mxu0 %v93
    %1320 = vmatpush.msra.mxu0 %v92
    %1321 = vmatpush.msra.mxu0 %v91
    %1322 = vmatpush.msra.mxu0 %v90
    %1323 = vmatpush.msra.mxu0 %v89
    %1324 = vmatpush.msra.mxu0 %v88
    %1325 = vmatpush.msra.mxu0 %v87
    %1326 = vmatpush.msra.mxu0 %v86
    %1327 = vmatpush.msra.mxu0 %v85
    %1328 = vmatpush.msra.mxu0 %v84
    %1329 = vmatpush.msra.mxu0 %v83
    %1330 = vmatmul.f32.gmra.mxu0 %v1120
    %v1331 = vpop.f32.mrf.mxu0
    %v1332 = vadd.f32 %v1312, %v1331
    %1333 = vdwg.mxu0
    %1334 = vmatpush.msra.mxu0 %v114
    %1335 = vmatpush.msra.mxu0 %v113
    %1336 = vmatpush.msra.mxu0 %v112
    %1337 = vmatpush.msra.mxu0 %v111
    %1338 = vmatpush.msra.mxu0 %v110
    %1339 = vmatpush.msra.mxu0 %v109
    %1340 = vmatpush.msra.mxu0 %v108
    %1341 = vmatpush.msra.mxu0 %v107
    %1342 = vmatpush.msra.mxu0 %v106
    %1343 = vmatpush.msra.mxu0 %v105
    %1344 = vmatpush.msra.mxu0 %v104
    %1345 = vmatpush.msra.mxu0 %v103
    %1346 = vmatpush.msra.mxu0 %v102
    %1347 = vmatpush.msra.mxu0 %v101
    %1348 = vmatpush.msra.mxu0 %v100
    %1349 = vmatpush.msra.mxu0 %v99
    %1350 = vmatmul.f32.gmra.mxu0 %v1121
    %v1351 = vpop.f32.mrf.mxu0
    %v1352 = vadd.f32 %v1332, %v1351
    %1353 = vdwg.mxu0
    %1354 = vmatpush.msra.mxu0 %v130
    %1355 = vmatpush.msra.mxu0 %v129
    %1356 = vmatpush.msra.mxu0 %v128
    %1357 = vmatpush.msra.mxu0 %v127
    %1358 = vmatpush.msra.mxu0 %v126
    %1359 = vmatpush.msra.mxu0 %v125
    %1360 = vmatpush.msra.mxu0 %v124
    %1361 = vmatpush.msra.mxu0 %v123
    %1362 = vmatpush.msra.mxu0 %v122
    %1363 = vmatpush.msra.mxu0 %v121
    %1364 = vmatpush.msra.mxu0 %v120
    %1365 = vmatpush.msra.mxu0 %v119
    %1366 = vmatpush.msra.mxu0 %v118
    %1367 = vmatpush.msra.mxu0 %v117
    %1368 = vmatpush.msra.mxu0 %v116
    %1369 = vmatpush.msra.mxu0 %v115
    %1370 = vmatmul.f32.gmra.mxu0 %v1122
    %v1371 = vpop.f32.mrf.mxu0
    %v1372 = vadd.f32 %v1352, %v1371
    %1373 = vdwg.mxu0
    %1374 = vmatpush.msra.mxu0 %v146
    %1375 = vmatpush.msra.mxu0 %v145
    %1376 = vmatpush.msra.mxu0 %v144
    %1377 = vmatpush.msra.mxu0 %v143
    %1378 = vmatpush.msra.mxu0 %v142
    %1379 = vmatpush.msra.mxu0 %v141
    %1380 = vmatpush.msra.mxu0 %v140
    %1381 = vmatpush.msra.mxu0 %v139
    %1382 = vmatpush.msra.mxu0 %v138
    %1383 = vmatpush.msra.mxu0 %v137
    %1384 = vmatpush.msra.mxu0 %v136
    %1385 = vmatpush.msra.mxu0 %v135
    %1386 = vmatpush.msra.mxu0 %v134
    %1387 = vmatpush.msra.mxu0 %v133
    %1388 = vmatpush.msra.mxu0 %v132
    %1389 = vmatpush.msra.mxu0 %v131
    %1390 = vmatmul.f32.gmra.mxu0 %v1123
    %v1391 = vpop.f32.mrf.mxu0
    %v1392 = vadd.f32 %v1372, %v1391
    %1393 = vdwg.mxu0
    %1394 = vmatpush.msra.mxu0 %v162
    %1395 = vmatpush.msra.mxu0 %v161
    %1396 = vmatpush.msra.mxu0 %v160
    %1397 = vmatpush.msra.mxu0 %v159
    %1398 = vmatpush.msra.mxu0 %v158
    %1399 = vmatpush.msra.mxu0 %v157
    %1400 = vmatpush.msra.mxu0 %v156
    %1401 = vmatpush.msra.mxu0 %v155
    %1402 = vmatpush.msra.mxu0 %v154
    %1403 = vmatpush.msra.mxu0 %v153
    %1404 = vmatpush.msra.mxu0 %v152
    %1405 = vmatpush.msra.mxu0 %v151
    %1406 = vmatpush.msra.mxu0 %v150
    %1407 = vmatpush.msra.mxu0 %v149
    %1408 = vmatpush.msra.mxu0 %v148
    %1409 = vmatpush.msra.mxu0 %v147
    %1410 = vmatmul.f32.gmra.mxu0 %v1124
    %v1411 = vpop.f32.mrf.mxu0
    %v1412 = vadd.f32 %v1392, %v1411
    %1413 = vdwg.mxu0
    %1414 = vmatpush.msra.mxu0 %v178
    %1415 = vmatpush.msra.mxu0 %v177
    %1416 = vmatpush.msra.mxu0 %v176
    %1417 = vmatpush.msra.mxu0 %v175
    %1418 = vmatpush.msra.mxu0 %v174
    %1419 = vmatpush.msra.mxu0 %v173
    %1420 = vmatpush.msra.mxu0 %v172
    %1421 = vmatpush.msra.mxu0 %v171
    %1422 = vmatpush.msra.mxu0 %v170
    %1423 = vmatpush.msra.mxu0 %v169
    %1424 = vmatpush.msra.mxu0 %v168
    %1425 = vmatpush.msra.mxu0 %v167
    %1426 = vmatpush.msra.mxu0 %v166
    %1427 = vmatpush.msra.mxu0 %v165
    %1428 = vmatpush.msra.mxu0 %v164
    %1429 = vmatpush.msra.mxu0 %v163
    %1430 = vmatmul.f32.gmra.mxu0 %v1125
    %v1431 = vpop.f32.mrf.mxu0
    %v1432 = vadd.f32 %v1412, %v1431
    %1433 = vdwg.mxu0
    %1434 = vmatpush.msra.mxu0 %v194
    %1435 = vmatpush.msra.mxu0 %v193
    %1436 = vmatpush.msra.mxu0 %v192
    %1437 = vmatpush.msra.mxu0 %v191
    %1438 = vmatpush.msra.mxu0 %v190
    %1439 = vmatpush.msra.mxu0 %v189
    %1440 = vmatpush.msra.mxu0 %v188
    %1441 = vmatpush.msra.mxu0 %v187
    %1442 = vmatpush.msra.mxu0 %v186
    %1443 = vmatpush.msra.mxu0 %v185
    %1444 = vmatpush.msra.mxu0 %v184
    %1445 = vmatpush.msra.mxu0 %v183
    %1446 = vmatpush.msra.mxu0 %v182
    %1447 = vmatpush.msra.mxu0 %v181
    %1448 = vmatpush.msra.mxu0 %v180
    %1449 = vmatpush.msra.mxu0 %v179
    %1450 = vmatmul.f32.gmra.mxu0 %v1130
    %v1451 = vpop.f32.mrf.mxu0
    %v1452 = vadd.f32 %v1432, %v1451
    %1453 = vdwg.mxu0
    %1454 = vmatpush.msra.mxu0 %v210
    %1455 = vmatpush.msra.mxu0 %v209
    %1456 = vmatpush.msra.mxu0 %v208
    %1457 = vmatpush.msra.mxu0 %v207
    %1458 = vmatpush.msra.mxu0 %v206
    %1459 = vmatpush.msra.mxu0 %v205
    %1460 = vmatpush.msra.mxu0 %v204
    %1461 = vmatpush.msra.mxu0 %v203
    %1462 = vmatpush.msra.mxu0 %v202
    %1463 = vmatpush.msra.mxu0 %v201
    %1464 = vmatpush.msra.mxu0 %v200
    %1465 = vmatpush.msra.mxu0 %v199
    %1466 = vmatpush.msra.mxu0 %v198
    %1467 = vmatpush.msra.mxu0 %v197
    %1468 = vmatpush.msra.mxu0 %v196
    %1469 = vmatpush.msra.mxu0 %v195
    %1470 = vmatmul.f32.gmra.mxu0 %v1131
    %v1471 = vpop.f32.mrf.mxu0
    %v1472 = vadd.f32 %v1452, %v1471
    %1473 = vdwg.mxu0
    %1474 = vmatpush.msra.mxu0 %v226
    %1475 = vmatpush.msra.mxu0 %v225
    %1476 = vmatpush.msra.mxu0 %v224
    %1477 = vmatpush.msra.mxu0 %v223
    %1478 = vmatpush.msra.mxu0 %v222
    %1479 = vmatpush.msra.mxu0 %v221
    %1480 = vmatpush.msra.mxu0 %v220
    %1481 = vmatpush.msra.mxu0 %v219
    %1482 = vmatpush.msra.mxu0 %v218
    %1483 = vmatpush.msra.mxu0 %v217
    %1484 = vmatpush.msra.mxu0 %v216
    %1485 = vmatpush.msra.mxu0 %v215
    %1486 = vmatpush.msra.mxu0 %v214
    %1487 = vmatpush.msra.mxu0 %v213
    %1488 = vmatpush.msra.mxu0 %v212
    %1489 = vmatpush.msra.mxu0 %v211
    %1490 = vmatmul.f32.gmra.mxu0 %v1132
    %v1491 = vpop.f32.mrf.mxu0
    %v1492 = vadd.f32 %v1472, %v1491
    %1493 = vdwg.mxu0
    %1494 = vmatpush.msra.mxu0 %v242
    %1495 = vmatpush.msra.mxu0 %v241
    %1496 = vmatpush.msra.mxu0 %v240
    %1497 = vmatpush.msra.mxu0 %v239
    %1498 = vmatpush.msra.mxu0 %v238
    %1499 = vmatpush.msra.mxu0 %v237
    %1500 = vmatpush.msra.mxu0 %v236
    %1501 = vmatpush.msra.mxu0 %v235
    %1502 = vmatpush.msra.mxu0 %v234
    %1503 = vmatpush.msra.mxu0 %v233
    %1504 = vmatpush.msra.mxu0 %v232
    %1505 = vmatpush.msra.mxu0 %v231
    %1506 = vmatpush.msra.mxu0 %v230
    %1507 = vmatpush.msra.mxu0 %v229
    %1508 = vmatpush.msra.mxu0 %v228
    %1509 = vmatpush.msra.mxu0 %v227
    %1510 = vmatmul.f32.gmra.mxu0 %v1133
    %v1511 = vpop.f32.mrf.mxu0
    %v1512 = vadd.f32 %v1492, %v1511
    %1513 = vdwg.mxu0
    %1514 = vmatpush.msra.mxu0 %v258
    %1515 = vmatpush.msra.mxu0 %v257
    %1516 = vmatpush.msra.mxu0 %v256
    %1517 = vmatpush.msra.mxu0 %v255
    %1518 = vmatpush.msra.mxu0 %v254
    %1519 = vmatpush.msra.mxu0 %v253
    %1520 = vmatpush.msra.mxu0 %v252
    %1521 = vmatpush.msra.mxu0 %v251
    %1522 = vmatpush.msra.mxu0 %v250
    %1523 = vmatpush.msra.mxu0 %v249
    %1524 = vmatpush.msra.mxu0 %v248
    %1525 = vmatpush.msra.mxu0 %v247
    %1526 = vmatpush.msra.mxu0 %v246
    %1527 = vmatpush.msra.mxu0 %v245
    %1528 = vmatpush.msra.mxu0 %v244
    %1529 = vmatpush.msra.mxu0 %v243
    %1530 = vmatmul.f32.gmra.mxu0 %v1134
    %v1531 = vpop.f32.mrf.mxu0
    %v1532 = vadd.f32 %v1512, %v1531
    %1533 = vdwg.mxu0
    %1534 = vmatpush.msra.mxu0 %v274
    %1535 = vmatpush.msra.mxu0 %v273
    %1536 = vmatpush.msra.mxu0 %v272
    %1537 = vmatpush.msra.mxu0 %v271
    %1538 = vmatpush.msra.mxu0 %v270
    %1539 = vmatpush.msra.mxu0 %v269
    %1540 = vmatpush.msra.mxu0 %v268
    %1541 = vmatpush.msra.mxu0 %v267
    %1542 = vmatpush.msra.mxu0 %v266
    %1543 = vmatpush.msra.mxu0 %v265
    %1544 = vmatpush.msra.mxu0 %v264
    %1545 = vmatpush.msra.mxu0 %v263
    %1546 = vmatpush.msra.mxu0 %v262
    %1547 = vmatpush.msra.mxu0 %v261
    %1548 = vmatpush.msra.mxu0 %v260
    %1549 = vmatpush.msra.mxu0 %v259
    %1550 = vmatmul.f32.gmra.mxu0 %v1135
    %v1551 = vpop.f32.mrf.mxu0
    %v1552 = vadd.f32 %v1532, %v1551
    %1553 = vdwg.mxu0
    %1554 = vmatpush.msra.mxu0 %v290
    %1555 = vmatpush.msra.mxu0 %v289
    %1556 = vmatpush.msra.mxu0 %v288
    %1557 = vmatpush.msra.mxu0 %v287
    %1558 = vmatpush.msra.mxu0 %v286
    %1559 = vmatpush.msra.mxu0 %v285
    %1560 = vmatpush.msra.mxu0 %v284
    %1561 = vmatpush.msra.mxu0 %v283
    %1562 = vmatpush.msra.mxu0 %v282
    %1563 = vmatpush.msra.mxu0 %v281
    %1564 = vmatpush.msra.mxu0 %v280
    %1565 = vmatpush.msra.mxu0 %v279
    %1566 = vmatpush.msra.mxu0 %v278
    %1567 = vmatpush.msra.mxu0 %v277
    %1568 = vmatpush.msra.mxu0 %v276
    %1569 = vmatpush.msra.mxu0 %v275
    %1570 = vmatmul.f32.gmra.mxu0 %v1136
    %v1571 = vpop.f32.mrf.mxu0
    %v1572 = vadd.f32 %v1552, %v1571
    %1573 = vdwg.mxu0
    %1574 = vmatpush.msra.mxu0 %v306
    %1575 = vmatpush.msra.mxu0 %v305
    %1576 = vmatpush.msra.mxu0 %v304
    %1577 = vmatpush.msra.mxu0 %v303
    %1578 = vmatpush.msra.mxu0 %v302
    %1579 = vmatpush.msra.mxu0 %v301
    %1580 = vmatpush.msra.mxu0 %v300
    %1581 = vmatpush.msra.mxu0 %v299
    %1582 = vmatpush.msra.mxu0 %v298
    %1583 = vmatpush.msra.mxu0 %v297
    %1584 = vmatpush.msra.mxu0 %v296
    %1585 = vmatpush.msra.mxu0 %v295
    %1586 = vmatpush.msra.mxu0 %v294
    %1587 = vmatpush.msra.mxu0 %v293
    %1588 = vmatpush.msra.mxu0 %v292
    %1589 = vmatpush.msra.mxu0 %v291
    %1590 = vmatmul.f32.gmra.mxu0 %v1137
    %v1591 = vpop.f32.mrf.mxu0
    %v1592 = vadd.f32 %v1572, %v1591
    %1593 = vdwg.mxu0
    %1594 = vmatpush.msra.mxu0 %v322
    %1595 = vmatpush.msra.mxu0 %v321
    %1596 = vmatpush.msra.mxu0 %v320
    %1597 = vmatpush.msra.mxu0 %v319
    %1598 = vmatpush.msra.mxu0 %v318
    %1599 = vmatpush.msra.mxu0 %v317
    %1600 = vmatpush.msra.mxu0 %v316
    %1601 = vmatpush.msra.mxu0 %v315
    %1602 = vmatpush.msra.mxu0 %v314
    %1603 = vmatpush.msra.mxu0 %v313
    %1604 = vmatpush.msra.mxu0 %v312
    %1605 = vmatpush.msra.mxu0 %v311
    %1606 = vmatpush.msra.mxu0 %v310
    %1607 = vmatpush.msra.mxu0 %v309
    %1608 = vmatpush.msra.mxu0 %v308
    %1609 = vmatpush.msra.mxu0 %v307
    %1610 = vmatmul.f32.gmra.mxu0 %v1142
    %v1611 = vpop.f32.mrf.mxu0
    %v1612 = vadd.f32 %v1592, %v1611
    %1613 = vdwg.mxu0
    %1614 = vmatpush.msra.mxu0 %v338
    %1615 = vmatpush.msra.mxu0 %v337
    %1616 = vmatpush.msra.mxu0 %v336
    %1617 = vmatpush.msra.mxu0 %v335
    %1618 = vmatpush.msra.mxu0 %v334
    %1619 = vmatpush.msra.mxu0 %v333
    %1620 = vmatpush.msra.mxu0 %v332
    %1621 = vmatpush.msra.mxu0 %v331
    %1622 = vmatpush.msra.mxu0 %v330
    %1623 = vmatpush.msra.mxu0 %v329
    %1624 = vmatpush.msra.mxu0 %v328
    %1625 = vmatpush.msra.mxu0 %v327
    %1626 = vmatpush.msra.mxu0 %v326
    %1627 = vmatpush.msra.mxu0 %v325
    %1628 = vmatpush.msra.mxu0 %v324
    %1629 = vmatpush.msra.mxu0 %v323
    %1630 = vmatmul.f32.gmra.mxu0 %v1143
    %v1631 = vpop.f32.mrf.mxu0
    %v1632 = vadd.f32 %v1612, %v1631
    %1633 = vdwg.mxu0
    %1634 = vmatpush.msra.mxu0 %v354
    %1635 = vmatpush.msra.mxu0 %v353
    %1636 = vmatpush.msra.mxu0 %v352
    %1637 = vmatpush.msra.mxu0 %v351
    %1638 = vmatpush.msra.mxu0 %v350
    %1639 = vmatpush.msra.mxu0 %v349
    %1640 = vmatpush.msra.mxu0 %v348
    %1641 = vmatpush.msra.mxu0 %v347
    %1642 = vmatpush.msra.mxu0 %v346
    %1643 = vmatpush.msra.mxu0 %v345
    %1644 = vmatpush.msra.mxu0 %v344
    %1645 = vmatpush.msra.mxu0 %v343
    %1646 = vmatpush.msra.mxu0 %v342
    %1647 = vmatpush.msra.mxu0 %v341
    %1648 = vmatpush.msra.mxu0 %v340
    %1649 = vmatpush.msra.mxu0 %v339
    %1650 = vmatmul.f32.gmra.mxu0 %v1144
    %v1651 = vpop.f32.mrf.mxu0
    %v1652 = vadd.f32 %v1632, %v1651
    %1653 = vdwg.mxu0
    %1654 = vmatpush.msra.mxu0 %v370
    %1655 = vmatpush.msra.mxu0 %v369
    %1656 = vmatpush.msra.mxu0 %v368
    %1657 = vmatpush.msra.mxu0 %v367
    %1658 = vmatpush.msra.mxu0 %v366
    %1659 = vmatpush.msra.mxu0 %v365
    %1660 = vmatpush.msra.mxu0 %v364
    %1661 = vmatpush.msra.mxu0 %v363
    %1662 = vmatpush.msra.mxu0 %v362
    %1663 = vmatpush.msra.mxu0 %v361
    %1664 = vmatpush.msra.mxu0 %v360
    %1665 = vmatpush.msra.mxu0 %v359
    %1666 = vmatpush.msra.mxu0 %v358
    %1667 = vmatpush.msra.mxu0 %v357
    %1668 = vmatpush.msra.mxu0 %v356
    %1669 = vmatpush.msra.mxu0 %v355
    %1670 = vmatmul.f32.gmra.mxu0 %v1145
    %v1671 = vpop.f32.mrf.mxu0
    %v1672 = vadd.f32 %v1652, %v1671
    %1673 = vdwg.mxu0
    %1674 = vmatpush.msra.mxu0 %v386
    %1675 = vmatpush.msra.mxu0 %v385
    %1676 = vmatpush.msra.mxu0 %v384
    %1677 = vmatpush.msra.mxu0 %v383
    %1678 = vmatpush.msra.mxu0 %v382
    %1679 = vmatpush.msra.mxu0 %v381
    %1680 = vmatpush.msra.mxu0 %v380
    %1681 = vmatpush.msra.mxu0 %v379
    %1682 = vmatpush.msra.mxu0 %v378
    %1683 = vmatpush.msra.mxu0 %v377
    %1684 = vmatpush.msra.mxu0 %v376
    %1685 = vmatpush.msra.mxu0 %v375
    %1686 = vmatpush.msra.mxu0 %v374
    %1687 = vmatpush.msra.mxu0 %v373
    %1688 = vmatpush.msra.mxu0 %v372
    %1689 = vmatpush.msra.mxu0 %v371
    %1690 = vmatmul.f32.gmra.mxu0 %v1146
    %v1691 = vpop.f32.mrf.mxu0
    %v1692 = vadd.f32 %v1672, %v1691
    %1693 = vdwg.mxu0
    %1694 = vmatpush.msra.mxu0 %v402
    %1695 = vmatpush.msra.mxu0 %v401
    %1696 = vmatpush.msra.mxu0 %v400
    %1697 = vmatpush.msra.mxu0 %v399
    %1698 = vmatpush.msra.mxu0 %v398
    %1699 = vmatpush.msra.mxu0 %v397
    %1700 = vmatpush.msra.mxu0 %v396
    %1701 = vmatpush.msra.mxu0 %v395
    %1702 = vmatpush.msra.mxu0 %v394
    %1703 = vmatpush.msra.mxu0 %v393
    %1704 = vmatpush.msra.mxu0 %v392
    %1705 = vmatpush.msra.mxu0 %v391
    %1706 = vmatpush.msra.mxu0 %v390
    %1707 = vmatpush.msra.mxu0 %v389
    %1708 = vmatpush.msra.mxu0 %v388
    %1709 = vmatpush.msra.mxu0 %v387
    %1710 = vmatmul.f32.gmra.mxu0 %v1147
    %v1711 = vpop.f32.mrf.mxu0
    %v1712 = vadd.f32 %v1692, %v1711
    %1713 = vdwg.mxu0
    %1714 = vmatpush.msra.mxu0 %v418
    %1715 = vmatpush.msra.mxu0 %v417
    %1716 = vmatpush.msra.mxu0 %v416
    %1717 = vmatpush.msra.mxu0 %v415
    %1718 = vmatpush.msra.mxu0 %v414
    %1719 = vmatpush.msra.mxu0 %v413
    %1720 = vmatpush.msra.mxu0 %v412
    %1721 = vmatpush.msra.mxu0 %v411
    %1722 = vmatpush.msra.mxu0 %v410
    %1723 = vmatpush.msra.mxu0 %v409
    %1724 = vmatpush.msra.mxu0 %v408
    %1725 = vmatpush.msra.mxu0 %v407
    %1726 = vmatpush.msra.mxu0 %v406
    %1727 = vmatpush.msra.mxu0 %v405
    %1728 = vmatpush.msra.mxu0 %v404
    %1729 = vmatpush.msra.mxu0 %v403
    %1730 = vmatmul.f32.gmra.mxu0 %v1148
    %v1731 = vpop.f32.mrf.mxu0
    %v1732 = vadd.f32 %v1712, %v1731
    %1733 = vdwg.mxu0
    %1734 = vmatpush.msra.mxu0 %v434
    %1735 = vmatpush.msra.mxu0 %v433
    %1736 = vmatpush.msra.mxu0 %v432
    %1737 = vmatpush.msra.mxu0 %v431
    %1738 = vmatpush.msra.mxu0 %v430
    %1739 = vmatpush.msra.mxu0 %v429
    %1740 = vmatpush.msra.mxu0 %v428
    %1741 = vmatpush.msra.mxu0 %v427
    %1742 = vmatpush.msra.mxu0 %v426
    %1743 = vmatpush.msra.mxu0 %v425
    %1744 = vmatpush.msra.mxu0 %v424
    %1745 = vmatpush.msra.mxu0 %v423
    %1746 = vmatpush.msra.mxu0 %v422
    %1747 = vmatpush.msra.mxu0 %v421
    %1748 = vmatpush.msra.mxu0 %v420
    %1749 = vmatpush.msra.mxu0 %v419
    %1750 = vmatmul.f32.gmra.mxu0 %v1149
    %v1751 = vpop.f32.mrf.mxu0
    %v1752 = vadd.f32 %v1732, %v1751
    %1753 = vdwg.mxu0
    %1754 = vmatpush.msra.mxu0 %v450
    %1755 = vmatpush.msra.mxu0 %v449
    %1756 = vmatpush.msra.mxu0 %v448
    %1757 = vmatpush.msra.mxu0 %v447
    %1758 = vmatpush.msra.mxu0 %v446
    %1759 = vmatpush.msra.mxu0 %v445
    %1760 = vmatpush.msra.mxu0 %v444
    %1761 = vmatpush.msra.mxu0 %v443
    %1762 = vmatpush.msra.mxu0 %v442
    %1763 = vmatpush.msra.mxu0 %v441
    %1764 = vmatpush.msra.mxu0 %v440
    %1765 = vmatpush.msra.mxu0 %v439
    %1766 = vmatpush.msra.mxu0 %v438
    %1767 = vmatpush.msra.mxu0 %v437
    %1768 = vmatpush.msra.mxu0 %v436
    %1769 = vmatpush.msra.mxu0 %v435
    %1770 = vmatmul.f32.gmra.mxu0 %v1154
    %v1771 = vpop.f32.mrf.mxu0
    %v1772 = vadd.f32 %v1752, %v1771
    %1773 = vdwg.mxu0
    %1774 = vmatpush.msra.mxu0 %v466
    %1775 = vmatpush.msra.mxu0 %v465
    %1776 = vmatpush.msra.mxu0 %v464
    %1777 = vmatpush.msra.mxu0 %v463
    %1778 = vmatpush.msra.mxu0 %v462
    %1779 = vmatpush.msra.mxu0 %v461
    %1780 = vmatpush.msra.mxu0 %v460
    %1781 = vmatpush.msra.mxu0 %v459
    %1782 = vmatpush.msra.mxu0 %v458
    %1783 = vmatpush.msra.mxu0 %v457
    %1784 = vmatpush.msra.mxu0 %v456
    %1785 = vmatpush.msra.mxu0 %v455
    %1786 = vmatpush.msra.mxu0 %v454
    %1787 = vmatpush.msra.mxu0 %v453
    %1788 = vmatpush.msra.mxu0 %v452
    %1789 = vmatpush.msra.mxu0 %v451
    %1790 = vmatmul.f32.gmra.mxu0 %v1155
    %v1791 = vpop.f32.mrf.mxu0
    %v1792 = vadd.f32 %v1772, %v1791
    %1793 = vdwg.mxu0
    %1794 = vmatpush.msra.mxu0 %v482
    %1795 = vmatpush.msra.mxu0 %v481
    %1796 = vmatpush.msra.mxu0 %v480
    %1797 = vmatpush.msra.mxu0 %v479
    %1798 = vmatpush.msra.mxu0 %v478
    %1799 = vmatpush.msra.mxu0 %v477
    %1800 = vmatpush.msra.mxu0 %v476
    %1801 = vmatpush.msra.mxu0 %v475
    %1802 = vmatpush.msra.mxu0 %v474
    %1803 = vmatpush.msra.mxu0 %v473
    %1804 = vmatpush.msra.mxu0 %v472
    %1805 = vmatpush.msra.mxu0 %v471
    %1806 = vmatpush.msra.mxu0 %v470
    %1807 = vmatpush.msra.mxu0 %v469
    %1808 = vmatpush.msra.mxu0 %v468
    %1809 = vmatpush.msra.mxu0 %v467
    %1810 = vmatmul.f32.gmra.mxu0 %v1156
    %v1811 = vpop.f32.mrf.mxu0
    %v1812 = vadd.f32 %v1792, %v1811
    %1813 = vdwg.mxu0
    %1814 = vmatpush.msra.mxu0 %v498
    %1815 = vmatpush.msra.mxu0 %v497
    %1816 = vmatpush.msra.mxu0 %v496
    %1817 = vmatpush.msra.mxu0 %v495
    %1818 = vmatpush.msra.mxu0 %v494
    %1819 = vmatpush.msra.mxu0 %v493
    %1820 = vmatpush.msra.mxu0 %v492
    %1821 = vmatpush.msra.mxu0 %v491
    %1822 = vmatpush.msra.mxu0 %v490
    %1823 = vmatpush.msra.mxu0 %v489
    %1824 = vmatpush.msra.mxu0 %v488
    %1825 = vmatpush.msra.mxu0 %v487
    %1826 = vmatpush.msra.mxu0 %v486
    %1827 = vmatpush.msra.mxu0 %v485
    %1828 = vmatpush.msra.mxu0 %v484
    %1829 = vmatpush.msra.mxu0 %v483
    %1830 = vmatmul.f32.gmra.mxu0 %v1157
    %v1831 = vpop.f32.mrf.mxu0
    %v1832 = vadd.f32 %v1812, %v1831
    %1833 = vdwg.mxu0
    %1834 = vmatpush.msra.mxu0 %v514
    %1835 = vmatpush.msra.mxu0 %v513
    %1836 = vmatpush.msra.mxu0 %v512
    %1837 = vmatpush.msra.mxu0 %v511
    %1838 = vmatpush.msra.mxu0 %v510
    %1839 = vmatpush.msra.mxu0 %v509
    %1840 = vmatpush.msra.mxu0 %v508
    %1841 = vmatpush.msra.mxu0 %v507
    %1842 = vmatpush.msra.mxu0 %v506
    %1843 = vmatpush.msra.mxu0 %v505
    %1844 = vmatpush.msra.mxu0 %v504
    %1845 = vmatpush.msra.mxu0 %v503
    %1846 = vmatpush.msra.mxu0 %v502
    %1847 = vmatpush.msra.mxu0 %v501
    %1848 = vmatpush.msra.mxu0 %v500
    %1849 = vmatpush.msra.mxu0 %v499
    %1850 = vmatmul.f32.gmra.mxu0 %v1158
    %v1851 = vpop.f32.mrf.mxu0
    %v1852 = vadd.f32 %v1832, %v1851
    %1853 = vdwg.mxu0
    %1854 = vmatpush.msra.mxu0 %v530
    %1855 = vmatpush.msra.mxu0 %v529
    %1856 = vmatpush.msra.mxu0 %v528
    %1857 = vmatpush.msra.mxu0 %v527
    %1858 = vmatpush.msra.mxu0 %v526
    %1859 = vmatpush.msra.mxu0 %v525
    %1860 = vmatpush.msra.mxu0 %v524
    %1861 = vmatpush.msra.mxu0 %v523
    %1862 = vmatpush.msra.mxu0 %v522
    %1863 = vmatpush.msra.mxu0 %v521
    %1864 = vmatpush.msra.mxu0 %v520
    %1865 = vmatpush.msra.mxu0 %v519
    %1866 = vmatpush.msra.mxu0 %v518
    %1867 = vmatpush.msra.mxu0 %v517
    %1868 = vmatpush.msra.mxu0 %v516
    %1869 = vmatpush.msra.mxu0 %v515
    %1870 = vmatmul.f32.gmra.mxu0 %v1159
    %v1871 = vpop.f32.mrf.mxu0
    %v1872 = vadd.f32 %v1852, %v1871
    %1873 = vdwg.mxu0
    %1874 = vmatpush.msra.mxu0 %v546
    %1875 = vmatpush.msra.mxu0 %v545
    %1876 = vmatpush.msra.mxu0 %v544
    %1877 = vmatpush.msra.mxu0 %v543
    %1878 = vmatpush.msra.mxu0 %v542
    %1879 = vmatpush.msra.mxu0 %v541
    %1880 = vmatpush.msra.mxu0 %v540
    %1881 = vmatpush.msra.mxu0 %v539
    %1882 = vmatpush.msra.mxu0 %v538
    %1883 = vmatpush.msra.mxu0 %v537
    %1884 = vmatpush.msra.mxu0 %v536
    %1885 = vmatpush.msra.mxu0 %v535
    %1886 = vmatpush.msra.mxu0 %v534
    %1887 = vmatpush.msra.mxu0 %v533
    %1888 = vmatpush.msra.mxu0 %v532
    %1889 = vmatpush.msra.mxu0 %v531
    %1890 = vmatmul.f32.gmra.mxu0 %v1160
    %v1891 = vpop.f32.mrf.mxu0
    %v1892 = vadd.f32 %v1872, %v1891
    %1893 = vdwg.mxu0
    %1894 = vmatpush.msra.mxu0 %v562
    %1895 = vmatpush.msra.mxu0 %v561
    %1896 = vmatpush.msra.mxu0 %v560
    %1897 = vmatpush.msra.mxu0 %v559
    %1898 = vmatpush.msra.mxu0 %v558
    %1899 = vmatpush.msra.mxu0 %v557
    %1900 = vmatpush.msra.mxu0 %v556
    %1901 = vmatpush.msra.mxu0 %v555
    %1902 = vmatpush.msra.mxu0 %v554
    %1903 = vmatpush.msra.mxu0 %v553
    %1904 = vmatpush.msra.mxu0 %v552
    %1905 = vmatpush.msra.mxu0 %v551
    %1906 = vmatpush.msra.mxu0 %v550
    %1907 = vmatpush.msra.mxu0 %v549
    %1908 = vmatpush.msra.mxu0 %v548
    %1909 = vmatpush.msra.mxu0 %v547
    %1910 = vmatmul.f32.gmra.mxu0 %v1161
    %v1911 = vpop.f32.mrf.mxu0
    %v1912 = vadd.f32 %v1892, %v1911
    %1913 = vdwg.mxu0
    %1914 = vmatpush.msra.mxu0 %v578
    %1915 = vmatpush.msra.mxu0 %v577
    %1916 = vmatpush.msra.mxu0 %v576
    %1917 = vmatpush.msra.mxu0 %v575
    %1918 = vmatpush.msra.mxu0 %v574
    %1919 = vmatpush.msra.mxu0 %v573
    %1920 = vmatpush.msra.mxu0 %v572
    %1921 = vmatpush.msra.mxu0 %v571
    %1922 = vmatpush.msra.mxu0 %v570
    %1923 = vmatpush.msra.mxu0 %v569
    %1924 = vmatpush.msra.mxu0 %v568
    %1925 = vmatpush.msra.mxu0 %v567
    %1926 = vmatpush.msra.mxu0 %v566
    %1927 = vmatpush.msra.mxu0 %v565
    %1928 = vmatpush.msra.mxu0 %v564
    %1929 = vmatpush.msra.mxu0 %v563
    %1930 = vmatmul.f32.gmra.mxu0 %v1166
    %v1931 = vpop.f32.mrf.mxu0
    %v1932 = vadd.f32 %v1912, %v1931
    %1933 = vdwg.mxu0
    %1934 = vmatpush.msra.mxu0 %v594
    %1935 = vmatpush.msra.mxu0 %v593
    %1936 = vmatpush.msra.mxu0 %v592
    %1937 = vmatpush.msra.mxu0 %v591
    %1938 = vmatpush.msra.mxu0 %v590
    %1939 = vmatpush.msra.mxu0 %v589
    %1940 = vmatpush.msra.mxu0 %v588
    %1941 = vmatpush.msra.mxu0 %v587
    %1942 = vmatpush.msra.mxu0 %v586
    %1943 = vmatpush.msra.mxu0 %v585
    %1944 = vmatpush.msra.mxu0 %v584
    %1945 = vmatpush.msra.mxu0 %v583
    %1946 = vmatpush.msra.mxu0 %v582
    %1947 = vmatpush.msra.mxu0 %v581
    %1948 = vmatpush.msra.mxu0 %v580
    %1949 = vmatpush.msra.mxu0 %v579
    %1950 = vmatmul.f32.gmra.mxu0 %v1167
    %v1951 = vpop.f32.mrf.mxu0
    %v1952 = vadd.f32 %v1932, %v1951
    %1953 = vdwg.mxu0
    %1954 = vmatpush.msra.mxu0 %v610
    %1955 = vmatpush.msra.mxu0 %v609
    %1956 = vmatpush.msra.mxu0 %v608
    %1957 = vmatpush.msra.mxu0 %v607
    %1958 = vmatpush.msra.mxu0 %v606
    %1959 = vmatpush.msra.mxu0 %v605
    %1960 = vmatpush.msra.mxu0 %v604
    %1961 = vmatpush.msra.mxu0 %v603
    %1962 = vmatpush.msra.mxu0 %v602
    %1963 = vmatpush.msra.mxu0 %v601
    %1964 = vmatpush.msra.mxu0 %v600
    %1965 = vmatpush.msra.mxu0 %v599
    %1966 = vmatpush.msra.mxu0 %v598
    %1967 = vmatpush.msra.mxu0 %v597
    %1968 = vmatpush.msra.mxu0 %v596
    %1969 = vmatpush.msra.mxu0 %v595
    %1970 = vmatmul.f32.gmra.mxu0 %v1168
    %v1971 = vpop.f32.mrf.mxu0
    %v1972 = vadd.f32 %v1952, %v1971
    %1973 = vdwg.mxu0
    %1974 = vmatpush.msra.mxu0 %v626
    %1975 = vmatpush.msra.mxu0 %v625
    %1976 = vmatpush.msra.mxu0 %v624
    %1977 = vmatpush.msra.mxu0 %v623
    %1978 = vmatpush.msra.mxu0 %v622
    %1979 = vmatpush.msra.mxu0 %v621
    %1980 = vmatpush.msra.mxu0 %v620
    %1981 = vmatpush.msra.mxu0 %v619
    %1982 = vmatpush.msra.mxu0 %v618
    %1983 = vmatpush.msra.mxu0 %v617
    %1984 = vmatpush.msra.mxu0 %v616
    %1985 = vmatpush.msra.mxu0 %v615
    %1986 = vmatpush.msra.mxu0 %v614
    %1987 = vmatpush.msra.mxu0 %v613
    %1988 = vmatpush.msra.mxu0 %v612
    %1989 = vmatpush.msra.mxu0 %v611
    %1990 = vmatmul.f32.gmra.mxu0 %v1169
    %v1991 = vpop.f32.mrf.mxu0
    %v1992 = vadd.f32 %v1972, %v1991
    %1993 = vdwg.mxu0
    %1994 = vmatpush.msra.mxu0 %v642
    %1995 = vmatpush.msra.mxu0 %v641
    %1996 = vmatpush.msra.mxu0 %v640
    %1997 = vmatpush.msra.mxu0 %v639
    %1998 = vmatpush.msra.mxu0 %v638
    %1999 = vmatpush.msra.mxu0 %v637
    %2000 = vmatpush.msra.mxu0 %v636
    %2001 = vmatpush.msra.mxu0 %v635
    %2002 = vmatpush.msra.mxu0 %v634
    %2003 = vmatpush.msra.mxu0 %v633
    %2004 = vmatpush.msra.mxu0 %v632
    %2005 = vmatpush.msra.mxu0 %v631
    %2006 = vmatpush.msra.mxu0 %v630
    %2007 = vmatpush.msra.mxu0 %v629
    %2008 = vmatpush.msra.mxu0 %v628
    %2009 = vmatpush.msra.mxu0 %v627
    %2010 = vmatmul.f32.gmra.mxu0 %v1170
    %v2011 = vpop.f32.mrf.mxu0
    %v2012 = vadd.f32 %v1992, %v2011
    %2013 = vdwg.mxu0
    %2014 = vmatpush.msra.mxu0 %v658
    %2015 = vmatpush.msra.mxu0 %v657
    %2016 = vmatpush.msra.mxu0 %v656
    %2017 = vmatpush.msra.mxu0 %v655
    %2018 = vmatpush.msra.mxu0 %v654
    %2019 = vmatpush.msra.mxu0 %v653
    %2020 = vmatpush.msra.mxu0 %v652
    %2021 = vmatpush.msra.mxu0 %v651
    %2022 = vmatpush.msra.mxu0 %v650
    %2023 = vmatpush.msra.mxu0 %v649
    %2024 = vmatpush.msra.mxu0 %v648
    %2025 = vmatpush.msra.mxu0 %v647
    %2026 = vmatpush.msra.mxu0 %v646
    %2027 = vmatpush.msra.mxu0 %v645
    %2028 = vmatpush.msra.mxu0 %v644
    %2029 = vmatpush.msra.mxu0 %v643
    %2030 = vmatmul.f32.gmra.mxu0 %v1171
    %v2031 = vpop.f32.mrf.mxu0
    %v2032 = vadd.f32 %v2012, %v2031
    %2033 = vdwg.mxu0
    %2034 = vmatpush.msra.mxu0 %v674
    %2035 = vmatpush.msra.mxu0 %v673
    %2036 = vmatpush.msra.mxu0 %v672
    %2037 = vmatpush.msra.mxu0 %v671
    %2038 = vmatpush.msra.mxu0 %v670
    %2039 = vmatpush.msra.mxu0 %v669
    %2040 = vmatpush.msra.mxu0 %v668
    %2041 = vmatpush.msra.mxu0 %v667
    %2042 = vmatpush.msra.mxu0 %v666
    %2043 = vmatpush.msra.mxu0 %v665
    %2044 = vmatpush.msra.mxu0 %v664
    %2045 = vmatpush.msra.mxu0 %v663
    %2046 = vmatpush.msra.mxu0 %v662
    %2047 = vmatpush.msra.mxu0 %v661
    %2048 = vmatpush.msra.mxu0 %v660
    %2049 = vmatpush.msra.mxu0 %v659
    %2050 = vmatmul.f32.gmra.mxu0 %v1172
    %v2051 = vpop.f32.mrf.mxu0
    %v2052 = vadd.f32 %v2032, %v2051
    %2053 = vdwg.mxu0
    %2054 = vmatpush.msra.mxu0 %v690
    %2055 = vmatpush.msra.mxu0 %v689
    %2056 = vmatpush.msra.mxu0 %v688
    %2057 = vmatpush.msra.mxu0 %v687
    %2058 = vmatpush.msra.mxu0 %v686
    %2059 = vmatpush.msra.mxu0 %v685
    %2060 = vmatpush.msra.mxu0 %v684
    %2061 = vmatpush.msra.mxu0 %v683
    %2062 = vmatpush.msra.mxu0 %v682
    %2063 = vmatpush.msra.mxu0 %v681
    %2064 = vmatpush.msra.mxu0 %v680
    %2065 = vmatpush.msra.mxu0 %v679
    %2066 = vmatpush.msra.mxu0 %v678
    %2067 = vmatpush.msra.mxu0 %v677
    %2068 = vmatpush.msra.mxu0 %v676
    %2069 = vmatpush.msra.mxu0 %v675
    %2070 = vmatmul.f32.gmra.mxu0 %v1173
    %v2071 = vpop.f32.mrf.mxu0
    %v2072 = vadd.f32 %v2052, %v2071
    %2073 = vdwg.mxu0
    %2074 = vmatpush.msra.mxu0 %v706
    %2075 = vmatpush.msra.mxu0 %v705
    %2076 = vmatpush.msra.mxu0 %v704
    %2077 = vmatpush.msra.mxu0 %v703
    %2078 = vmatpush.msra.mxu0 %v702
    %2079 = vmatpush.msra.mxu0 %v701
    %2080 = vmatpush.msra.mxu0 %v700
    %2081 = vmatpush.msra.mxu0 %v699
    %2082 = vmatpush.msra.mxu0 %v698
    %2083 = vmatpush.msra.mxu0 %v697
    %2084 = vmatpush.msra.mxu0 %v696
    %2085 = vmatpush.msra.mxu0 %v695
    %2086 = vmatpush.msra.mxu0 %v694
    %2087 = vmatpush.msra.mxu0 %v693
    %2088 = vmatpush.msra.mxu0 %v692
    %2089 = vmatpush.msra.mxu0 %v691
    %2090 = vmatmul.f32.gmra.mxu0 %v1178
    %v2091 = vpop.f32.mrf.mxu0
    %v2092 = vadd.f32 %v2072, %v2091
    %2093 = vdwg.mxu0
    %2094 = vmatpush.msra.mxu0 %v722
    %2095 = vmatpush.msra.mxu0 %v721
    %2096 = vmatpush.msra.mxu0 %v720
    %2097 = vmatpush.msra.mxu0 %v719
    %2098 = vmatpush.msra.mxu0 %v718
    %2099 = vmatpush.msra.mxu0 %v717
    %2100 = vmatpush.msra.mxu0 %v716
    %2101 = vmatpush.msra.mxu0 %v715
    %2102 = vmatpush.msra.mxu0 %v714
    %2103 = vmatpush.msra.mxu0 %v713
    %2104 = vmatpush.msra.mxu0 %v712
    %2105 = vmatpush.msra.mxu0 %v711
    %2106 = vmatpush.msra.mxu0 %v710
    %2107 = vmatpush.msra.mxu0 %v709
    %2108 = vmatpush.msra.mxu0 %v708
    %2109 = vmatpush.msra.mxu0 %v707
    %2110 = vmatmul.f32.gmra.mxu0 %v1179
    %v2111 = vpop.f32.mrf.mxu0
    %v2112 = vadd.f32 %v2092, %v2111
    %2113 = vdwg.mxu0
    %2114 = vmatpush.msra.mxu0 %v738
    %2115 = vmatpush.msra.mxu0 %v737
    %2116 = vmatpush.msra.mxu0 %v736
    %2117 = vmatpush.msra.mxu0 %v735
    %2118 = vmatpush.msra.mxu0 %v734
    %2119 = vmatpush.msra.mxu0 %v733
    %2120 = vmatpush.msra.mxu0 %v732
    %2121 = vmatpush.msra.mxu0 %v731
    %2122 = vmatpush.msra.mxu0 %v730
    %2123 = vmatpush.msra.mxu0 %v729
    %2124 = vmatpush.msra.mxu0 %v728
    %2125 = vmatpush.msra.mxu0 %v727
    %2126 = vmatpush.msra.mxu0 %v726
    %2127 = vmatpush.msra.mxu0 %v725
    %2128 = vmatpush.msra.mxu0 %v724
    %2129 = vmatpush.msra.mxu0 %v723
    %2130 = vmatmul.f32.gmra.mxu0 %v1180
    %v2131 = vpop.f32.mrf.mxu0
    %v2132 = vadd.f32 %v2112, %v2131
    %2133 = vdwg.mxu0
    %2134 = vmatpush.msra.mxu0 %v754
    %2135 = vmatpush.msra.mxu0 %v753
    %2136 = vmatpush.msra.mxu0 %v752
    %2137 = vmatpush.msra.mxu0 %v751
    %2138 = vmatpush.msra.mxu0 %v750
    %2139 = vmatpush.msra.mxu0 %v749
    %2140 = vmatpush.msra.mxu0 %v748
    %2141 = vmatpush.msra.mxu0 %v747
    %2142 = vmatpush.msra.mxu0 %v746
    %2143 = vmatpush.msra.mxu0 %v745
    %2144 = vmatpush.msra.mxu0 %v744
    %2145 = vmatpush.msra.mxu0 %v743
    %2146 = vmatpush.msra.mxu0 %v742
    %2147 = vmatpush.msra.mxu0 %v741
    %2148 = vmatpush.msra.mxu0 %v740
    %2149 = vmatpush.msra.mxu0 %v739
    %2150 = vmatmul.f32.gmra.mxu0 %v1181
    %v2151 = vpop.f32.mrf.mxu0
    %v2152 = vadd.f32 %v2132, %v2151
    %2153 = vdwg.mxu0
    %2154 = vmatpush.msra.mxu0 %v770
    %2155 = vmatpush.msra.mxu0 %v769
    %2156 = vmatpush.msra.mxu0 %v768
    %2157 = vmatpush.msra.mxu0 %v767
    %2158 = vmatpush.msra.mxu0 %v766
    %2159 = vmatpush.msra.mxu0 %v765
    %2160 = vmatpush.msra.mxu0 %v764
    %2161 = vmatpush.msra.mxu0 %v763
    %2162 = vmatpush.msra.mxu0 %v762
    %2163 = vmatpush.msra.mxu0 %v761
    %2164 = vmatpush.msra.mxu0 %v760
    %2165 = vmatpush.msra.mxu0 %v759
    %2166 = vmatpush.msra.mxu0 %v758
    %2167 = vmatpush.msra.mxu0 %v757
    %2168 = vmatpush.msra.mxu0 %v756
    %2169 = vmatpush.msra.mxu0 %v755
    %2170 = vmatmul.f32.gmra.mxu0 %v1182
    %v2171 = vpop.f32.mrf.mxu0
    %v2172 = vadd.f32 %v2152, %v2171
    %2173 = vdwg.mxu0
    %2174 = vmatpush.msra.mxu0 %v786
    %2175 = vmatpush.msra.mxu0 %v785
    %2176 = vmatpush.msra.mxu0 %v784
    %2177 = vmatpush.msra.mxu0 %v783
    %2178 = vmatpush.msra.mxu0 %v782
    %2179 = vmatpush.msra.mxu0 %v781
    %2180 = vmatpush.msra.mxu0 %v780
    %2181 = vmatpush.msra.mxu0 %v779
    %2182 = vmatpush.msra.mxu0 %v778
    %2183 = vmatpush.msra.mxu0 %v777
    %2184 = vmatpush.msra.mxu0 %v776
    %2185 = vmatpush.msra.mxu0 %v775
    %2186 = vmatpush.msra.mxu0 %v774
    %2187 = vmatpush.msra.mxu0 %v773
    %2188 = vmatpush.msra.mxu0 %v772
    %2189 = vmatpush.msra.mxu0 %v771
    %2190 = vmatmul.f32.gmra.mxu0 %v1183
    %v2191 = vpop.f32.mrf.mxu0
    %v2192 = vadd.f32 %v2172, %v2191
    %2193 = vdwg.mxu0
    %2194 = vmatpush.msra.mxu0 %v802
    %2195 = vmatpush.msra.mxu0 %v801
    %2196 = vmatpush.msra.mxu0 %v800
    %2197 = vmatpush.msra.mxu0 %v799
    %2198 = vmatpush.msra.mxu0 %v798
    %2199 = vmatpush.msra.mxu0 %v797
    %2200 = vmatpush.msra.mxu0 %v796
    %2201 = vmatpush.msra.mxu0 %v795
    %2202 = vmatpush.msra.mxu0 %v794
    %2203 = vmatpush.msra.mxu0 %v793
    %2204 = vmatpush.msra.mxu0 %v792
    %2205 = vmatpush.msra.mxu0 %v791
    %2206 = vmatpush.msra.mxu0 %v790
    %2207 = vmatpush.msra.mxu0 %v789
    %2208 = vmatpush.msra.mxu0 %v788
    %2209 = vmatpush.msra.mxu0 %v787
    %2210 = vmatmul.f32.gmra.mxu0 %v1184
    %v2211 = vpop.f32.mrf.mxu0
    %v2212 = vadd.f32 %v2192, %v2211
    %2213 = vdwg.mxu0
    %2214 = vmatpush.msra.mxu0 %v818
    %2215 = vmatpush.msra.mxu0 %v817
    %2216 = vmatpush.msra.mxu0 %v816
    %2217 = vmatpush.msra.mxu0 %v815
    %2218 = vmatpush.msra.mxu0 %v814
    %2219 = vmatpush.msra.mxu0 %v813
    %2220 = vmatpush.msra.mxu0 %v812
    %2221 = vmatpush.msra.mxu0 %v811
    %2222 = vmatpush.msra.mxu0 %v810
    %2223 = vmatpush.msra.mxu0 %v809
    %2224 = vmatpush.msra.mxu0 %v808
    %2225 = vmatpush.msra.mxu0 %v807
    %2226 = vmatpush.msra.mxu0 %v806
    %2227 = vmatpush.msra.mxu0 %v805
    %2228 = vmatpush.msra.mxu0 %v804
    %2229 = vmatpush.msra.mxu0 %v803
    %2230 = vmatmul.f32.gmra.mxu0 %v1185
    %v2231 = vpop.f32.mrf.mxu0
    %v2232 = vadd.f32 %v2212, %v2231
    %2233 = vdwg.mxu0
    %2234 = vmatpush.msra.mxu0 %v834
    %2235 = vmatpush.msra.mxu0 %v833
    %2236 = vmatpush.msra.mxu0 %v832
    %2237 = vmatpush.msra.mxu0 %v831
    %2238 = vmatpush.msra.mxu0 %v830
    %2239 = vmatpush.msra.mxu0 %v829
    %2240 = vmatpush.msra.mxu0 %v828
    %2241 = vmatpush.msra.mxu0 %v827
    %2242 = vmatpush.msra.mxu0 %v826
    %2243 = vmatpush.msra.mxu0 %v825
    %2244 = vmatpush.msra.mxu0 %v824
    %2245 = vmatpush.msra.mxu0 %v823
    %2246 = vmatpush.msra.mxu0 %v822
    %2247 = vmatpush.msra.mxu0 %v821
    %2248 = vmatpush.msra.mxu0 %v820
    %2249 = vmatpush.msra.mxu0 %v819
    %2250 = vmatmul.f32.gmra.mxu0 %v1190
    %v2251 = vpop.f32.mrf.mxu0
    %v2252 = vadd.f32 %v2232, %v2251
    %2253 = vdwg.mxu0
    %2254 = vmatpush.msra.mxu0 %v850
    %2255 = vmatpush.msra.mxu0 %v849
    %2256 = vmatpush.msra.mxu0 %v848
    %2257 = vmatpush.msra.mxu0 %v847
    %2258 = vmatpush.msra.mxu0 %v846
    %2259 = vmatpush.msra.mxu0 %v845
    %2260 = vmatpush.msra.mxu0 %v844
    %2261 = vmatpush.msra.mxu0 %v843
    %2262 = vmatpush.msra.mxu0 %v842
    %2263 = vmatpush.msra.mxu0 %v841
    %2264 = vmatpush.msra.mxu0 %v840
    %2265 = vmatpush.msra.mxu0 %v839
    %2266 = vmatpush.msra.mxu0 %v838
    %2267 = vmatpush.msra.mxu0 %v837
    %2268 = vmatpush.msra.mxu0 %v836
    %2269 = vmatpush.msra.mxu0 %v835
    %2270 = vmatmul.f32.gmra.mxu0 %v1191
    %v2271 = vpop.f32.mrf.mxu0
    %v2272 = vadd.f32 %v2252, %v2271
    %2273 = vdwg.mxu0
    %2274 = vmatpush.msra.mxu0 %v866
    %2275 = vmatpush.msra.mxu0 %v865
    %2276 = vmatpush.msra.mxu0 %v864
    %2277 = vmatpush.msra.mxu0 %v863
    %2278 = vmatpush.msra.mxu0 %v862
    %2279 = vmatpush.msra.mxu0 %v861
    %2280 = vmatpush.msra.mxu0 %v860
    %2281 = vmatpush.msra.mxu0 %v859
    %2282 = vmatpush.msra.mxu0 %v858
    %2283 = vmatpush.msra.mxu0 %v857
    %2284 = vmatpush.msra.mxu0 %v856
    %2285 = vmatpush.msra.mxu0 %v855
    %2286 = vmatpush.msra.mxu0 %v854
    %2287 = vmatpush.msra.mxu0 %v853
    %2288 = vmatpush.msra.mxu0 %v852
    %2289 = vmatpush.msra.mxu0 %v851
    %2290 = vmatmul.f32.gmra.mxu0 %v1192
    %v2291 = vpop.f32.mrf.mxu0
    %v2292 = vadd.f32 %v2272, %v2291
    %2293 = vdwg.mxu0
    %2294 = vmatpush.msra.mxu0 %v882
    %2295 = vmatpush.msra.mxu0 %v881
    %2296 = vmatpush.msra.mxu0 %v880
    %2297 = vmatpush.msra.mxu0 %v879
    %2298 = vmatpush.msra.mxu0 %v878
    %2299 = vmatpush.msra.mxu0 %v877
    %2300 = vmatpush.msra.mxu0 %v876
    %2301 = vmatpush.msra.mxu0 %v875
    %2302 = vmatpush.msra.mxu0 %v874
    %2303 = vmatpush.msra.mxu0 %v873
    %2304 = vmatpush.msra.mxu0 %v872
    %2305 = vmatpush.msra.mxu0 %v871
    %2306 = vmatpush.msra.mxu0 %v870
    %2307 = vmatpush.msra.mxu0 %v869
    %2308 = vmatpush.msra.mxu0 %v868
    %2309 = vmatpush.msra.mxu0 %v867
    %2310 = vmatmul.f32.gmra.mxu0 %v1193
    %v2311 = vpop.f32.mrf.mxu0
    %v2312 = vadd.f32 %v2292, %v2311
    %2313 = vdwg.mxu0
    %2314 = vmatpush.msra.mxu0 %v898
    %2315 = vmatpush.msra.mxu0 %v897
    %2316 = vmatpush.msra.mxu0 %v896
    %2317 = vmatpush.msra.mxu0 %v895
    %2318 = vmatpush.msra.mxu0 %v894
    %2319 = vmatpush.msra.mxu0 %v893
    %2320 = vmatpush.msra.mxu0 %v892
    %2321 = vmatpush.msra.mxu0 %v891
    %2322 = vmatpush.msra.mxu0 %v890
    %2323 = vmatpush.msra.mxu0 %v889
    %2324 = vmatpush.msra.mxu0 %v888
    %2325 = vmatpush.msra.mxu0 %v887
    %2326 = vmatpush.msra.mxu0 %v886
    %2327 = vmatpush.msra.mxu0 %v885
    %2328 = vmatpush.msra.mxu0 %v884
    %2329 = vmatpush.msra.mxu0 %v883
    %2330 = vmatmul.f32.gmra.mxu0 %v1194
    %v2331 = vpop.f32.mrf.mxu0
    %v2332 = vadd.f32 %v2312, %v2331
    %2333 = vdwg.mxu0
    %2334 = vmatpush.msra.mxu0 %v914
    %2335 = vmatpush.msra.mxu0 %v913
    %2336 = vmatpush.msra.mxu0 %v912
    %2337 = vmatpush.msra.mxu0 %v911
    %2338 = vmatpush.msra.mxu0 %v910
    %2339 = vmatpush.msra.mxu0 %v909
    %2340 = vmatpush.msra.mxu0 %v908
    %2341 = vmatpush.msra.mxu0 %v907
    %2342 = vmatpush.msra.mxu0 %v906
    %2343 = vmatpush.msra.mxu0 %v905
    %2344 = vmatpush.msra.mxu0 %v904
    %2345 = vmatpush.msra.mxu0 %v903
    %2346 = vmatpush.msra.mxu0 %v902
    %2347 = vmatpush.msra.mxu0 %v901
    %2348 = vmatpush.msra.mxu0 %v900
    %2349 = vmatpush.msra.mxu0 %v899
    %2350 = vmatmul.f32.gmra.mxu0 %v1195
    %v2351 = vpop.f32.mrf.mxu0
    %v2352 = vadd.f32 %v2332, %v2351
    %2353 = vdwg.mxu0
    %2354 = vmatpush.msra.mxu0 %v930
    %2355 = vmatpush.msra.mxu0 %v929
    %2356 = vmatpush.msra.mxu0 %v928
    %2357 = vmatpush.msra.mxu0 %v927
    %2358 = vmatpush.msra.mxu0 %v926
    %2359 = vmatpush.msra.mxu0 %v925
    %2360 = vmatpush.msra.mxu0 %v924
    %2361 = vmatpush.msra.mxu0 %v923
    %2362 = vmatpush.msra.mxu0 %v922
    %2363 = vmatpush.msra.mxu0 %v921
    %2364 = vmatpush.msra.mxu0 %v920
    %2365 = vmatpush.msra.mxu0 %v919
    %2366 = vmatpush.msra.mxu0 %v918
    %2367 = vmatpush.msra.mxu0 %v917
    %2368 = vmatpush.msra.mxu0 %v916
    %2369 = vmatpush.msra.mxu0 %v915
    %2370 = vmatmul.f32.gmra.mxu0 %v1196
    %v2371 = vpop.f32.mrf.mxu0
    %v2372 = vadd.f32 %v2352, %v2371
    %2373 = vdwg.mxu0
    %2374 = vmatpush.msra.mxu0 %v946
    %2375 = vmatpush.msra.mxu0 %v945
    %2376 = vmatpush.msra.mxu0 %v944
    %2377 = vmatpush.msra.mxu0 %v943
    %2378 = vmatpush.msra.mxu0 %v942
    %2379 = vmatpush.msra.mxu0 %v941
    %2380 = vmatpush.msra.mxu0 %v940
    %2381 = vmatpush.msra.mxu0 %v939
    %2382 = vmatpush.msra.mxu0 %v938
    %2383 = vmatpush.msra.mxu0 %v937
    %2384 = vmatpush.msra.mxu0 %v936
    %2385 = vmatpush.msra.mxu0 %v935
    %2386 = vmatpush.msra.mxu0 %v934
    %2387 = vmatpush.msra.mxu0 %v933
    %2388 = vmatpush.msra.mxu0 %v932
    %2389 = vmatpush.msra.mxu0 %v931
    %2390 = vmatmul.f32.gmra.mxu0 %v1197
    %v2391 = vpop.f32.mrf.mxu0
    %v2392 = vadd.f32 %v2372, %v2391
    %2393 = vdwg.mxu0
    %2394 = vmatpush.msra.mxu0 %v962
    %2395 = vmatpush.msra.mxu0 %v961
    %2396 = vmatpush.msra.mxu0 %v960
    %2397 = vmatpush.msra.mxu0 %v959
    %2398 = vmatpush.msra.mxu0 %v958
    %2399 = vmatpush.msra.mxu0 %v957
    %2400 = vmatpush.msra.mxu0 %v956
    %2401 = vmatpush.msra.mxu0 %v955
    %2402 = vmatpush.msra.mxu0 %v954
    %2403 = vmatpush.msra.mxu0 %v953
    %2404 = vmatpush.msra.mxu0 %v952
    %2405 = vmatpush.msra.mxu0 %v951
    %2406 = vmatpush.msra.mxu0 %v950
    %2407 = vmatpush.msra.mxu0 %v949
    %2408 = vmatpush.msra.mxu0 %v948
    %2409 = vmatpush.msra.mxu0 %v947
    %2410 = vmatmul.f32.gmra.mxu0 %v1202
    %v2411 = vpop.f32.mrf.mxu0
    %v2412 = vadd.f32 %v2392, %v2411
    %2413 = vdwg.mxu0
    %2414 = vmatpush.msra.mxu0 %v978
    %2415 = vmatpush.msra.mxu0 %v977
    %2416 = vmatpush.msra.mxu0 %v976
    %2417 = vmatpush.msra.mxu0 %v975
    %2418 = vmatpush.msra.mxu0 %v974
    %2419 = vmatpush.msra.mxu0 %v973
    %2420 = vmatpush.msra.mxu0 %v972
    %2421 = vmatpush.msra.mxu0 %v971
    %2422 = vmatpush.msra.mxu0 %v970
    %2423 = vmatpush.msra.mxu0 %v969
    %2424 = vmatpush.msra.mxu0 %v968
    %2425 = vmatpush.msra.mxu0 %v967
    %2426 = vmatpush.msra.mxu0 %v966
    %2427 = vmatpush.msra.mxu0 %v965
    %2428 = vmatpush.msra.mxu0 %v964
    %2429 = vmatpush.msra.mxu0 %v963
    %2430 = vmatmul.f32.gmra.mxu0 %v1203
    %v2431 = vpop.f32.mrf.mxu0
    %v2432 = vadd.f32 %v2412, %v2431
    %2433 = vdwg.mxu0
    %2434 = vmatpush.msra.mxu0 %v994
    %2435 = vmatpush.msra.mxu0 %v993
    %2436 = vmatpush.msra.mxu0 %v992
    %2437 = vmatpush.msra.mxu0 %v991
    %2438 = vmatpush.msra.mxu0 %v990
    %2439 = vmatpush.msra.mxu0 %v989
    %2440 = vmatpush.msra.mxu0 %v988
    %2441 = vmatpush.msra.mxu0 %v987
    %2442 = vmatpush.msra.mxu0 %v986
    %2443 = vmatpush.msra.mxu0 %v985
    %2444 = vmatpush.msra.mxu0 %v984
    %2445 = vmatpush.msra.mxu0 %v983
    %2446 = vmatpush.msra.mxu0 %v982
    %2447 = vmatpush.msra.mxu0 %v981
    %2448 = vmatpush.msra.mxu0 %v980
    %2449 = vmatpush.msra.mxu0 %v979
    %2450 = vmatmul.f32.gmra.mxu0 %v1204
    %v2451 = vpop.f32.mrf.mxu0
    %v2452 = vadd.f32 %v2432, %v2451
    %2453 = vdwg.mxu0
    %2454 = vmatpush.msra.mxu0 %v1010
    %2455 = vmatpush.msra.mxu0 %v1009
    %2456 = vmatpush.msra.mxu0 %v1008
    %2457 = vmatpush.msra.mxu0 %v1007
    %2458 = vmatpush.msra.mxu0 %v1006
    %2459 = vmatpush.msra.mxu0 %v1005
    %2460 = vmatpush.msra.mxu0 %v1004
    %2461 = vmatpush.msra.mxu0 %v1003
    %2462 = vmatpush.msra.mxu0 %v1002
    %2463 = vmatpush.msra.mxu0 %v1001
    %2464 = vmatpush.msra.mxu0 %v1000
    %2465 = vmatpush.msra.mxu0 %v999
    %2466 = vmatpush.msra.mxu0 %v998
    %2467 = vmatpush.msra.mxu0 %v997
    %2468 = vmatpush.msra.mxu0 %v996
    %2469 = vmatpush.msra.mxu0 %v995
    %2470 = vmatmul.f32.gmra.mxu0 %v1205
    %v2471 = vpop.f32.mrf.mxu0
    %v2472 = vadd.f32 %v2452, %v2471
    %2473 = vdwg.mxu0
    %2474 = vmatpush.msra.mxu0 %v1026
    %2475 = vmatpush.msra.mxu0 %v1025
    %2476 = vmatpush.msra.mxu0 %v1024
    %2477 = vmatpush.msra.mxu0 %v1023
    %2478 = vmatpush.msra.mxu0 %v1022
    %2479 = vmatpush.msra.mxu0 %v1021
    %2480 = vmatpush.msra.mxu0 %v1020
    %2481 = vmatpush.msra.mxu0 %v1019
    %2482 = vmatpush.msra.mxu0 %v1018
    %2483 = vmatpush.msra.mxu0 %v1017
    %2484 = vmatpush.msra.mxu0 %v1016
    %2485 = vmatpush.msra.mxu0 %v1015
    %2486 = vmatpush.msra.mxu0 %v1014
    %2487 = vmatpush.msra.mxu0 %v1013
    %2488 = vmatpush.msra.mxu0 %v1012
    %2489 = vmatpush.msra.mxu0 %v1011
    %2490 = vmatmul.f32.gmra.mxu0 %v1206
    %v2491 = vpop.f32.mrf.mxu0
    %v2492 = vadd.f32 %v2472, %v2491
    %2493 = vdwg.mxu0
    %2494 = vmatpush.msra.mxu0 %v1042
    %2495 = vmatpush.msra.mxu0 %v1041
    %2496 = vmatpush.msra.mxu0 %v1040
    %2497 = vmatpush.msra.mxu0 %v1039
    %2498 = vmatpush.msra.mxu0 %v1038
    %2499 = vmatpush.msra.mxu0 %v1037
    %2500 = vmatpush.msra.mxu0 %v1036
    %2501 = vmatpush.msra.mxu0 %v1035
    %2502 = vmatpush.msra.mxu0 %v1034
    %2503 = vmatpush.msra.mxu0 %v1033
    %2504 = vmatpush.msra.mxu0 %v1032
    %2505 = vmatpush.msra.mxu0 %v1031
    %2506 = vmatpush.msra.mxu0 %v1030
    %2507 = vmatpush.msra.mxu0 %v1029
    %2508 = vmatpush.msra.mxu0 %v1028
    %2509 = vmatpush.msra.mxu0 %v1027
    %2510 = vmatmul.f32.gmra.mxu0 %v1207
    %v2511 = vpop.f32.mrf.mxu0
    %v2512 = vadd.f32 %v2492, %v2511
    %2513 = vdwg.mxu0
    %2514 = vmatpush.msra.mxu0 %v1058
    %2515 = vmatpush.msra.mxu0 %v1057
    %2516 = vmatpush.msra.mxu0 %v1056
    %2517 = vmatpush.msra.mxu0 %v1055
    %2518 = vmatpush.msra.mxu0 %v1054
    %2519 = vmatpush.msra.mxu0 %v1053
    %2520 = vmatpush.msra.mxu0 %v1052
    %2521 = vmatpush.msra.mxu0 %v1051
    %2522 = vmatpush.msra.mxu0 %v1050
    %2523 = vmatpush.msra.mxu0 %v1049
    %2524 = vmatpush.msra.mxu0 %v1048
    %2525 = vmatpush.msra.mxu0 %v1047
    %2526 = vmatpush.msra.mxu0 %v1046
    %2527 = vmatpush.msra.mxu0 %v1045
    %2528 = vmatpush.msra.mxu0 %v1044
    %2529 = vmatpush.msra.mxu0 %v1043
    %2530 = vmatmul.f32.gmra.mxu0 %v1208
    %v2531 = vpop.f32.mrf.mxu0
    %v2532 = vadd.f32 %v2512, %v2531
    %2533 = vdwg.mxu0
    %2534 = vmatpush.msra.mxu0 %v1074
    %2535 = vmatpush.msra.mxu0 %v1073
    %2536 = vmatpush.msra.mxu0 %v1072
    %2537 = vmatpush.msra.mxu0 %v1071
    %2538 = vmatpush.msra.mxu0 %v1070
    %2539 = vmatpush.msra.mxu0 %v1069
    %2540 = vmatpush.msra.mxu0 %v1068
    %2541 = vmatpush.msra.mxu0 %v1067
    %2542 = vmatpush.msra.mxu0 %v1066
    %2543 = vmatpush.msra.mxu0 %v1065
    %2544 = vmatpush.msra.mxu0 %v1064
    %2545 = vmatpush.msra.mxu0 %v1063
    %2546 = vmatpush.msra.mxu0 %v1062
    %2547 = vmatpush.msra.mxu0 %v1061
    %2548 = vmatpush.msra.mxu0 %v1060
    %2549 = vmatpush.msra.mxu0 %v1059
    %2550 = vmatmul.f32.gmra.mxu0 %v1209
    %v2551 = vpop.f32.mrf.mxu0
    %v2552 = vadd.f32 %v2532, %v2551
    %2553 = vdwg.mxu0
    %s2554 = sld [smem:[#allocation2]]
    %vm2555 = vcmp.gt.f32.partialorder %v2552, 0.0
    %v2556 = vstv %s2554
    %v2557 = vmul.f32 %v2556, %v2552
    %v2558 = vsel %vm2555, %v2552, %v2557
    %vm2559 = vcmask 125952
    %2560 = vst.msk [vmem:[#allocation3] sm:$0xf] %vm2559, %v2558
    // Predicated region
    $region18: #{rgbd_in_forward.3} parent=1 // pred_check
      _
    $region19: #{rgbd_in_forward.3} parent=1 // pred_check_branch
      %2562 = sbr.rel (0) target = $region21
    $region20: #{rgbd_in_forward.3} parent=1 // pred_region
      %2564 = vsyncadd [#allocation4], 0
      %s2566 = sshll.u32 [#allocation3], 4
      %s2567 = int_to_ptr.vmem [resolvable:$true] %s2566
      %s2568 = sshll.u32 %s4, 4
      %s2569 = int_to_ptr.hbm [resolvable:$true] %s2568
      %2571 = dma.vmem_to_hbm [thread:$0]  %s2567, 64, %s2569, [#allocation4]
    $region21: #{rgbd_in_forward.3} parent=1 // pred_fallthru
      _
    // Predicated region
    $region22: #{rgbd_in_forward.3} parent=1 // pred_check
      _
    $region23: #{rgbd_in_forward.3} parent=1 // pred_check_branch
      %2573 = sbr.rel (0) target = $region25
    $region24: #{rgbd_in_forward.3} parent=1 // pred_region
      %2575 = dma.done [#allocation4], 64
    $region25: #{rgbd_in_forward.3} parent=1 // pred_fallthru
      _
    %2576 = vsyncpa [#allocation4], 1

</llo_original>
